<compile_context>
chip_gen: v6e
topology: v6e:2x2x1
jax: 0.10.0
libtpu: 0.0.40
codegen_flags: <defaults>
</compile_context>

<pallas_src>
import functools

import numpy as np
import jax
import jax.numpy as jnp
from jax.experimental import pallas as pl
from jax.experimental.pallas import tpu as pltpu


def _up_kernel(*refs, Nb, H, W, chans, do_unpool):
    """Fused decoder block for Nb images.

    refs order:
      in : x_pad (Nb,H+2,W+2,chans[0]); per conv layer l: w_mat (9*chans[l], chans[l+1]),
           bias (1, chans[l+1]); then (if do_unpool) pool indices (Nb,H,W,chans[-1]) int32.
      out: (Nb,H,W,4*chans[-1]) lane-packed unpool output, or (Nb,H,W,chans[-1]) if no unpool.
      scratch: per layer l>=1 a padded activation buffer (Nb,H+2,W+2,chans[l]);
               per layer l an im2col matrix (Nb*H*W, 9*chans[l]).
    """
    L = len(chans) - 1
    it = iter(refs)
    x_ref = next(it)
    wb = [(next(it), next(it)) for _ in range(L)]
    ind_ref = next(it) if do_unpool else None
    y_ref = next(it)
    pad_refs = [next(it) for _ in range(L - 1)]
    col_refs = [next(it) for _ in range(L)]

    M = Nb * H * W
    pad_vals = x_ref[...]                      # (Nb, H+2, W+2, chans[0]), pre-padded
    h = None
    for l in range(L):
        cin, cout = chans[l], chans[l + 1]
        w_ref, b_ref = wb[l]
        col = col_refs[l]
        # im2col: 9 shifted (Nb,H,W,cin) windows written side-by-side along lanes.
        for dy in range(3):
            for dx in range(3):
                tap = dy * 3 + dx
                col[:, tap * cin:(tap + 1) * cin] = (
                    pad_vals[:, dy:dy + H, dx:dx + W, :].reshape(M, cin))
        # single MXU matmul, default precision, f32 accumulation
        h = jnp.dot(col[...], w_ref[...], preferred_element_type=jnp.float32)
        h = jnp.maximum(h + b_ref[...], 0.0)   # bias (+ folded BN) + ReLU
        if l + 1 < L:
            pad = pad_refs[l]
            # Zero every step (cheap at this size and safe if the "parallel" batch axis
            # is sharded across TensorCores), then write only the interior.
            pad[...] = jnp.zeros_like(pad)
            pad[:, 1:H + 1, 1:W + 1, :] = h.reshape(Nb, H, W, cout)
            pad_vals = pad[...]

    C = chans[-1]
    if not do_unpool:
        y_ref[...] = h.reshape(Nb, H, W, C)
        return

    # MaxUnpool2d(2,2): the value is scattered to the 2x2-window position recorded in the
    # pool index (flattened over the (2H, 2W) plane, PyTorch convention); others are zero.
    hh = h.reshape(Nb, H, W, C)
    ind = ind_ref[...]
    row = jax.lax.broadcasted_iota(jnp.int32, (Nb, H, W, C), 1)
    colw = jax.lax.broadcasted_iota(jnp.int32, (Nb, H, W, C), 2)
    W2 = 2 * W
    base = (2 * row) * W2 + 2 * colw
    zero = jnp.zeros_like(hh)
    # lane-packed output: [r0c0 | r0c1 | r1c0 | r1c1], each C channels
    y_ref[:, :, :, 0 * C:1 * C] = jnp.where(ind == base,          hh, zero)
    y_ref[:, :, :, 1 * C:2 * C] = jnp.where(ind == base + 1,      hh, zero)
    y_ref[:, :, :, 2 * C:3 * C] = jnp.where(ind == base + W2,     hh, zero)
    y_ref[:, :, :, 3 * C:4 * C] = jnp.where(ind == base + W2 + 1, hh, zero)


def _fold_convtranspose_bn(wt, b, gamma, beta, mean, var, eps=1e-5):
    """ConvTranspose2d(3x3, s=1, p=1) + eval-mode BN -> equivalent same-conv.

    wt: torch ConvTranspose2d weight (Cin, Cout, 3, 3).
    Returns (w_mat (9*Cin, Cout), bias (1, Cout)) with tap order matching the kernel's
    im2col (row-major dy, dx; channels fastest).
    """
    scale = gamma / jnp.sqrt(var + eps)
    w_eq = jnp.flip(jnp.transpose(wt, (1, 0, 2, 3)), axis=(2, 3))   # OIHW, flipped
    w_eq = w_eq * scale[:, None, None, None]
    b_f = (b - mean) * scale + beta
    cout = w_eq.shape[0]
    w_mat = jnp.transpose(w_eq, (2, 3, 1, 0)).reshape(-1, cout)     # (9*Cin, Cout)
    return w_mat, b_f.reshape(1, cout)


def _pick_block_n(N, H, W):
    """Choose images-per-grid-step so M = Nb*H*W is >= ~256 (MXU-friendly)."""
    target = max(1, -(-256 // (H * W)))
    nb = min(N, target)
    while N % nb:
        nb -= 1
    return nb


def up_forward(x1, layers, pool_ind=None, x2=None, *, block_n=None):
    """Forward of `up`: deconv stack, then (if x2 is given) unpool with pool_ind to
    x2's spatial size and torch.cat([x2, x1], dim=1).  All tensors NCHW float32.
    `layers` = list of folded (w_mat, bias) pairs from _fold_convtranspose_bn."""
    N, C0, H, W = x1.shape
    chans = [C0] + [int(w.shape[1]) for w, _ in layers]
    Clast = chans[-1]
    do_unpool = x2 is not None

    Nb = block_n or _pick_block_n(N, H, W)
    assert N % Nb == 0

    x = jnp.transpose(x1, (0, 2, 3, 1))                      # NHWC (channels = lanes)
    x = jnp.pad(x, ((0, 0), (1, 1), (1, 1), (0, 0)))         # conv1 halo padded in wrapper

    in_specs = [pl.BlockSpec((Nb, H + 2, W + 2, C0), lambda n: (n, 0, 0, 0))]
    args = [x]
    for wm, bias in layers:
        in_specs += [pl.BlockSpec(wm.shape, lambda n: (0, 0)),
                     pl.BlockSpec(bias.shape, lambda n: (0, 0))]
        args += [wm, bias]
    if do_unpool:
        ind = jnp.transpose(pool_ind.astype(jnp.int32), (0, 2, 3, 1))
        in_specs.append(pl.BlockSpec((Nb, H, W, Clast), lambda n: (n, 0, 0, 0)))
        args.append(ind)
        out_shape = jax.ShapeDtypeStruct((N, H, W, 4 * Clast), jnp.float32)
        out_spec = pl.BlockSpec((Nb, H, W, 4 * Clast), lambda n: (n, 0, 0, 0))
    else:
        out_shape = jax.ShapeDtypeStruct((N, H, W, Clast), jnp.float32)
        out_spec = pl.BlockSpec((Nb, H, W, Clast), lambda n: (n, 0, 0, 0))

    scratch = [pltpu.VMEM((Nb, H + 2, W + 2, c), jnp.float32) for c in chans[1:-1]]
    scratch += [pltpu.VMEM((Nb * H * W, 9 * c), jnp.float32) for c in chans[:-1]]

    kernel = functools.partial(_up_kernel, Nb=Nb, H=H, W=W,
                               chans=tuple(chans), do_unpool=do_unpool)
    # NOTE: for realistic decoder sizes (e.g. 256x256x64) re-derive the VMEM budget and
    # either tile spatially or set pltpu.CompilerParams(vmem_limit_bytes=...) —
    # v7x has 64 MiB physical VMEM, v5e defaults to a 16 MiB scoped limit.
    y = pl.pallas_call(
        kernel,
        out_shape=out_shape,
        grid_spec=pltpu.PrefetchScalarGridSpec(
            num_scalar_prefetch=0,
            grid=(N // Nb,),
            in_specs=in_specs,
            out_specs=out_spec,
            scratch_shapes=scratch),
        compiler_params=pltpu.CompilerParams(
            dimension_semantics=("parallel",)),       # batch axis -> both TCs on v7x
    )(*args)

    if not do_unpool:
        return jnp.transpose(y, (0, 3, 1, 2))

    H2, W2 = int(x2.shape[2]), int(x2.shape[3])
    assert H2 == 2 * H and W2 == 2 * W, "MaxUnpool2d output_size must be exactly 2x"
    # unpack lanes [r0c0|r0c1|r1c0|r1c1] -> NCHW (N, Clast, 2H, 2W)
    y = y.reshape(N, H, W, 2, 2, Clast)
    y = jnp.transpose(y, (0, 5, 1, 3, 2, 4)).reshape(N, Clast, 2 * H, 2 * W)
    return jnp.concatenate([x2, y], axis=1)           # torch.cat([x2, x1], dim=1)


def init_up_params(key, in_channels, block_cfg, eps=1e-5):
    """Deterministic ConvTranspose2d + BatchNorm2d params (torch layouts), eval-mode BN
    folded into conv-equivalent (w_mat, bias) pairs. 'M' entries (MaxUnpool2d) carry no
    parameters and are handled by the forward when x2/poolInd are provided."""
    convs = [v for v in block_cfg if v != 'M']
    layers = []
    cin = in_channels
    ks = iter(jax.random.split(key, len(convs) * 6))
    for cout in convs:
        wt = 0.1 * jax.random.normal(next(ks), (cin, cout, 3, 3), jnp.float32)
        b = 0.05 * jax.random.normal(next(ks), (cout,), jnp.float32)
        gamma = 1.0 + 0.1 * jax.random.normal(next(ks), (cout,), jnp.float32)
        beta = 0.05 * jax.random.normal(next(ks), (cout,), jnp.float32)
        mean = 0.1 * jax.random.normal(next(ks), (cout,), jnp.float32)
        var = 1.0 + 0.1 * jax.random.uniform(next(ks), (cout,), jnp.float32)
        layers.append(_fold_convtranspose_bn(wt, b, gamma, beta, mean, var, eps))
        cin = cout
    return layers


def _ref_forward(x1, layers, pool_ind=None, x2=None):
    """Pure-JAX reference for `up` (eval-mode BN folded): 3x3 same-convs + ReLU, then
    MaxUnpool2d as a true scatter, then channel concat."""
    h = x1
    for w_mat, bias in layers:
        cout = w_mat.shape[1]
        cin = w_mat.shape[0] // 9
        w = jnp.transpose(w_mat.reshape(3, 3, cin, cout), (3, 2, 0, 1))   # OIHW
        h = jax.lax.conv_general_dilated(
            h, w, (1, 1), ((1, 1), (1, 1)),
            dimension_numbers=('NCHW', 'OIHW', 'NCHW'))
        h = jnp.maximum(h + bias.reshape(1, cout, 1, 1), 0.0)
    if x2 is None:
        return h
    N, C, _, _ = h.shape
    H2, W2 = x2.shape[2], x2.shape[3]
    out = jnp.zeros((N, C, H2 * W2), h.dtype)
    n_idx = jnp.arange(N)[:, None, None, None]
    c_idx = jnp.arange(C)[None, :, None, None]
    out = out.at[n_idx, c_idx, pool_ind].set(h)
    return jnp.concatenate([x2, out.reshape(N, C, H2, W2)], axis=1)


if __name__ == "__main__":
    key = jax.random.PRNGKey(0)
    kx, kp, kr, ks, k2 = jax.random.split(key, 5)

    N, Cin, H, W = 2, 64, 8, 8
    cfg = (64, 64, 'M')                     # two (deconv+BN+ReLU) blocks, then MaxUnpool2d
    Clast, Cskip = 64, 64

    x1 = jax.random.normal(kx, (N, Cin, H, W), jnp.float32)
    layers = init_up_params(kp, Cin, cfg)

    # pool indices as produced by the matching MaxPool2d(2,2): one winner per 2x2 window
    # of the (2H, 2W) plane, flattened H2*W2 per (n, c)   (int32 instead of torch int64)
    r = jax.random.bernoulli(kr, 0.5, (N, Clast, H, W)).astype(jnp.int32)
    s = jax.random.bernoulli(ks, 0.5, (N, Clast, H, W)).astype(jnp.int32)
    ih = jnp.arange(H, dtype=jnp.int32)[None, None, :, None]
    iw = jnp.arange(W, dtype=jnp.int32)[None, None, None, :]
    pool_ind = (2 * ih + r) * (2 * W) + (2 * iw + s)
    x2 = jax.random.normal(k2, (N, Cskip, 2 * H, 2 * W), jnp.float32)

    out_full = up_forward(x1, layers, pool_ind, x2)     # deconv -> unpool -> cat
    out_deconv = up_forward(x1, layers)                 # x2=None path (deconv only)
    jax.block_until_ready((out_full, out_deconv))

    ref_full = _ref_forward(x1, layers, pool_ind, x2)
    ref_deconv = _ref_forward(x1, layers)
    np.testing.assert_allclose(np.asarray(out_full), np.asarray(ref_full),
                               rtol=2e-2, atol=2e-2)
    np.testing.assert_allclose(np.asarray(out_deconv), np.asarray(ref_deconv),
                               rtol=2e-2, atol=2e-2)
    assert out_full.shape == (N, Cskip + Clast, 2 * H, 2 * W)
    assert out_deconv.shape == (N, Clast, H, W)

    print("KERNEL_OK")
</pallas_src>

<mosaic_0001>
module attributes {stable_mosaic.version = 11 : i64} {
  func.func @_up_kernel(%arg0: i32, %arg1: memref<2x10x10x64xf32, #tpu.memory_space<vmem>>, %arg2: memref<576x64xf32, #tpu.memory_space<vmem>>, %arg3: memref<1x64xf32, #tpu.memory_space<vmem>>, %arg4: memref<576x64xf32, #tpu.memory_space<vmem>>, %arg5: memref<1x64xf32, #tpu.memory_space<vmem>>, %arg6: memref<2x8x8x64xi32, #tpu.memory_space<vmem>>, %arg7: memref<2x8x8x256xf32, #tpu.memory_space<vmem>>, %arg8: memref<2x10x10x64xf32, #tpu.memory_space<vmem>>, %arg9: memref<128x576xf32, #tpu.memory_space<vmem>>, %arg10: memref<128x576xf32, #tpu.memory_space<vmem>>) attributes {dimension_semantics = [#tpu.dimension_semantics<parallel>], iteration_bounds = array<i64: 1>, scalar_prefetch = 0 : i64, scratch_operands = 3 : i64, tpu.core_type = #tpu.core_type<tc>, window_params = [{transform_indices = @transform_0, window_bounds = array<i64: 2, 10, 10, 64>}, {pipeline_mode = #tpu.pipeline_mode<synchronous>, transform_indices = @transform_1, window_bounds = array<i64: 576, 64>}, {pipeline_mode = #tpu.pipeline_mode<synchronous>, transform_indices = @transform_2, window_bounds = array<i64: 1, 64>}, {pipeline_mode = #tpu.pipeline_mode<synchronous>, transform_indices = @transform_3, window_bounds = array<i64: 576, 64>}, {pipeline_mode = #tpu.pipeline_mode<synchronous>, transform_indices = @transform_4, window_bounds = array<i64: 1, 64>}, {transform_indices = @transform_5, window_bounds = array<i64: 2, 8, 8, 64>}, {transform_indices = @transform_6, window_bounds = array<i64: 2, 8, 8, 256>}]} {
    %c0 = arith.constant 0 : index
    %c0_0 = arith.constant 0 : index
    %c0_1 = arith.constant 0 : index
    %c0_2 = arith.constant 0 : index
    %0 = vector.load %arg1[%c0, %c0_0, %c0_1, %c0_2] : memref<2x10x10x64xf32, #tpu.memory_space<vmem>>, vector<2x10x10x64xf32>
    %1 = vector.extract_strided_slice %0 {offsets = [0, 0, 0, 0], sizes = [2, 8, 8, 64], strides = [1, 1, 1, 1]} : vector<2x10x10x64xf32> to vector<2x8x8x64xf32>
    %2 = vector.shape_cast %1 : vector<2x8x8x64xf32> to vector<128x64xf32>
    %c0_3 = arith.constant 0 : index
    %c0_4 = arith.constant 0 : index
    %3 = vector.load %arg9[%c0_3, %c0_4] : memref<128x576xf32, #tpu.memory_space<vmem>>, vector<128x64xf32>
    tpu.vector_store %arg9[%c0_3, %c0_4], %2 {strides = array<i32>} : memref<128x576xf32, #tpu.memory_space<vmem>>, vector<128x64xf32>,
    %4 = vector.extract_strided_slice %0 {offsets = [0, 0, 1, 0], sizes = [2, 8, 8, 64], strides = [1, 1, 1, 1]} : vector<2x10x10x64xf32> to vector<2x8x8x64xf32>
    %5 = vector.shape_cast %4 : vector<2x8x8x64xf32> to vector<128x64xf32>
    %c0_5 = arith.constant 0 : index
    %c64 = arith.constant 64 : index
    %6 = vector.load %arg9[%c0_5, %c64] : memref<128x576xf32, #tpu.memory_space<vmem>>, vector<128x64xf32>
    tpu.vector_store %arg9[%c0_5, %c64], %5 {strides = array<i32>} : memref<128x576xf32, #tpu.memory_space<vmem>>, vector<128x64xf32>,
    %7 = vector.extract_strided_slice %0 {offsets = [0, 0, 2, 0], sizes = [2, 8, 8, 64], strides = [1, 1, 1, 1]} : vector<2x10x10x64xf32> to vector<2x8x8x64xf32>
    %8 = vector.shape_cast %7 : vector<2x8x8x64xf32> to vector<128x64xf32>
    %c0_6 = arith.constant 0 : index
    %c128 = arith.constant 128 : index
    %9 = vector.load %arg9[%c0_6, %c128] : memref<128x576xf32, #tpu.memory_space<vmem>>, vector<128x64xf32>
    tpu.vector_store %arg9[%c0_6, %c128], %8 {strides = array<i32>} : memref<128x576xf32, #tpu.memory_space<vmem>>, vector<128x64xf32>,
    %10 = vector.extract_strided_slice %0 {offsets = [0, 1, 0, 0], sizes = [2, 8, 8, 64], strides = [1, 1, 1, 1]} : vector<2x10x10x64xf32> to vector<2x8x8x64xf32>
    %11 = vector.shape_cast %10 : vector<2x8x8x64xf32> to vector<128x64xf32>
    %c0_7 = arith.constant 0 : index
    %c192 = arith.constant 192 : index
    %12 = vector.load %arg9[%c0_7, %c192] : memref<128x576xf32, #tpu.memory_space<vmem>>, vector<128x64xf32>
    tpu.vector_store %arg9[%c0_7, %c192], %11 {strides = array<i32>} : memref<128x576xf32, #tpu.memory_space<vmem>>, vector<128x64xf32>,
    %13 = vector.extract_strided_slice %0 {offsets = [0, 1, 1, 0], sizes = [2, 8, 8, 64], strides = [1, 1, 1, 1]} : vector<2x10x10x64xf32> to vector<2x8x8x64xf32>
    %14 = vector.shape_cast %13 : vector<2x8x8x64xf32> to vector<128x64xf32>
    %c0_8 = arith.constant 0 : index
    %c256 = arith.constant 256 : index
    %15 = vector.load %arg9[%c0_8, %c256] : memref<128x576xf32, #tpu.memory_space<vmem>>, vector<128x64xf32>
    tpu.vector_store %arg9[%c0_8, %c256], %14 {strides = array<i32>} : memref<128x576xf32, #tpu.memory_space<vmem>>, vector<128x64xf32>,
    %16 = vector.extract_strided_slice %0 {offsets = [0, 1, 2, 0], sizes = [2, 8, 8, 64], strides = [1, 1, 1, 1]} : vector<2x10x10x64xf32> to vector<2x8x8x64xf32>
    %17 = vector.shape_cast %16 : vector<2x8x8x64xf32> to vector<128x64xf32>
    %c0_9 = arith.constant 0 : index
    %c320 = arith.constant 320 : index
    %18 = vector.load %arg9[%c0_9, %c320] : memref<128x576xf32, #tpu.memory_space<vmem>>, vector<128x64xf32>
    tpu.vector_store %arg9[%c0_9, %c320], %17 {strides = array<i32>} : memref<128x576xf32, #tpu.memory_space<vmem>>, vector<128x64xf32>,
    %19 = vector.extract_strided_slice %0 {offsets = [0, 2, 0, 0], sizes = [2, 8, 8, 64], strides = [1, 1, 1, 1]} : vector<2x10x10x64xf32> to vector<2x8x8x64xf32>
    %20 = vector.shape_cast %19 : vector<2x8x8x64xf32> to vector<128x64xf32>
    %c0_10 = arith.constant 0 : index
    %c384 = arith.constant 384 : index
    %21 = vector.load %arg9[%c0_10, %c384] : memref<128x576xf32, #tpu.memory_space<vmem>>, vector<128x64xf32>
    tpu.vector_store %arg9[%c0_10, %c384], %20 {strides = array<i32>} : memref<128x576xf32, #tpu.memory_space<vmem>>, vector<128x64xf32>,
    %22 = vector.extract_strided_slice %0 {offsets = [0, 2, 1, 0], sizes = [2, 8, 8, 64], strides = [1, 1, 1, 1]} : vector<2x10x10x64xf32> to vector<2x8x8x64xf32>
    %23 = vector.shape_cast %22 : vector<2x8x8x64xf32> to vector<128x64xf32>
    %c0_11 = arith.constant 0 : index
    %c448 = arith.constant 448 : index
    %24 = vector.load %arg9[%c0_11, %c448] : memref<128x576xf32, #tpu.memory_space<vmem>>, vector<128x64xf32>
    tpu.vector_store %arg9[%c0_11, %c448], %23 {strides = array<i32>} : memref<128x576xf32, #tpu.memory_space<vmem>>, vector<128x64xf32>,
    %25 = vector.extract_strided_slice %0 {offsets = [0, 2, 2, 0], sizes = [2, 8, 8, 64], strides = [1, 1, 1, 1]} : vector<2x10x10x64xf32> to vector<2x8x8x64xf32>
    %26 = vector.shape_cast %25 : vector<2x8x8x64xf32> to vector<128x64xf32>
    %c0_12 = arith.constant 0 : index
    %c512 = arith.constant 512 : index
    %27 = vector.load %arg9[%c0_12, %c512] : memref<128x576xf32, #tpu.memory_space<vmem>>, vector<128x64xf32>
    tpu.vector_store %arg9[%c0_12, %c512], %26 {strides = array<i32>} : memref<128x576xf32, #tpu.memory_space<vmem>>, vector<128x64xf32>,
    %c0_13 = arith.constant 0 : index
    %c0_14 = arith.constant 0 : index
    %28 = vector.load %arg9[%c0_13, %c0_14] : memref<128x576xf32, #tpu.memory_space<vmem>>, vector<128x576xf32>
    %c0_15 = arith.constant 0 : index
    %c0_16 = arith.constant 0 : index
    %29 = vector.load %arg2[%c0_15, %c0_16] : memref<576x64xf32, #tpu.memory_space<vmem>>, vector<576x64xf32>
    %cst = arith.constant dense<0.000000e+00> : vector<128x64xf32>
    %30 = tpu.matmul %28, %29, %cst {dimension_numbers = #tpu.dot_dimension_numbers<[1], [0], [0], [1], [0, 0, 1, 1], [], []>} : vector<128x576xf32>, vector<576x64xf32>, vector<128x64xf32> -> vector<128x64xf32>
    %c0_17 = arith.constant 0 : index
    %c0_18 = arith.constant 0 : index
    %31 = vector.load %arg3[%c0_17, %c0_18] : memref<1x64xf32, #tpu.memory_space<vmem>>, vector<1x64xf32>
    %32 = vector.broadcast %31 : vector<1x64xf32> to vector<128x64xf32>
    %33 = arith.addf %30, %32 : vector<128x64xf32>
    %cst_19 = arith.constant 0.000000e+00 : f32
    %34 = vector.broadcast %cst_19 : f32 to vector<128x64xf32>
    %35 = arith.maximumf %33, %34 : vector<128x64xf32>
    %cst_20 = arith.constant 0.000000e+00 : f32
    %36 = vector.broadcast %cst_20 : f32 to vector<2x10x10x64xf32>
    %c0_21 = arith.constant 0 : index
    %c0_22 = arith.constant 0 : index
    %c0_23 = arith.constant 0 : index
    %c0_24 = arith.constant 0 : index
    %37 = vector.load %arg8[%c0_21, %c0_22, %c0_23, %c0_24] : memref<2x10x10x64xf32, #tpu.memory_space<vmem>>, vector<2x10x10x64xf32>
    tpu.vector_store %arg8[%c0_21, %c0_22, %c0_23, %c0_24], %36 {strides = array<i32>} : memref<2x10x10x64xf32, #tpu.memory_space<vmem>>, vector<2x10x10x64xf32>,
    %38 = vector.shape_cast %35 : vector<128x64xf32> to vector<2x8x8x64xf32>
    %c0_25 = arith.constant 0 : index
    %c1 = arith.constant 1 : index
    %c1_26 = arith.constant 1 : index
    %c0_27 = arith.constant 0 : index
    %39 = vector.load %arg8[%c0_25, %c1, %c1_26, %c0_27] : memref<2x10x10x64xf32, #tpu.memory_space<vmem>>, vector<2x8x8x64xf32>
    tpu.vector_store %arg8[%c0_25, %c1, %c1_26, %c0_27], %38 {strides = array<i32>} : memref<2x10x10x64xf32, #tpu.memory_space<vmem>>, vector<2x8x8x64xf32>,
    %c0_28 = arith.constant 0 : index
    %c0_29 = arith.constant 0 : index
    %c0_30 = arith.constant 0 : index
    %c0_31 = arith.constant 0 : index
    %40 = vector.load %arg8[%c0_28, %c0_29, %c0_30, %c0_31] : memref<2x10x10x64xf32, #tpu.memory_space<vmem>>, vector<2x10x10x64xf32>
    %41 = vector.extract_strided_slice %40 {offsets = [0, 0, 0, 0], sizes = [2, 8, 8, 64], strides = [1, 1, 1, 1]} : vector<2x10x10x64xf32> to vector<2x8x8x64xf32>
    %42 = vector.shape_cast %41 : vector<2x8x8x64xf32> to vector<128x64xf32>
    %c0_32 = arith.constant 0 : index
    %c0_33 = arith.constant 0 : index
    %43 = vector.load %arg10[%c0_32, %c0_33] : memref<128x576xf32, #tpu.memory_space<vmem>>, vector<128x64xf32>
    tpu.vector_store %arg10[%c0_32, %c0_33], %42 {strides = array<i32>} : memref<128x576xf32, #tpu.memory_space<vmem>>, vector<128x64xf32>,
    %44 = vector.extract_strided_slice %40 {offsets = [0, 0, 1, 0], sizes = [2, 8, 8, 64], strides = [1, 1, 1, 1]} : vector<2x10x10x64xf32> to vector<2x8x8x64xf32>
    %45 = vector.shape_cast %44 : vector<2x8x8x64xf32> to vector<128x64xf32>
    %c0_34 = arith.constant 0 : index
    %c64_35 = arith.constant 64 : index
    %46 = vector.load %arg10[%c0_34, %c64_35] : memref<128x576xf32, #tpu.memory_space<vmem>>, vector<128x64xf32>
    tpu.vector_store %arg10[%c0_34, %c64_35], %45 {strides = array<i32>} : memref<128x576xf32, #tpu.memory_space<vmem>>, vector<128x64xf32>,
    %47 = vector.extract_strided_slice %40 {offsets = [0, 0, 2, 0], sizes = [2, 8, 8, 64], strides = [1, 1, 1, 1]} : vector<2x10x10x64xf32> to vector<2x8x8x64xf32>
    %48 = vector.shape_cast %47 : vector<2x8x8x64xf32> to vector<128x64xf32>
    %c0_36 = arith.constant 0 : index
    %c128_37 = arith.constant 128 : index
    %49 = vector.load %arg10[%c0_36, %c128_37] : memref<128x576xf32, #tpu.memory_space<vmem>>, vector<128x64xf32>
    tpu.vector_store %arg10[%c0_36, %c128_37], %48 {strides = array<i32>} : memref<128x576xf32, #tpu.memory_space<vmem>>, vector<128x64xf32>,
    %50 = vector.extract_strided_slice %40 {offsets = [0, 1, 0, 0], sizes = [2, 8, 8, 64], strides = [1, 1, 1, 1]} : vector<2x10x10x64xf32> to vector<2x8x8x64xf32>
    %51 = vector.shape_cast %50 : vector<2x8x8x64xf32> to vector<128x64xf32>
    %c0_38 = arith.constant 0 : index
    %c192_39 = arith.constant 192 : index
    %52 = vector.load %arg10[%c0_38, %c192_39] : memref<128x576xf32, #tpu.memory_space<vmem>>, vector<128x64xf32>
    tpu.vector_store %arg10[%c0_38, %c192_39], %51 {strides = array<i32>} : memref<128x576xf32, #tpu.memory_space<vmem>>, vector<128x64xf32>,
    %53 = vector.extract_strided_slice %40 {offsets = [0, 1, 1, 0], sizes = [2, 8, 8, 64], strides = [1, 1, 1, 1]} : vector<2x10x10x64xf32> to vector<2x8x8x64xf32>
    %54 = vector.shape_cast %53 : vector<2x8x8x64xf32> to vector<128x64xf32>
    %c0_40 = arith.constant 0 : index
    %c256_41 = arith.constant 256 : index
    %55 = vector.load %arg10[%c0_40, %c256_41] : memref<128x576xf32, #tpu.memory_space<vmem>>, vector<128x64xf32>
    tpu.vector_store %arg10[%c0_40, %c256_41], %54 {strides = array<i32>} : memref<128x576xf32, #tpu.memory_space<vmem>>, vector<128x64xf32>,
    %56 = vector.extract_strided_slice %40 {offsets = [0, 1, 2, 0], sizes = [2, 8, 8, 64], strides = [1, 1, 1, 1]} : vector<2x10x10x64xf32> to vector<2x8x8x64xf32>
    %57 = vector.shape_cast %56 : vector<2x8x8x64xf32> to vector<128x64xf32>
    %c0_42 = arith.constant 0 : index
    %c320_43 = arith.constant 320 : index
    %58 = vector.load %arg10[%c0_42, %c320_43] : memref<128x576xf32, #tpu.memory_space<vmem>>, vector<128x64xf32>
    tpu.vector_store %arg10[%c0_42, %c320_43], %57 {strides = array<i32>} : memref<128x576xf32, #tpu.memory_space<vmem>>, vector<128x64xf32>,
    %59 = vector.extract_strided_slice %40 {offsets = [0, 2, 0, 0], sizes = [2, 8, 8, 64], strides = [1, 1, 1, 1]} : vector<2x10x10x64xf32> to vector<2x8x8x64xf32>
    %60 = vector.shape_cast %59 : vector<2x8x8x64xf32> to vector<128x64xf32>
    %c0_44 = arith.constant 0 : index
    %c384_45 = arith.constant 384 : index
    %61 = vector.load %arg10[%c0_44, %c384_45] : memref<128x576xf32, #tpu.memory_space<vmem>>, vector<128x64xf32>
    tpu.vector_store %arg10[%c0_44, %c384_45], %60 {strides = array<i32>} : memref<128x576xf32, #tpu.memory_space<vmem>>, vector<128x64xf32>,
    %62 = vector.extract_strided_slice %40 {offsets = [0, 2, 1, 0], sizes = [2, 8, 8, 64], strides = [1, 1, 1, 1]} : vector<2x10x10x64xf32> to vector<2x8x8x64xf32>
    %63 = vector.shape_cast %62 : vector<2x8x8x64xf32> to vector<128x64xf32>
    %c0_46 = arith.constant 0 : index
    %c448_47 = arith.constant 448 : index
    %64 = vector.load %arg10[%c0_46, %c448_47] : memref<128x576xf32, #tpu.memory_space<vmem>>, vector<128x64xf32>
    tpu.vector_store %arg10[%c0_46, %c448_47], %63 {strides = array<i32>} : memref<128x576xf32, #tpu.memory_space<vmem>>, vector<128x64xf32>,
    %65 = vector.extract_strided_slice %40 {offsets = [0, 2, 2, 0], sizes = [2, 8, 8, 64], strides = [1, 1, 1, 1]} : vector<2x10x10x64xf32> to vector<2x8x8x64xf32>
    %66 = vector.shape_cast %65 : vector<2x8x8x64xf32> to vector<128x64xf32>
    %c0_48 = arith.constant 0 : index
    %c512_49 = arith.constant 512 : index
    %67 = vector.load %arg10[%c0_48, %c512_49] : memref<128x576xf32, #tpu.memory_space<vmem>>, vector<128x64xf32>
    tpu.vector_store %arg10[%c0_48, %c512_49], %66 {strides = array<i32>} : memref<128x576xf32, #tpu.memory_space<vmem>>, vector<128x64xf32>,
    %c0_50 = arith.constant 0 : index
    %c0_51 = arith.constant 0 : index
    %68 = vector.load %arg10[%c0_50, %c0_51] : memref<128x576xf32, #tpu.memory_space<vmem>>, vector<128x576xf32>
    %c0_52 = arith.constant 0 : index
    %c0_53 = arith.constant 0 : index
    %69 = vector.load %arg4[%c0_52, %c0_53] : memref<576x64xf32, #tpu.memory_space<vmem>>, vector<576x64xf32>
    %cst_54 = arith.constant dense<0.000000e+00> : vector<128x64xf32>
    %70 = tpu.matmul %68, %69, %cst_54 {dimension_numbers = #tpu.dot_dimension_numbers<[1], [0], [0], [1], [0, 0, 1, 1], [], []>} : vector<128x576xf32>, vector<576x64xf32>, vector<128x64xf32> -> vector<128x64xf32>
    %c0_55 = arith.constant 0 : index
    %c0_56 = arith.constant 0 : index
    %71 = vector.load %arg5[%c0_55, %c0_56] : memref<1x64xf32, #tpu.memory_space<vmem>>, vector<1x64xf32>
    %72 = vector.broadcast %71 : vector<1x64xf32> to vector<128x64xf32>
    %73 = arith.addf %70, %72 : vector<128x64xf32>
    %cst_57 = arith.constant 0.000000e+00 : f32
    %74 = vector.broadcast %cst_57 : f32 to vector<128x64xf32>
    %75 = arith.maximumf %73, %74 : vector<128x64xf32>
    %76 = vector.shape_cast %75 : vector<128x64xf32> to vector<2x8x8x64xf32>
    %c0_58 = arith.constant 0 : index
    %c0_59 = arith.constant 0 : index
    %c0_60 = arith.constant 0 : index
    %c0_61 = arith.constant 0 : index
    %77 = vector.load %arg6[%c0_58, %c0_59, %c0_60, %c0_61] : memref<2x8x8x64xi32, #tpu.memory_space<vmem>>, vector<2x8x8x64xi32>
    %78 = tpu.iota {dimensions = array<i32: 1>} : vector<2x8x8x64xi32>
    %79 = tpu.iota {dimensions = array<i32: 2>} : vector<2x8x8x64xi32>
    %c2_i32 = arith.constant 2 : i32
    %80 = vector.broadcast %c2_i32 : i32 to vector<2x8x8x64xi32>
    %81 = arith.muli %80, %78 : vector<2x8x8x64xi32>
    %c16_i32 = arith.constant 16 : i32
    %82 = vector.broadcast %c16_i32 : i32 to vector<2x8x8x64xi32>
    %83 = arith.muli %81, %82 : vector<2x8x8x64xi32>
    %c2_i32_62 = arith.constant 2 : i32
    %84 = vector.broadcast %c2_i32_62 : i32 to vector<2x8x8x64xi32>
    %85 = arith.muli %84, %79 : vector<2x8x8x64xi32>
    %86 = arith.addi %83, %85 : vector<2x8x8x64xi32>
    %cst_63 = arith.constant 0.000000e+00 : f32
    %87 = vector.broadcast %cst_63 : f32 to vector<2x8x8x64xf32>
    %88 = arith.cmpi eq, %77, %86 : vector<2x8x8x64xi32>
    %89 = arith.select %88, %76, %87 : vector<2x8x8x64xi1>, vector<2x8x8x64xf32>
    %c0_64 = arith.constant 0 : index
    %c0_65 = arith.constant 0 : index
    %c0_66 = arith.constant 0 : index
    %c0_67 = arith.constant 0 : index
    %90 = vector.load %arg7[%c0_64, %c0_65, %c0_66, %c0_67] : memref<2x8x8x256xf32, #tpu.memory_space<vmem>>, vector<2x8x8x64xf32>
    tpu.vector_store %arg7[%c0_64, %c0_65, %c0_66, %c0_67], %89 {strides = array<i32>} : memref<2x8x8x256xf32, #tpu.memory_space<vmem>>, vector<2x8x8x64xf32>,
    %c1_i32 = arith.constant 1 : i32
    %91 = vector.broadcast %c1_i32 : i32 to vector<2x8x8x64xi32>
    %92 = arith.addi %86, %91 : vector<2x8x8x64xi32>
    %93 = arith.cmpi eq, %77, %92 : vector<2x8x8x64xi32>
    %94 = arith.select %93, %76, %87 : vector<2x8x8x64xi1>, vector<2x8x8x64xf32>
    %c0_68 = arith.constant 0 : index
    %c0_69 = arith.constant 0 : index
    %c0_70 = arith.constant 0 : index
    %c64_71 = arith.constant 64 : index
    %95 = vector.load %arg7[%c0_68, %c0_69, %c0_70, %c64_71] : memref<2x8x8x256xf32, #tpu.memory_space<vmem>>, vector<2x8x8x64xf32>
    tpu.vector_store %arg7[%c0_68, %c0_69, %c0_70, %c64_71], %94 {strides = array<i32>} : memref<2x8x8x256xf32, #tpu.memory_space<vmem>>, vector<2x8x8x64xf32>,
    %c16_i32_72 = arith.constant 16 : i32
    %96 = vector.broadcast %c16_i32_72 : i32 to vector<2x8x8x64xi32>
    %97 = arith.addi %86, %96 : vector<2x8x8x64xi32>
    %98 = arith.cmpi eq, %77, %97 : vector<2x8x8x64xi32>
    %99 = arith.select %98, %76, %87 : vector<2x8x8x64xi1>, vector<2x8x8x64xf32>
    %c0_73 = arith.constant 0 : index
    %c0_74 = arith.constant 0 : index
    %c0_75 = arith.constant 0 : index
    %c128_76 = arith.constant 128 : index
    %100 = vector.load %arg7[%c0_73, %c0_74, %c0_75, %c128_76] : memref<2x8x8x256xf32, #tpu.memory_space<vmem>>, vector<2x8x8x64xf32>
    tpu.vector_store %arg7[%c0_73, %c0_74, %c0_75, %c128_76], %99 {strides = array<i32>} : memref<2x8x8x256xf32, #tpu.memory_space<vmem>>, vector<2x8x8x64xf32>,
    %c16_i32_77 = arith.constant 16 : i32
    %101 = vector.broadcast %c16_i32_77 : i32 to vector<2x8x8x64xi32>
    %102 = arith.addi %86, %101 : vector<2x8x8x64xi32>
    %c1_i32_78 = arith.constant 1 : i32
    %103 = vector.broadcast %c1_i32_78 : i32 to vector<2x8x8x64xi32>
    %104 = arith.addi %102, %103 : vector<2x8x8x64xi32>
    %105 = arith.cmpi eq, %77, %104 : vector<2x8x8x64xi32>
    %106 = arith.select %105, %76, %87 : vector<2x8x8x64xi1>, vector<2x8x8x64xf32>
    %c0_79 = arith.constant 0 : index
    %c0_80 = arith.constant 0 : index
    %c0_81 = arith.constant 0 : index
    %c192_82 = arith.constant 192 : index
    %107 = vector.load %arg7[%c0_79, %c0_80, %c0_81, %c192_82] : memref<2x8x8x256xf32, #tpu.memory_space<vmem>>, vector<2x8x8x64xf32>
    tpu.vector_store %arg7[%c0_79, %c0_80, %c0_81, %c192_82], %106 {strides = array<i32>} : memref<2x8x8x256xf32, #tpu.memory_space<vmem>>, vector<2x8x8x64xf32>,
    return
  }
  func.func @transform_0(%arg0: i32) -> (i32, i32, i32, i32) {
    %c0_i32 = arith.constant 0 : i32
    %c0_i32_0 = arith.constant 0 : i32
    %c0_i32_1 = arith.constant 0 : i32
    %c0_i32_2 = arith.constant 0 : i32
    return %arg0, %c0_i32, %c0_i32_0, %c0_i32_1 : i32, i32, i32, i32
  }
  func.func @transform_1(%arg0: i32) -> (i32, i32) {
    %c0_i32 = arith.constant 0 : i32
    %c0_i32_0 = arith.constant 0 : i32
    %c0_i32_1 = arith.constant 0 : i32
    return %c0_i32, %c0_i32_0 : i32, i32
  }
  func.func @transform_2(%arg0: i32) -> (i32, i32) {
    %c0_i32 = arith.constant 0 : i32
    %c0_i32_0 = arith.constant 0 : i32
    %c0_i32_1 = arith.constant 0 : i32
    return %c0_i32, %c0_i32_0 : i32, i32
  }
  func.func @transform_3(%arg0: i32) -> (i32, i32) {
    %c0_i32 = arith.constant 0 : i32
    %c0_i32_0 = arith.constant 0 : i32
    %c0_i32_1 = arith.constant 0 : i32
    return %c0_i32, %c0_i32_0 : i32, i32
  }
  func.func @transform_4(%arg0: i32) -> (i32, i32) {
    %c0_i32 = arith.constant 0 : i32
    %c0_i32_0 = arith.constant 0 : i32
    %c0_i32_1 = arith.constant 0 : i32
    return %c0_i32, %c0_i32_0 : i32, i32
  }
  func.func @transform_5(%arg0: i32) -> (i32, i32, i32, i32) {
    %c0_i32 = arith.constant 0 : i32
    %c0_i32_0 = arith.constant 0 : i32
    %c0_i32_1 = arith.constant 0 : i32
    %c0_i32_2 = arith.constant 0 : i32
    return %arg0, %c0_i32, %c0_i32_0, %c0_i32_1 : i32, i32, i32, i32
  }
  func.func @transform_6(%arg0: i32) -> (i32, i32, i32, i32) {
    %c0_i32 = arith.constant 0 : i32
    %c0_i32_0 = arith.constant 0 : i32
    %c0_i32_1 = arith.constant 0 : i32
    %c0_i32_2 = arith.constant 0 : i32
    return %arg0, %c0_i32, %c0_i32_0, %c0_i32_1 : i32, i32, i32, i32
  }
}

</mosaic_0001>

<llo_original>
// kernel: tpu_custom_call.1
$region0: #{tpu_custom_call.1}
  #allocation0 [shape = 'u32[]', space=smem, size = 0x4, offset = 0x4, fixed_abs, tag = 'smem constant byte address 0x4 - core index']
  #allocation1 [shape = 'u32[144,128]{1,0:T(1,128)}', space=vmem, size = 0x12000, scoped, tag = 'internal scratch']
  #allocation2 [shape = 'f32[2,10,10,64]{3,2,1,0:T(8,128)}', space=vmem, size = 0x28000, scoped, tag = 'scratch operand']
  #allocation3 [shape = 'f32[128,576]{1,0:T(8,128)}', space=vmem, size = 0x50000, scoped, tag = 'scratch operand']
  #allocation4 [shape = 'f32[128,576]{1,0:T(8,128)}', space=vmem, size = 0x50000, scoped, tag = 'scratch operand']
  %s0 = inlined_call_operand.vmem [shape: f32[2,10,10,64], index: 0, kind: input, shape index: {}]
  %s1 = inlined_call_operand.vmem [shape: f32[576,64], index: 1, kind: input, shape index: {}]
  %s2 = inlined_call_operand.vmem [shape: f32[1,64], index: 2, kind: input, shape index: {}]
  %s3 = inlined_call_operand.vmem [shape: f32[576,64], index: 3, kind: input, shape index: {}]
  %s4 = inlined_call_operand.vmem [shape: f32[1,64], index: 4, kind: input, shape index: {}]
  %s5 = inlined_call_operand.vmem [shape: s32[2,8,8,64], index: 5, kind: input, shape index: {}]
  %s6 = inlined_call_operand.hbm [shape: f32[2,8,8,256], index: 6, kind: output, shape index: {}]
  %s7 = sld [smem:[#allocation0]]
  $region34: #{tpu_custom_call.1} parent=0
    _
  %s9 = ssub.s32 1, %s7
  %s10 = scalar_select 0, %s9, %s7
  $region1: #{tpu_custom_call.1} parent=0
    #allocation5 [shape = 'u8[131072]{0}', space=vmem, size = 0x20000, scoped, tag = 'output window, operand 0, single buffered']
    #allocation6 [shape = 's32[1]{0}', space=sflag, size = 0x4, scoped, tag = 'scoped memory for tpu_custom_call.1']
    %11 = vsyncpa [#allocation6], 0
    // Predicated region
    $region2: #{tpu_custom_call.1} parent=1 // pred_check
      _
    $region3: #{tpu_custom_call.1} parent=1 // pred_check_branch
      %13 = sbr.rel (0) target = $region5
    $region4: #{tpu_custom_call.1} parent=1 // pred_region
      _
    $region5: #{tpu_custom_call.1} parent=1 // pred_fallthru
      _
    // Predicated region
    $region6: #{tpu_custom_call.1} parent=1 // pred_check
      _
    $region7: #{tpu_custom_call.1} parent=1 // pred_check_branch
      %15 = sbr.rel (0) target = $region9
    $region8: #{tpu_custom_call.1} parent=1 // pred_region
      _
    $region9: #{tpu_custom_call.1} parent=1 // pred_fallthru
      _
    // Predicated region
    $region10: #{tpu_custom_call.1} parent=1 // pred_check
      _
    $region11: #{tpu_custom_call.1} parent=1 // pred_check_branch
      %17 = sbr.rel (0) target = $region13
    $region12: #{tpu_custom_call.1} parent=1 // pred_region
      _
    $region13: #{tpu_custom_call.1} parent=1 // pred_fallthru
      _
    // Predicated region
    $region14: #{tpu_custom_call.1} parent=1 // pred_check
      _
    $region15: #{tpu_custom_call.1} parent=1 // pred_check_branch
      %19 = sbr.rel (0) target = $region17
    $region16: #{tpu_custom_call.1} parent=1 // pred_region
      _
    $region17: #{tpu_custom_call.1} parent=1 // pred_fallthru
      _
    // Predicated region
    $region18: #{tpu_custom_call.1} parent=1 // pred_check
      _
    $region19: #{tpu_custom_call.1} parent=1 // pred_check_branch
      %21 = sbr.rel (0) target = $region21
    $region20: #{tpu_custom_call.1} parent=1 // pred_region
      _
    $region21: #{tpu_custom_call.1} parent=1 // pred_fallthru
      _
    // Predicated region
    $region22: #{tpu_custom_call.1} parent=1 // pred_check
      _
    $region23: #{tpu_custom_call.1} parent=1 // pred_check_branch
      %23 = sbr.rel (0) target = $region25
    $region24: #{tpu_custom_call.1} parent=1 // pred_region
      _
    $region25: #{tpu_custom_call.1} parent=1 // pred_fallthru
      _
    %v24 = vld [vmem:[%s0] sm:$0xff]
    %v25 = vld [vmem:[%s0 + $0x8] sm:$0x3]
    %v26 = vld [vmem:[%s0 + $0x10] sm:$0xff]
    %v27 = vld [vmem:[%s0 + $0x18] sm:$0x3]
    %v28 = vld [vmem:[%s0 + $0x20] sm:$0xff]
    %v29 = vld [vmem:[%s0 + $0x28] sm:$0x3]
    %v30 = vld [vmem:[%s0 + $0x30] sm:$0xff]
    %v31 = vld [vmem:[%s0 + $0x38] sm:$0x3]
    %v32 = vld [vmem:[%s0 + $0x40] sm:$0xff]
    %v33 = vld [vmem:[%s0 + $0x48] sm:$0x3]
    %v34 = vld [vmem:[%s0 + $0x50] sm:$0xff]
    %v35 = vld [vmem:[%s0 + $0x58] sm:$0x3]
    %v36 = vld [vmem:[%s0 + $0x60] sm:$0xff]
    %v37 = vld [vmem:[%s0 + $0x68] sm:$0x3]
    %v38 = vld [vmem:[%s0 + $0x70] sm:$0xff]
    %v39 = vld [vmem:[%s0 + $0x78] sm:$0x3]
    %v40 = vld [vmem:[%s0 + $0x80] sm:$0xff]
    %v41 = vld [vmem:[%s0 + $0x88] sm:$0x3]
    %v42 = vld [vmem:[%s0 + $0x90] sm:$0xff]
    %v43 = vld [vmem:[%s0 + $0x98] sm:$0x3]
    %v44 = vld [vmem:[%s0 + $0xa0] sm:$0xff]
    %v45 = vld [vmem:[%s0 + $0xa8] sm:$0x3]
    %v46 = vld [vmem:[%s0 + $0xb0] sm:$0xff]
    %v47 = vld [vmem:[%s0 + $0xb8] sm:$0x3]
    %v48 = vld [vmem:[%s0 + $0xc0] sm:$0xff]
    %v49 = vld [vmem:[%s0 + $0xc8] sm:$0x3]
    %v50 = vld [vmem:[%s0 + $0xd0] sm:$0xff]
    %v51 = vld [vmem:[%s0 + $0xd8] sm:$0x3]
    %v52 = vld [vmem:[%s0 + $0xe0] sm:$0xff]
    %v53 = vld [vmem:[%s0 + $0xe8] sm:$0x3]
    %v54 = vld [vmem:[%s0 + $0xf0] sm:$0xff]
    %v55 = vld [vmem:[%s0 + $0xf8] sm:$0x3]
    %v56 = vld [vmem:[%s0 + $0x100] sm:$0xff]
    %v57 = vld [vmem:[%s0 + $0x108] sm:$0x3]
    %v58 = vld [vmem:[%s0 + $0x110] sm:$0xff]
    %v59 = vld [vmem:[%s0 + $0x118] sm:$0x3]
    %v60 = vld [vmem:[%s0 + $0x120] sm:$0xff]
    %v61 = vld [vmem:[%s0 + $0x128] sm:$0x3]
    %v62 = vld [vmem:[%s0 + $0x130] sm:$0xff]
    %v63 = vld [vmem:[%s0 + $0x138] sm:$0x3]
    %vm64 = vcmask 523264
    %65 = vst.msk [vmem:[#allocation3] sm:$0xff] %vm64, %v24
    %66 = vst.msk [vmem:[#allocation3 + $0x28] sm:$0xff] %vm64, %v26
    %67 = vst.msk [vmem:[#allocation3 + $0x50] sm:$0xff] %vm64, %v28
    %68 = vst.msk [vmem:[#allocation3 + $0x78] sm:$0xff] %vm64, %v30
    %69 = vst.msk [vmem:[#allocation3 + $0xa0] sm:$0xff] %vm64, %v32
    %70 = vst.msk [vmem:[#allocation3 + $0xc8] sm:$0xff] %vm64, %v34
    %71 = vst.msk [vmem:[#allocation3 + $0xf0] sm:$0xff] %vm64, %v36
    %72 = vst.msk [vmem:[#allocation3 + $0x118] sm:$0xff] %vm64, %v38
    %73 = vst.msk [vmem:[#allocation3 + $0x140] sm:$0xff] %vm64, %v44
    %74 = vst.msk [vmem:[#allocation3 + $0x168] sm:$0xff] %vm64, %v46
    %75 = vst.msk [vmem:[#allocation3 + $0x190] sm:$0xff] %vm64, %v48
    %76 = vst.msk [vmem:[#allocation3 + $0x1b8] sm:$0xff] %vm64, %v50
    %77 = vst.msk [vmem:[#allocation3 + $0x1e0] sm:$0xff] %vm64, %v52
    %78 = vst.msk [vmem:[#allocation3 + $0x208] sm:$0xff] %vm64, %v54
    %79 = vst.msk [vmem:[#allocation3 + $0x230] sm:$0xff] %vm64, %v56
    %80 = vst.msk [vmem:[#allocation3 + $0x258] sm:$0xff] %vm64, %v58
    %vm113 = vcmask 1046528
    %v114 = vrot.slane %v24, 1
    %v115 = vrot.slane %v25, 1
    %v116 = vsel %vm113, %v114, %v115
    %v117 = vrot.slane %v26, 1
    %v118 = vrot.slane %v27, 1
    %v119 = vsel %vm113, %v117, %v118
    %v120 = vrot.slane %v28, 1
    %v121 = vrot.slane %v29, 1
    %v122 = vsel %vm113, %v120, %v121
    %v123 = vrot.slane %v30, 1
    %v124 = vrot.slane %v31, 1
    %v125 = vsel %vm113, %v123, %v124
    %v126 = vrot.slane %v32, 1
    %v127 = vrot.slane %v33, 1
    %v128 = vsel %vm113, %v126, %v127
    %v129 = vrot.slane %v34, 1
    %v130 = vrot.slane %v35, 1
    %v131 = vsel %vm113, %v129, %v130
    %v132 = vrot.slane %v36, 1
    %v133 = vrot.slane %v37, 1
    %v134 = vsel %vm113, %v132, %v133
    %v135 = vrot.slane %v38, 1
    %v136 = vrot.slane %v39, 1
    %v137 = vsel %vm113, %v135, %v136
    %v138 = vrot.slane %v44, 1
    %v139 = vrot.slane %v45, 1
    %v140 = vsel %vm113, %v138, %v139
    %v141 = vrot.slane %v46, 1
    %v142 = vrot.slane %v47, 1
    %v143 = vsel %vm113, %v141, %v142
    %v144 = vrot.slane %v48, 1
    %v145 = vrot.slane %v49, 1
    %v146 = vsel %vm113, %v144, %v145
    %v147 = vrot.slane %v50, 1
    %v148 = vrot.slane %v51, 1
    %v149 = vsel %vm113, %v147, %v148
    %v150 = vrot.slane %v52, 1
    %v151 = vrot.slane %v53, 1
    %v152 = vsel %vm113, %v150, %v151
    %v153 = vrot.slane %v54, 1
    %v154 = vrot.slane %v55, 1
    %v155 = vsel %vm113, %v153, %v154
    %v156 = vrot.slane %v56, 1
    %v157 = vrot.slane %v57, 1
    %v158 = vsel %vm113, %v156, %v157
    %v159 = vrot.slane %v58, 1
    %v160 = vrot.slane %v59, 1
    %v161 = vsel %vm113, %v159, %v160
    %162 = vrot.lane.b32.xlu0 %v116, 64
    %v163 = vpop.permute.xlu0 %162
    %164 = vrot.lane.b32.xlu0 %v119, 64
    %v165 = vpop.permute.xlu0 %164
    %166 = vrot.lane.b32.xlu0 %v122, 64
    %v167 = vpop.permute.xlu0 %166
    %168 = vrot.lane.b32.xlu0 %v125, 64
    %v169 = vpop.permute.xlu0 %168
    %170 = vrot.lane.b32.xlu0 %v128, 64
    %v171 = vpop.permute.xlu0 %170
    %172 = vrot.lane.b32.xlu0 %v131, 64
    %v173 = vpop.permute.xlu0 %172
    %174 = vrot.lane.b32.xlu0 %v134, 64
    %v175 = vpop.permute.xlu0 %174
    %176 = vrot.lane.b32.xlu0 %v137, 64
    %v177 = vpop.permute.xlu0 %176
    %178 = vrot.lane.b32.xlu0 %v140, 64
    %v179 = vpop.permute.xlu0 %178
    %180 = vrot.lane.b32.xlu0 %v143, 64
    %v181 = vpop.permute.xlu0 %180
    %182 = vrot.lane.b32.xlu0 %v146, 64
    %v183 = vpop.permute.xlu0 %182
    %184 = vrot.lane.b32.xlu0 %v149, 64
    %v185 = vpop.permute.xlu0 %184
    %186 = vrot.lane.b32.xlu0 %v152, 64
    %v187 = vpop.permute.xlu0 %186
    %188 = vrot.lane.b32.xlu0 %v155, 64
    %v189 = vpop.permute.xlu0 %188
    %190 = vrot.lane.b32.xlu0 %v158, 64
    %v191 = vpop.permute.xlu0 %190
    %192 = vrot.lane.b32.xlu0 %v161, 64
    %v193 = vpop.permute.xlu0 %192
    %vm210 = vcmask 1048064
    %211 = vst.msk [vmem:[#allocation3] sm:$0xff] %vm210, %v163
    %212 = vst.msk [vmem:[#allocation3 + $0x28] sm:$0xff] %vm210, %v165
    %213 = vst.msk [vmem:[#allocation3 + $0x50] sm:$0xff] %vm210, %v167
    %214 = vst.msk [vmem:[#allocation3 + $0x78] sm:$0xff] %vm210, %v169
    %215 = vst.msk [vmem:[#allocation3 + $0xa0] sm:$0xff] %vm210, %v171
    %216 = vst.msk [vmem:[#allocation3 + $0xc8] sm:$0xff] %vm210, %v173
    %217 = vst.msk [vmem:[#allocation3 + $0xf0] sm:$0xff] %vm210, %v175
    %218 = vst.msk [vmem:[#allocation3 + $0x118] sm:$0xff] %vm210, %v177
    %219 = vst.msk [vmem:[#allocation3 + $0x140] sm:$0xff] %vm210, %v179
    %220 = vst.msk [vmem:[#allocation3 + $0x168] sm:$0xff] %vm210, %v181
    %221 = vst.msk [vmem:[#allocation3 + $0x190] sm:$0xff] %vm210, %v183
    %222 = vst.msk [vmem:[#allocation3 + $0x1b8] sm:$0xff] %vm210, %v185
    %223 = vst.msk [vmem:[#allocation3 + $0x1e0] sm:$0xff] %vm210, %v187
    %224 = vst.msk [vmem:[#allocation3 + $0x208] sm:$0xff] %vm210, %v189
    %225 = vst.msk [vmem:[#allocation3 + $0x230] sm:$0xff] %vm210, %v191
    %226 = vst.msk [vmem:[#allocation3 + $0x258] sm:$0xff] %vm210, %v193
    %vm227 = vcmask 1045504
    %v228 = vrot.slane %v24, 2
    %v229 = vrot.slane %v25, 2
    %v230 = vsel %vm227, %v228, %v229
    %v231 = vrot.slane %v26, 2
    %v232 = vrot.slane %v27, 2
    %v233 = vsel %vm227, %v231, %v232
    %v234 = vrot.slane %v28, 2
    %v235 = vrot.slane %v29, 2
    %v236 = vsel %vm227, %v234, %v235
    %v237 = vrot.slane %v30, 2
    %v238 = vrot.slane %v31, 2
    %v239 = vsel %vm227, %v237, %v238
    %v240 = vrot.slane %v32, 2
    %v241 = vrot.slane %v33, 2
    %v242 = vsel %vm227, %v240, %v241
    %v243 = vrot.slane %v34, 2
    %v244 = vrot.slane %v35, 2
    %v245 = vsel %vm227, %v243, %v244
    %v246 = vrot.slane %v36, 2
    %v247 = vrot.slane %v37, 2
    %v248 = vsel %vm227, %v246, %v247
    %v249 = vrot.slane %v38, 2
    %v250 = vrot.slane %v39, 2
    %v251 = vsel %vm227, %v249, %v250
    %v252 = vrot.slane %v44, 2
    %v253 = vrot.slane %v45, 2
    %v254 = vsel %vm227, %v252, %v253
    %v255 = vrot.slane %v46, 2
    %v256 = vrot.slane %v47, 2
    %v257 = vsel %vm227, %v255, %v256
    %v258 = vrot.slane %v48, 2
    %v259 = vrot.slane %v49, 2
    %v260 = vsel %vm227, %v258, %v259
    %v261 = vrot.slane %v50, 2
    %v262 = vrot.slane %v51, 2
    %v263 = vsel %vm227, %v261, %v262
    %v264 = vrot.slane %v52, 2
    %v265 = vrot.slane %v53, 2
    %v266 = vsel %vm227, %v264, %v265
    %v267 = vrot.slane %v54, 2
    %v268 = vrot.slane %v55, 2
    %v269 = vsel %vm227, %v267, %v268
    %v270 = vrot.slane %v56, 2
    %v271 = vrot.slane %v57, 2
    %v272 = vsel %vm227, %v270, %v271
    %v273 = vrot.slane %v58, 2
    %v274 = vrot.slane %v59, 2
    %v275 = vsel %vm227, %v273, %v274
    %292 = vst.msk [vmem:[#allocation3 + $0x8] sm:$0xff] %vm64, %v230
    %293 = vst.msk [vmem:[#allocation3 + $0x30] sm:$0xff] %vm64, %v233
    %294 = vst.msk [vmem:[#allocation3 + $0x58] sm:$0xff] %vm64, %v236
    %295 = vst.msk [vmem:[#allocation3 + $0x80] sm:$0xff] %vm64, %v239
    %296 = vst.msk [vmem:[#allocation3 + $0xa8] sm:$0xff] %vm64, %v242
    %297 = vst.msk [vmem:[#allocation3 + $0xd0] sm:$0xff] %vm64, %v245
    %298 = vst.msk [vmem:[#allocation3 + $0xf8] sm:$0xff] %vm64, %v248
    %299 = vst.msk [vmem:[#allocation3 + $0x120] sm:$0xff] %vm64, %v251
    %300 = vst.msk [vmem:[#allocation3 + $0x148] sm:$0xff] %vm64, %v254
    %301 = vst.msk [vmem:[#allocation3 + $0x170] sm:$0xff] %vm64, %v257
    %302 = vst.msk [vmem:[#allocation3 + $0x198] sm:$0xff] %vm64, %v260
    %303 = vst.msk [vmem:[#allocation3 + $0x1c0] sm:$0xff] %vm64, %v263
    %304 = vst.msk [vmem:[#allocation3 + $0x1e8] sm:$0xff] %vm64, %v266
    %305 = vst.msk [vmem:[#allocation3 + $0x210] sm:$0xff] %vm64, %v269
    %306 = vst.msk [vmem:[#allocation3 + $0x238] sm:$0xff] %vm64, %v272
    %307 = vst.msk [vmem:[#allocation3 + $0x260] sm:$0xff] %vm64, %v275
    %310 = vrot.lane.b32.xlu0 %v26, 64
    %v311 = vpop.permute.xlu0 %310
    %312 = vrot.lane.b32.xlu0 %v28, 64
    %v313 = vpop.permute.xlu0 %312
    %314 = vrot.lane.b32.xlu0 %v30, 64
    %v315 = vpop.permute.xlu0 %314
    %316 = vrot.lane.b32.xlu0 %v32, 64
    %v317 = vpop.permute.xlu0 %316
    %318 = vrot.lane.b32.xlu0 %v34, 64
    %v319 = vpop.permute.xlu0 %318
    %320 = vrot.lane.b32.xlu0 %v36, 64
    %v321 = vpop.permute.xlu0 %320
    %322 = vrot.lane.b32.xlu0 %v38, 64
    %v323 = vpop.permute.xlu0 %322
    %324 = vrot.lane.b32.xlu0 %v40, 64
    %v325 = vpop.permute.xlu0 %324
    %326 = vrot.lane.b32.xlu0 %v46, 64
    %v327 = vpop.permute.xlu0 %326
    %328 = vrot.lane.b32.xlu0 %v48, 64
    %v329 = vpop.permute.xlu0 %328
    %330 = vrot.lane.b32.xlu0 %v50, 64
    %v331 = vpop.permute.xlu0 %330
    %332 = vrot.lane.b32.xlu0 %v52, 64
    %v333 = vpop.permute.xlu0 %332
    %334 = vrot.lane.b32.xlu0 %v54, 64
    %v335 = vpop.permute.xlu0 %334
    %336 = vrot.lane.b32.xlu0 %v56, 64
    %v337 = vpop.permute.xlu0 %336
    %338 = vrot.lane.b32.xlu0 %v58, 64
    %v339 = vpop.permute.xlu0 %338
    %340 = vrot.lane.b32.xlu0 %v60, 64
    %v341 = vpop.permute.xlu0 %340
    %358 = vst.msk [vmem:[#allocation3 + $0x8] sm:$0xff] %vm210, %v311
    %359 = vst.msk [vmem:[#allocation3 + $0x30] sm:$0xff] %vm210, %v313
    %360 = vst.msk [vmem:[#allocation3 + $0x58] sm:$0xff] %vm210, %v315
    %361 = vst.msk [vmem:[#allocation3 + $0x80] sm:$0xff] %vm210, %v317
    %362 = vst.msk [vmem:[#allocation3 + $0xa8] sm:$0xff] %vm210, %v319
    %363 = vst.msk [vmem:[#allocation3 + $0xd0] sm:$0xff] %vm210, %v321
    %364 = vst.msk [vmem:[#allocation3 + $0xf8] sm:$0xff] %vm210, %v323
    %365 = vst.msk [vmem:[#allocation3 + $0x120] sm:$0xff] %vm210, %v325
    %366 = vst.msk [vmem:[#allocation3 + $0x148] sm:$0xff] %vm210, %v327
    %367 = vst.msk [vmem:[#allocation3 + $0x170] sm:$0xff] %vm210, %v329
    %368 = vst.msk [vmem:[#allocation3 + $0x198] sm:$0xff] %vm210, %v331
    %369 = vst.msk [vmem:[#allocation3 + $0x1c0] sm:$0xff] %vm210, %v333
    %370 = vst.msk [vmem:[#allocation3 + $0x1e8] sm:$0xff] %vm210, %v335
    %371 = vst.msk [vmem:[#allocation3 + $0x210] sm:$0xff] %vm210, %v337
    %372 = vst.msk [vmem:[#allocation3 + $0x238] sm:$0xff] %vm210, %v339
    %373 = vst.msk [vmem:[#allocation3 + $0x260] sm:$0xff] %vm210, %v341
    %v376 = vrot.slane %v40, 1
    %v377 = vrot.slane %v41, 1
    %v378 = vsel %vm113, %v376, %v377
    %v379 = vrot.slane %v60, 1
    %v380 = vrot.slane %v61, 1
    %v381 = vsel %vm113, %v379, %v380
    %398 = vst.msk [vmem:[#allocation3 + $0x10] sm:$0xff] %vm64, %v119
    %399 = vst.msk [vmem:[#allocation3 + $0x38] sm:$0xff] %vm64, %v122
    %400 = vst.msk [vmem:[#allocation3 + $0x60] sm:$0xff] %vm64, %v125
    %401 = vst.msk [vmem:[#allocation3 + $0x88] sm:$0xff] %vm64, %v128
    %402 = vst.msk [vmem:[#allocation3 + $0xb0] sm:$0xff] %vm64, %v131
    %403 = vst.msk [vmem:[#allocation3 + $0xd8] sm:$0xff] %vm64, %v134
    %404 = vst.msk [vmem:[#allocation3 + $0x100] sm:$0xff] %vm64, %v137
    %405 = vst.msk [vmem:[#allocation3 + $0x128] sm:$0xff] %vm64, %v378
    %406 = vst.msk [vmem:[#allocation3 + $0x150] sm:$0xff] %vm64, %v143
    %407 = vst.msk [vmem:[#allocation3 + $0x178] sm:$0xff] %vm64, %v146
    %408 = vst.msk [vmem:[#allocation3 + $0x1a0] sm:$0xff] %vm64, %v149
    %409 = vst.msk [vmem:[#allocation3 + $0x1c8] sm:$0xff] %vm64, %v152
    %410 = vst.msk [vmem:[#allocation3 + $0x1f0] sm:$0xff] %vm64, %v155
    %411 = vst.msk [vmem:[#allocation3 + $0x218] sm:$0xff] %vm64, %v158
    %412 = vst.msk [vmem:[#allocation3 + $0x240] sm:$0xff] %vm64, %v161
    %413 = vst.msk [vmem:[#allocation3 + $0x268] sm:$0xff] %vm64, %v381
    %v414 = vrot.slane %v40, 2
    %v415 = vrot.slane %v41, 2
    %v416 = vsel %vm227, %v414, %v415
    %v417 = vrot.slane %v60, 2
    %v418 = vrot.slane %v61, 2
    %v419 = vsel %vm227, %v417, %v418
    %420 = vrot.lane.b32.xlu0 %v233, 64
    %v421 = vpop.permute.xlu0 %420
    %422 = vrot.lane.b32.xlu0 %v236, 64
    %v423 = vpop.permute.xlu0 %422
    %424 = vrot.lane.b32.xlu0 %v239, 64
    %v425 = vpop.permute.xlu0 %424
    %426 = vrot.lane.b32.xlu0 %v242, 64
    %v427 = vpop.permute.xlu0 %426
    %428 = vrot.lane.b32.xlu0 %v245, 64
    %v429 = vpop.permute.xlu0 %428
    %430 = vrot.lane.b32.xlu0 %v248, 64
    %v431 = vpop.permute.xlu0 %430
    %432 = vrot.lane.b32.xlu0 %v251, 64
    %v433 = vpop.permute.xlu0 %432
    %434 = vrot.lane.b32.xlu0 %v416, 64
    %v435 = vpop.permute.xlu0 %434
    %436 = vrot.lane.b32.xlu0 %v257, 64
    %v437 = vpop.permute.xlu0 %436
    %438 = vrot.lane.b32.xlu0 %v260, 64
    %v439 = vpop.permute.xlu0 %438
    %440 = vrot.lane.b32.xlu0 %v263, 64
    %v441 = vpop.permute.xlu0 %440
    %442 = vrot.lane.b32.xlu0 %v266, 64
    %v443 = vpop.permute.xlu0 %442
    %444 = vrot.lane.b32.xlu0 %v269, 64
    %v445 = vpop.permute.xlu0 %444
    %446 = vrot.lane.b32.xlu0 %v272, 64
    %v447 = vpop.permute.xlu0 %446
    %448 = vrot.lane.b32.xlu0 %v275, 64
    %v449 = vpop.permute.xlu0 %448
    %450 = vrot.lane.b32.xlu0 %v419, 64
    %v451 = vpop.permute.xlu0 %450
    %468 = vst.msk [vmem:[#allocation3 + $0x10] sm:$0xff] %vm210, %v421
    %469 = vst.msk [vmem:[#allocation3 + $0x38] sm:$0xff] %vm210, %v423
    %470 = vst.msk [vmem:[#allocation3 + $0x60] sm:$0xff] %vm210, %v425
    %471 = vst.msk [vmem:[#allocation3 + $0x88] sm:$0xff] %vm210, %v427
    %472 = vst.msk [vmem:[#allocation3 + $0xb0] sm:$0xff] %vm210, %v429
    %473 = vst.msk [vmem:[#allocation3 + $0xd8] sm:$0xff] %vm210, %v431
    %474 = vst.msk [vmem:[#allocation3 + $0x100] sm:$0xff] %vm210, %v433
    %475 = vst.msk [vmem:[#allocation3 + $0x128] sm:$0xff] %vm210, %v435
    %476 = vst.msk [vmem:[#allocation3 + $0x150] sm:$0xff] %vm210, %v437
    %477 = vst.msk [vmem:[#allocation3 + $0x178] sm:$0xff] %vm210, %v439
    %478 = vst.msk [vmem:[#allocation3 + $0x1a0] sm:$0xff] %vm210, %v441
    %479 = vst.msk [vmem:[#allocation3 + $0x1c8] sm:$0xff] %vm210, %v443
    %480 = vst.msk [vmem:[#allocation3 + $0x1f0] sm:$0xff] %vm210, %v445
    %481 = vst.msk [vmem:[#allocation3 + $0x218] sm:$0xff] %vm210, %v447
    %482 = vst.msk [vmem:[#allocation3 + $0x240] sm:$0xff] %vm210, %v449
    %483 = vst.msk [vmem:[#allocation3 + $0x268] sm:$0xff] %vm210, %v451
    %484 = vst.msk [vmem:[#allocation3 + $0x18] sm:$0xff] %vm64, %v28
    %485 = vst.msk [vmem:[#allocation3 + $0x40] sm:$0xff] %vm64, %v30
    %486 = vst.msk [vmem:[#allocation3 + $0x68] sm:$0xff] %vm64, %v32
    %487 = vst.msk [vmem:[#allocation3 + $0x90] sm:$0xff] %vm64, %v34
    %488 = vst.msk [vmem:[#allocation3 + $0xb8] sm:$0xff] %vm64, %v36
    %489 = vst.msk [vmem:[#allocation3 + $0xe0] sm:$0xff] %vm64, %v38
    %490 = vst.msk [vmem:[#allocation3 + $0x108] sm:$0xff] %vm64, %v40
    %491 = vst.msk [vmem:[#allocation3 + $0x130] sm:$0xff] %vm64, %v42
    %492 = vst.msk [vmem:[#allocation3 + $0x158] sm:$0xff] %vm64, %v48
    %493 = vst.msk [vmem:[#allocation3 + $0x180] sm:$0xff] %vm64, %v50
    %494 = vst.msk [vmem:[#allocation3 + $0x1a8] sm:$0xff] %vm64, %v52
    %495 = vst.msk [vmem:[#allocation3 + $0x1d0] sm:$0xff] %vm64, %v54
    %496 = vst.msk [vmem:[#allocation3 + $0x1f8] sm:$0xff] %vm64, %v56
    %497 = vst.msk [vmem:[#allocation3 + $0x220] sm:$0xff] %vm64, %v58
    %498 = vst.msk [vmem:[#allocation3 + $0x248] sm:$0xff] %vm64, %v60
    %499 = vst.msk [vmem:[#allocation3 + $0x270] sm:$0xff] %vm64, %v62
    %v504 = vrot.slane %v42, 1
    %v505 = vrot.slane %v43, 1
    %v506 = vsel %vm113, %v504, %v505
    %v507 = vrot.slane %v62, 1
    %v508 = vrot.slane %v63, 1
    %v509 = vsel %vm113, %v507, %v508
    %510 = vrot.lane.b32.xlu0 %v378, 64
    %v511 = vpop.permute.xlu0 %510
    %512 = vrot.lane.b32.xlu0 %v506, 64
    %v513 = vpop.permute.xlu0 %512
    %514 = vrot.lane.b32.xlu0 %v381, 64
    %v515 = vpop.permute.xlu0 %514
    %516 = vrot.lane.b32.xlu0 %v509, 64
    %v517 = vpop.permute.xlu0 %516
    %522 = vst.msk [vmem:[#allocation3 + $0x18] sm:$0xff] %vm210, %v167
    %523 = vst.msk [vmem:[#allocation3 + $0x40] sm:$0xff] %vm210, %v169
    %524 = vst.msk [vmem:[#allocation3 + $0x68] sm:$0xff] %vm210, %v171
    %525 = vst.msk [vmem:[#allocation3 + $0x90] sm:$0xff] %vm210, %v173
    %526 = vst.msk [vmem:[#allocation3 + $0xb8] sm:$0xff] %vm210, %v175
    %527 = vst.msk [vmem:[#allocation3 + $0xe0] sm:$0xff] %vm210, %v177
    %528 = vst.msk [vmem:[#allocation3 + $0x108] sm:$0xff] %vm210, %v511
    %529 = vst.msk [vmem:[#allocation3 + $0x130] sm:$0xff] %vm210, %v513
    %530 = vst.msk [vmem:[#allocation3 + $0x158] sm:$0xff] %vm210, %v183
    %531 = vst.msk [vmem:[#allocation3 + $0x180] sm:$0xff] %vm210, %v185
    %532 = vst.msk [vmem:[#allocation3 + $0x1a8] sm:$0xff] %vm210, %v187
    %533 = vst.msk [vmem:[#allocation3 + $0x1d0] sm:$0xff] %vm210, %v189
    %534 = vst.msk [vmem:[#allocation3 + $0x1f8] sm:$0xff] %vm210, %v191
    %535 = vst.msk [vmem:[#allocation3 + $0x220] sm:$0xff] %vm210, %v193
    %536 = vst.msk [vmem:[#allocation3 + $0x248] sm:$0xff] %vm210, %v515
    %537 = vst.msk [vmem:[#allocation3 + $0x270] sm:$0xff] %vm210, %v517
    %v538 = vrot.slane %v42, 2
    %v539 = vrot.slane %v43, 2
    %v540 = vsel %vm227, %v538, %v539
    %v541 = vrot.slane %v62, 2
    %v542 = vrot.slane %v63, 2
    %v543 = vsel %vm227, %v541, %v542
    %548 = vst.msk [vmem:[#allocation3 + $0x20] sm:$0xff] %vm64, %v236
    %549 = vst.msk [vmem:[#allocation3 + $0x48] sm:$0xff] %vm64, %v239
    %550 = vst.msk [vmem:[#allocation3 + $0x70] sm:$0xff] %vm64, %v242
    %551 = vst.msk [vmem:[#allocation3 + $0x98] sm:$0xff] %vm64, %v245
    %552 = vst.msk [vmem:[#allocation3 + $0xc0] sm:$0xff] %vm64, %v248
    %553 = vst.msk [vmem:[#allocation3 + $0xe8] sm:$0xff] %vm64, %v251
    %554 = vst.msk [vmem:[#allocation3 + $0x110] sm:$0xff] %vm64, %v416
    %555 = vst.msk [vmem:[#allocation3 + $0x138] sm:$0xff] %vm64, %v540
    %556 = vst.msk [vmem:[#allocation3 + $0x160] sm:$0xff] %vm64, %v260
    %557 = vst.msk [vmem:[#allocation3 + $0x188] sm:$0xff] %vm64, %v263
    %558 = vst.msk [vmem:[#allocation3 + $0x1b0] sm:$0xff] %vm64, %v266
    %559 = vst.msk [vmem:[#allocation3 + $0x1d8] sm:$0xff] %vm64, %v269
    %560 = vst.msk [vmem:[#allocation3 + $0x200] sm:$0xff] %vm64, %v272
    %561 = vst.msk [vmem:[#allocation3 + $0x228] sm:$0xff] %vm64, %v275
    %562 = vst.msk [vmem:[#allocation3 + $0x250] sm:$0xff] %vm64, %v419
    %563 = vst.msk [vmem:[#allocation3 + $0x278] sm:$0xff] %vm64, %v543
    %v564 = vld [vmem:[#allocation3] sm:$0xff]
    %v565 = vld [vmem:[#allocation3 + $0x8] sm:$0xff]
    %v566 = vld [vmem:[#allocation3 + $0x10] sm:$0xff]
    %v567 = vld [vmem:[#allocation3 + $0x18] sm:$0xff]
    %v568 = vld [vmem:[#allocation3 + $0x20] sm:$0xff]
    %v569 = vld [vmem:[#allocation3 + $0x28] sm:$0xff]
    %v570 = vld [vmem:[#allocation3 + $0x30] sm:$0xff]
    %v571 = vld [vmem:[#allocation3 + $0x38] sm:$0xff]
    %v572 = vld [vmem:[#allocation3 + $0x40] sm:$0xff]
    %v573 = vld [vmem:[#allocation3 + $0x48] sm:$0xff]
    %v574 = vld [vmem:[#allocation3 + $0x50] sm:$0xff]
    %v575 = vld [vmem:[#allocation3 + $0x58] sm:$0xff]
    %v576 = vld [vmem:[#allocation3 + $0x60] sm:$0xff]
    %v577 = vld [vmem:[#allocation3 + $0x68] sm:$0xff]
    %v578 = vld [vmem:[#allocation3 + $0x70] sm:$0xff]
    %v579 = vld [vmem:[#allocation3 + $0x78] sm:$0xff]
    %v580 = vld [vmem:[#allocation3 + $0x80] sm:$0xff]
    %v581 = vld [vmem:[#allocation3 + $0x88] sm:$0xff]
    %v582 = vld [vmem:[#allocation3 + $0x90] sm:$0xff]
    %v583 = vld [vmem:[#allocation3 + $0x98] sm:$0xff]
    %v584 = vld [vmem:[#allocation3 + $0xa0] sm:$0xff]
    %v585 = vld [vmem:[#allocation3 + $0xa8] sm:$0xff]
    %v586 = vld [vmem:[#allocation3 + $0xb0] sm:$0xff]
    %v587 = vld [vmem:[#allocation3 + $0xb8] sm:$0xff]
    %v588 = vld [vmem:[#allocation3 + $0xc0] sm:$0xff]
    %v589 = vld [vmem:[#allocation3 + $0xc8] sm:$0xff]
    %v590 = vld [vmem:[#allocation3 + $0xd0] sm:$0xff]
    %v591 = vld [vmem:[#allocation3 + $0xd8] sm:$0xff]
    %v592 = vld [vmem:[#allocation3 + $0xe0] sm:$0xff]
    %v593 = vld [vmem:[#allocation3 + $0xe8] sm:$0xff]
    %v594 = vld [vmem:[#allocation3 + $0xf0] sm:$0xff]
    %v595 = vld [vmem:[#allocation3 + $0xf8] sm:$0xff]
    %v596 = vld [vmem:[#allocation3 + $0x100] sm:$0xff]
    %v597 = vld [vmem:[#allocation3 + $0x108] sm:$0xff]
    %v598 = vld [vmem:[#allocation3 + $0x110] sm:$0xff]
    %v599 = vld [vmem:[#allocation3 + $0x118] sm:$0xff]
    %v600 = vld [vmem:[#allocation3 + $0x120] sm:$0xff]
    %v601 = vld [vmem:[#allocation3 + $0x128] sm:$0xff]
    %v602 = vld [vmem:[#allocation3 + $0x130] sm:$0xff]
    %v603 = vld [vmem:[#allocation3 + $0x138] sm:$0xff]
    %v604 = vld [vmem:[#allocation3 + $0x140] sm:$0xff]
    %v605 = vld [vmem:[#allocation3 + $0x148] sm:$0xff]
    %v606 = vld [vmem:[#allocation3 + $0x150] sm:$0xff]
    %v607 = vld [vmem:[#allocation3 + $0x158] sm:$0xff]
    %v608 = vld [vmem:[#allocation3 + $0x160] sm:$0xff]
    %v609 = vld [vmem:[#allocation3 + $0x168] sm:$0xff]
    %v610 = vld [vmem:[#allocation3 + $0x170] sm:$0xff]
    %v611 = vld [vmem:[#allocation3 + $0x178] sm:$0xff]
    %v612 = vld [vmem:[#allocation3 + $0x180] sm:$0xff]
    %v613 = vld [vmem:[#allocation3 + $0x188] sm:$0xff]
    %v614 = vld [vmem:[#allocation3 + $0x190] sm:$0xff]
    %v615 = vld [vmem:[#allocation3 + $0x198] sm:$0xff]
    %v616 = vld [vmem:[#allocation3 + $0x1a0] sm:$0xff]
    %v617 = vld [vmem:[#allocation3 + $0x1a8] sm:$0xff]
    %v618 = vld [vmem:[#allocation3 + $0x1b0] sm:$0xff]
    %v619 = vld [vmem:[#allocation3 + $0x1b8] sm:$0xff]
    %v620 = vld [vmem:[#allocation3 + $0x1c0] sm:$0xff]
    %v621 = vld [vmem:[#allocation3 + $0x1c8] sm:$0xff]
    %v622 = vld [vmem:[#allocation3 + $0x1d0] sm:$0xff]
    %v623 = vld [vmem:[#allocation3 + $0x1d8] sm:$0xff]
    %v624 = vld [vmem:[#allocation3 + $0x1e0] sm:$0xff]
    %v625 = vld [vmem:[#allocation3 + $0x1e8] sm:$0xff]
    %v626 = vld [vmem:[#allocation3 + $0x1f0] sm:$0xff]
    %v627 = vld [vmem:[#allocation3 + $0x1f8] sm:$0xff]
    %v628 = vld [vmem:[#allocation3 + $0x200] sm:$0xff]
    %v629 = vld [vmem:[#allocation3 + $0x208] sm:$0xff]
    %v630 = vld [vmem:[#allocation3 + $0x210] sm:$0xff]
    %v631 = vld [vmem:[#allocation3 + $0x218] sm:$0xff]
    %v632 = vld [vmem:[#allocation3 + $0x220] sm:$0xff]
    %v633 = vld [vmem:[#allocation3 + $0x228] sm:$0xff]
    %v634 = vld [vmem:[#allocation3 + $0x230] sm:$0xff]
    %v635 = vld [vmem:[#allocation3 + $0x238] sm:$0xff]
    %v636 = vld [vmem:[#allocation3 + $0x240] sm:$0xff]
    %v637 = vld [vmem:[#allocation3 + $0x248] sm:$0xff]
    %v638 = vld [vmem:[#allocation3 + $0x250] sm:$0xff]
    %v639 = vld [vmem:[#allocation3 + $0x258] sm:$0xff]
    %v640 = vld [vmem:[#allocation3 + $0x260] sm:$0xff]
    %v641 = vld [vmem:[#allocation3 + $0x268] sm:$0xff]
    %v642 = vld [vmem:[#allocation3 + $0x270] sm:$0xff]
    %v643 = vld [vmem:[#allocation3 + $0x278] sm:$0xff]
    %v644 = vld [vmem:[%s1] sm:$0xff]
    %v645 = vld [vmem:[%s1 + $0x8] sm:$0xff]
    %v646 = vld [vmem:[%s1 + $0x10] sm:$0xff]
    %v647 = vld [vmem:[%s1 + $0x18] sm:$0xff]
    %v648 = vld [vmem:[%s1 + $0x20] sm:$0xff]
    %v649 = vld [vmem:[%s1 + $0x28] sm:$0xff]
    %v650 = vld [vmem:[%s1 + $0x30] sm:$0xff]
    %v651 = vld [vmem:[%s1 + $0x38] sm:$0xff]
    %v652 = vld [vmem:[%s1 + $0x40] sm:$0xff]
    %v653 = vld [vmem:[%s1 + $0x48] sm:$0xff]
    %v654 = vld [vmem:[%s1 + $0x50] sm:$0xff]
    %v655 = vld [vmem:[%s1 + $0x58] sm:$0xff]
    %v656 = vld [vmem:[%s1 + $0x60] sm:$0xff]
    %v657 = vld [vmem:[%s1 + $0x68] sm:$0xff]
    %v658 = vld [vmem:[%s1 + $0x70] sm:$0xff]
    %v659 = vld [vmem:[%s1 + $0x78] sm:$0xff]
    %v660 = vld [vmem:[%s1 + $0x80] sm:$0xff]
    %v661 = vld [vmem:[%s1 + $0x88] sm:$0xff]
    %v662 = vld [vmem:[%s1 + $0x90] sm:$0xff]
    %v663 = vld [vmem:[%s1 + $0x98] sm:$0xff]
    %v664 = vld [vmem:[%s1 + $0xa0] sm:$0xff]
    %v665 = vld [vmem:[%s1 + $0xa8] sm:$0xff]
    %v666 = vld [vmem:[%s1 + $0xb0] sm:$0xff]
    %v667 = vld [vmem:[%s1 + $0xb8] sm:$0xff]
    %v668 = vld [vmem:[%s1 + $0xc0] sm:$0xff]
    %v669 = vld [vmem:[%s1 + $0xc8] sm:$0xff]
    %v670 = vld [vmem:[%s1 + $0xd0] sm:$0xff]
    %v671 = vld [vmem:[%s1 + $0xd8] sm:$0xff]
    %v672 = vld [vmem:[%s1 + $0xe0] sm:$0xff]
    %v673 = vld [vmem:[%s1 + $0xe8] sm:$0xff]
    %v674 = vld [vmem:[%s1 + $0xf0] sm:$0xff]
    %v675 = vld [vmem:[%s1 + $0xf8] sm:$0xff]
    %v676 = vld [vmem:[%s1 + $0x100] sm:$0xff]
    %v677 = vld [vmem:[%s1 + $0x108] sm:$0xff]
    %v678 = vld [vmem:[%s1 + $0x110] sm:$0xff]
    %v679 = vld [vmem:[%s1 + $0x118] sm:$0xff]
    %v680 = vld [vmem:[%s1 + $0x120] sm:$0xff]
    %v681 = vld [vmem:[%s1 + $0x128] sm:$0xff]
    %v682 = vld [vmem:[%s1 + $0x130] sm:$0xff]
    %v683 = vld [vmem:[%s1 + $0x138] sm:$0xff]
    %v684 = vld [vmem:[%s1 + $0x140] sm:$0xff]
    %v685 = vld [vmem:[%s1 + $0x148] sm:$0xff]
    %v686 = vld [vmem:[%s1 + $0x150] sm:$0xff]
    %v687 = vld [vmem:[%s1 + $0x158] sm:$0xff]
    %v688 = vld [vmem:[%s1 + $0x160] sm:$0xff]
    %v689 = vld [vmem:[%s1 + $0x168] sm:$0xff]
    %v690 = vld [vmem:[%s1 + $0x170] sm:$0xff]
    %v691 = vld [vmem:[%s1 + $0x178] sm:$0xff]
    %v692 = vld [vmem:[%s1 + $0x180] sm:$0xff]
    %v693 = vld [vmem:[%s1 + $0x188] sm:$0xff]
    %v694 = vld [vmem:[%s1 + $0x190] sm:$0xff]
    %v695 = vld [vmem:[%s1 + $0x198] sm:$0xff]
    %v696 = vld [vmem:[%s1 + $0x1a0] sm:$0xff]
    %v697 = vld [vmem:[%s1 + $0x1a8] sm:$0xff]
    %v698 = vld [vmem:[%s1 + $0x1b0] sm:$0xff]
    %v699 = vld [vmem:[%s1 + $0x1b8] sm:$0xff]
    %v700 = vld [vmem:[%s1 + $0x1c0] sm:$0xff]
    %v701 = vld [vmem:[%s1 + $0x1c8] sm:$0xff]
    %v702 = vld [vmem:[%s1 + $0x1d0] sm:$0xff]
    %v703 = vld [vmem:[%s1 + $0x1d8] sm:$0xff]
    %v704 = vld [vmem:[%s1 + $0x1e0] sm:$0xff]
    %v705 = vld [vmem:[%s1 + $0x1e8] sm:$0xff]
    %v706 = vld [vmem:[%s1 + $0x1f0] sm:$0xff]
    %v707 = vld [vmem:[%s1 + $0x1f8] sm:$0xff]
    %v708 = vld [vmem:[%s1 + $0x200] sm:$0xff]
    %v709 = vld [vmem:[%s1 + $0x208] sm:$0xff]
    %v710 = vld [vmem:[%s1 + $0x210] sm:$0xff]
    %v711 = vld [vmem:[%s1 + $0x218] sm:$0xff]
    %v712 = vld [vmem:[%s1 + $0x220] sm:$0xff]
    %v713 = vld [vmem:[%s1 + $0x228] sm:$0xff]
    %v714 = vld [vmem:[%s1 + $0x230] sm:$0xff]
    %v715 = vld [vmem:[%s1 + $0x238] sm:$0xff]
    %v716 = vld [vmem:[%s2] sm:$0x1]
    %v718 = vlaneseq
    %v719 = vshrl.u32 %v718, 7
    %v720 = vsub.s32 0, %v719
    %v721 = vrot.slane %v716, %v720
    %v724 = vsel %vm64, %v568, 0
    %v727 = vsel %vm64, %v573, 0
    %v730 = vsel %vm64, %v578, 0
    %v733 = vsel %vm64, %v583, 0
    %v736 = vsel %vm64, %v588, 0
    %v739 = vsel %vm64, %v593, 0
    %v742 = vsel %vm64, %v598, 0
    %v745 = vsel %vm64, %v603, 0
    %v748 = vsel %vm64, %v608, 0
    %v751 = vsel %vm64, %v613, 0
    %v754 = vsel %vm64, %v618, 0
    %v757 = vsel %vm64, %v623, 0
    %v760 = vsel %vm64, %v628, 0
    %v763 = vsel %vm64, %v633, 0
    %v766 = vsel %vm64, %v638, 0
    %v769 = vsel %vm64, %v643, 0
    %771 = vmatprep.subr.mxu0 0.0
    %772 = vmatpush1.msra.mxu0 %v659
    %773 = vmatprep.subr.mxu0 0.0
    %774 = vmatpush1.msra.mxu0 %v658
    %775 = vmatprep.subr.mxu0 0.0
    %776 = vmatpush1.msra.mxu0 %v657
    %777 = vmatprep.subr.mxu0 0.0
    %778 = vmatpush1.msra.mxu0 %v656
    %779 = vmatprep.subr.mxu0 0.0
    %780 = vmatpush1.msra.mxu0 %v655
    %781 = vmatprep.subr.mxu0 0.0
    %782 = vmatpush1.msra.mxu0 %v654
    %783 = vmatprep.subr.mxu0 0.0
    %784 = vmatpush1.msra.mxu0 %v653
    %785 = vmatprep.subr.mxu0 0.0
    %786 = vmatpush1.msra.mxu0 %v652
    %787 = vmatprep.subr.mxu0 0.0
    %788 = vmatpush1.msra.mxu0 %v651
    %789 = vmatprep.subr.mxu0 0.0
    %790 = vmatpush1.msra.mxu0 %v650
    %791 = vmatprep.subr.mxu0 0.0
    %792 = vmatpush1.msra.mxu0 %v649
    %793 = vmatprep.subr.mxu0 0.0
    %794 = vmatpush1.msra.mxu0 %v648
    %795 = vmatprep.subr.mxu0 0.0
    %796 = vmatpush1.msra.mxu0 %v647
    %797 = vmatprep.subr.mxu0 0.0
    %798 = vmatpush1.msra.mxu0 %v646
    %799 = vmatprep.subr.mxu0 0.0
    %800 = vmatpush1.msra.mxu0 %v645
    %801 = vmatprep.subr.mxu0 0.0
    %802 = vmatpush1.msra.mxu0 %v644
    %803 = vmatprep.subr.mxu0 0.0
    %804 = vmatpush2.msra.mxu0 %v675
    %805 = vmatprep.subr.mxu0 0.0
    %806 = vmatpush2.msra.mxu0 %v674
    %807 = vmatprep.subr.mxu0 0.0
    %808 = vmatpush2.msra.mxu0 %v673
    %809 = vmatprep.subr.mxu0 0.0
    %810 = vmatpush2.msra.mxu0 %v672
    %811 = vmatprep.subr.mxu0 0.0
    %812 = vmatpush2.msra.mxu0 %v671
    %813 = vmatprep.subr.mxu0 0.0
    %814 = vmatpush2.msra.mxu0 %v670
    %815 = vmatprep.subr.mxu0 0.0
    %816 = vmatpush2.msra.mxu0 %v669
    %817 = vmatprep.subr.mxu0 0.0
    %818 = vmatpush2.msra.mxu0 %v668
    %819 = vmatprep.subr.mxu0 0.0
    %820 = vmatpush2.msra.mxu0 %v667
    %821 = vmatprep.subr.mxu0 0.0
    %822 = vmatpush2.msra.mxu0 %v666
    %823 = vmatprep.subr.mxu0 0.0
    %824 = vmatpush2.msra.mxu0 %v665
    %825 = vmatprep.subr.mxu0 0.0
    %826 = vmatpush2.msra.mxu0 %v664
    %827 = vmatprep.subr.mxu0 0.0
    %828 = vmatpush2.msra.mxu0 %v663
    %829 = vmatprep.subr.mxu0 0.0
    %830 = vmatpush2.msra.mxu0 %v662
    %831 = vmatprep.subr.mxu0 0.0
    %832 = vmatpush2.msra.mxu0 %v661
    %833 = vmatprep.subr.mxu0 0.0
    %834 = vmatpush2.msra.mxu0 %v660
    %835 = vmatprep.mubr.f32.mxu0 %v565
    %836 = vmatmul.mubr.f32.gmra.mxu0 %v564
    %v837 = vpop.f32.mrf.mxu0
    %v838 = vadd.f32 %v721, %v837
    %v839 = vpop.f32.mrf.mxu0
    %840 = vmatprep.mubr.f32.mxu0 %v570
    %841 = vmatmul.mubr.f32.gmra.mxu0 %v569
    %v842 = vpop.f32.mrf.mxu0
    %v843 = vadd.f32 %v721, %v842
    %v844 = vpop.f32.mrf.mxu0
    %845 = vmatprep.mubr.f32.mxu0 %v575
    %846 = vmatmul.mubr.f32.gmra.mxu0 %v574
    %v847 = vpop.f32.mrf.mxu0
    %v848 = vadd.f32 %v721, %v847
    %v849 = vpop.f32.mrf.mxu0
    %850 = vmatprep.mubr.f32.mxu0 %v580
    %851 = vmatmul.mubr.f32.gmra.mxu0 %v579
    %v852 = vpop.f32.mrf.mxu0
    %v853 = vadd.f32 %v721, %v852
    %v854 = vpop.f32.mrf.mxu0
    %855 = vmatprep.mubr.f32.mxu0 %v585
    %856 = vmatmul.mubr.f32.gmra.mxu0 %v584
    %v857 = vpop.f32.mrf.mxu0
    %v858 = vadd.f32 %v721, %v857
    %v859 = vpop.f32.mrf.mxu0
    %860 = vmatprep.mubr.f32.mxu0 %v590
    %861 = vmatmul.mubr.f32.gmra.mxu0 %v589
    %v862 = vpop.f32.mrf.mxu0
    %v863 = vadd.f32 %v721, %v862
    %v864 = vpop.f32.mrf.mxu0
    %865 = vmatprep.mubr.f32.mxu0 %v595
    %866 = vmatmul.mubr.f32.gmra.mxu0 %v594
    %v867 = vpop.f32.mrf.mxu0
    %v868 = vadd.f32 %v721, %v867
    %v869 = vpop.f32.mrf.mxu0
    %870 = vmatprep.mubr.f32.mxu0 %v600
    %871 = vmatmul.mubr.f32.gmra.mxu0 %v599
    %v872 = vpop.f32.mrf.mxu0
    %v873 = vadd.f32 %v721, %v872
    %v874 = vpop.f32.mrf.mxu0
    %875 = vmatprep.mubr.f32.mxu0 %v605
    %876 = vmatmul.mubr.f32.gmra.mxu0 %v604
    %v877 = vpop.f32.mrf.mxu0
    %v878 = vadd.f32 %v721, %v877
    %v879 = vpop.f32.mrf.mxu0
    %880 = vmatprep.mubr.f32.mxu0 %v610
    %881 = vmatmul.mubr.f32.gmra.mxu0 %v609
    %v882 = vpop.f32.mrf.mxu0
    %v883 = vadd.f32 %v721, %v882
    %v884 = vpop.f32.mrf.mxu0
    %885 = vmatprep.mubr.f32.mxu0 %v615
    %886 = vmatmul.mubr.f32.gmra.mxu0 %v614
    %v887 = vpop.f32.mrf.mxu0
    %v888 = vadd.f32 %v721, %v887
    %v889 = vpop.f32.mrf.mxu0
    %890 = vmatprep.mubr.f32.mxu0 %v620
    %891 = vmatmul.mubr.f32.gmra.mxu0 %v619
    %v892 = vpop.f32.mrf.mxu0
    %v893 = vadd.f32 %v721, %v892
    %v894 = vpop.f32.mrf.mxu0
    %895 = vmatprep.mubr.f32.mxu0 %v625
    %896 = vmatmul.mubr.f32.gmra.mxu0 %v624
    %v897 = vpop.f32.mrf.mxu0
    %v898 = vadd.f32 %v721, %v897
    %v899 = vpop.f32.mrf.mxu0
    %900 = vmatprep.mubr.f32.mxu0 %v630
    %901 = vmatmul.mubr.f32.gmra.mxu0 %v629
    %v902 = vpop.f32.mrf.mxu0
    %v903 = vadd.f32 %v721, %v902
    %v904 = vpop.f32.mrf.mxu0
    %905 = vmatprep.mubr.f32.mxu0 %v635
    %906 = vmatmul.mubr.f32.gmra.mxu0 %v634
    %v907 = vpop.f32.mrf.mxu0
    %v908 = vadd.f32 %v721, %v907
    %v909 = vpop.f32.mrf.mxu0
    %910 = vmatprep.mubr.f32.mxu0 %v640
    %911 = vmatmul.mubr.f32.gmra.mxu0 %v639
    %v912 = vpop.f32.mrf.mxu0
    %v913 = vadd.f32 %v721, %v912
    %v914 = vpop.f32.mrf.mxu0
    %915 = vdwg.mxu0
    %916 = vmatprep.subr.mxu0 0.0
    %917 = vmatpush1.msra.mxu0 %v691
    %918 = vmatprep.subr.mxu0 0.0
    %919 = vmatpush1.msra.mxu0 %v690
    %920 = vmatprep.subr.mxu0 0.0
    %921 = vmatpush1.msra.mxu0 %v689
    %922 = vmatprep.subr.mxu0 0.0
    %923 = vmatpush1.msra.mxu0 %v688
    %924 = vmatprep.subr.mxu0 0.0
    %925 = vmatpush1.msra.mxu0 %v687
    %926 = vmatprep.subr.mxu0 0.0
    %927 = vmatpush1.msra.mxu0 %v686
    %928 = vmatprep.subr.mxu0 0.0
    %929 = vmatpush1.msra.mxu0 %v685
    %930 = vmatprep.subr.mxu0 0.0
    %931 = vmatpush1.msra.mxu0 %v684
    %932 = vmatprep.subr.mxu0 0.0
    %933 = vmatpush1.msra.mxu0 %v683
    %934 = vmatprep.subr.mxu0 0.0
    %935 = vmatpush1.msra.mxu0 %v682
    %936 = vmatprep.subr.mxu0 0.0
    %937 = vmatpush1.msra.mxu0 %v681
    %938 = vmatprep.subr.mxu0 0.0
    %939 = vmatpush1.msra.mxu0 %v680
    %940 = vmatprep.subr.mxu0 0.0
    %941 = vmatpush1.msra.mxu0 %v679
    %942 = vmatprep.subr.mxu0 0.0
    %943 = vmatpush1.msra.mxu0 %v678
    %944 = vmatprep.subr.mxu0 0.0
    %945 = vmatpush1.msra.mxu0 %v677
    %946 = vmatprep.subr.mxu0 0.0
    %947 = vmatpush1.msra.mxu0 %v676
    %948 = vmatprep.subr.mxu0 0.0
    %949 = vmatpush2.msra.mxu0 %v707
    %950 = vmatprep.subr.mxu0 0.0
    %951 = vmatpush2.msra.mxu0 %v706
    %952 = vmatprep.subr.mxu0 0.0
    %953 = vmatpush2.msra.mxu0 %v705
    %954 = vmatprep.subr.mxu0 0.0
    %955 = vmatpush2.msra.mxu0 %v704
    %956 = vmatprep.subr.mxu0 0.0
    %957 = vmatpush2.msra.mxu0 %v703
    %958 = vmatprep.subr.mxu0 0.0
    %959 = vmatpush2.msra.mxu0 %v702
    %960 = vmatprep.subr.mxu0 0.0
    %961 = vmatpush2.msra.mxu0 %v701
    %962 = vmatprep.subr.mxu0 0.0
    %963 = vmatpush2.msra.mxu0 %v700
    %964 = vmatprep.subr.mxu0 0.0
    %965 = vmatpush2.msra.mxu0 %v699
    %966 = vmatprep.subr.mxu0 0.0
    %967 = vmatpush2.msra.mxu0 %v698
    %968 = vmatprep.subr.mxu0 0.0
    %969 = vmatpush2.msra.mxu0 %v697
    %970 = vmatprep.subr.mxu0 0.0
    %971 = vmatpush2.msra.mxu0 %v696
    %972 = vmatprep.subr.mxu0 0.0
    %973 = vmatpush2.msra.mxu0 %v695
    %974 = vmatprep.subr.mxu0 0.0
    %975 = vmatpush2.msra.mxu0 %v694
    %976 = vmatprep.subr.mxu0 0.0
    %977 = vmatpush2.msra.mxu0 %v693
    %978 = vmatprep.subr.mxu0 0.0
    %979 = vmatpush2.msra.mxu0 %v692
    %980 = vmatprep.mubr.f32.mxu0 %v567
    %981 = vmatmul.mubr.f32.gmra.mxu0 %v566
    %v982 = vpop.f32.mrf.mxu0
    %v983 = vadd.f32 %v838, %v982
    %v984 = vpop.f32.mrf.mxu0
    %985 = vmatprep.mubr.f32.mxu0 %v572
    %986 = vmatmul.mubr.f32.gmra.mxu0 %v571
    %v987 = vpop.f32.mrf.mxu0
    %v988 = vadd.f32 %v843, %v987
    %v989 = vpop.f32.mrf.mxu0
    %990 = vmatprep.mubr.f32.mxu0 %v577
    %991 = vmatmul.mubr.f32.gmra.mxu0 %v576
    %v992 = vpop.f32.mrf.mxu0
    %v993 = vadd.f32 %v848, %v992
    %v994 = vpop.f32.mrf.mxu0
    %995 = vmatprep.mubr.f32.mxu0 %v582
    %996 = vmatmul.mubr.f32.gmra.mxu0 %v581
    %v997 = vpop.f32.mrf.mxu0
    %v998 = vadd.f32 %v853, %v997
    %v999 = vpop.f32.mrf.mxu0
    %1000 = vmatprep.mubr.f32.mxu0 %v587
    %1001 = vmatmul.mubr.f32.gmra.mxu0 %v586
    %v1002 = vpop.f32.mrf.mxu0
    %v1003 = vadd.f32 %v858, %v1002
    %v1004 = vpop.f32.mrf.mxu0
    %1005 = vmatprep.mubr.f32.mxu0 %v592
    %1006 = vmatmul.mubr.f32.gmra.mxu0 %v591
    %v1007 = vpop.f32.mrf.mxu0
    %v1008 = vadd.f32 %v863, %v1007
    %v1009 = vpop.f32.mrf.mxu0
    %1010 = vmatprep.mubr.f32.mxu0 %v597
    %1011 = vmatmul.mubr.f32.gmra.mxu0 %v596
    %v1012 = vpop.f32.mrf.mxu0
    %v1013 = vadd.f32 %v868, %v1012
    %v1014 = vpop.f32.mrf.mxu0
    %1015 = vmatprep.mubr.f32.mxu0 %v602
    %1016 = vmatmul.mubr.f32.gmra.mxu0 %v601
    %v1017 = vpop.f32.mrf.mxu0
    %v1018 = vadd.f32 %v873, %v1017
    %v1019 = vpop.f32.mrf.mxu0
    %1020 = vmatprep.mubr.f32.mxu0 %v607
    %1021 = vmatmul.mubr.f32.gmra.mxu0 %v606
    %v1022 = vpop.f32.mrf.mxu0
    %v1023 = vadd.f32 %v878, %v1022
    %v1024 = vpop.f32.mrf.mxu0
    %1025 = vmatprep.mubr.f32.mxu0 %v612
    %1026 = vmatmul.mubr.f32.gmra.mxu0 %v611
    %v1027 = vpop.f32.mrf.mxu0
    %v1028 = vadd.f32 %v883, %v1027
    %v1029 = vpop.f32.mrf.mxu0
    %1030 = vmatprep.mubr.f32.mxu0 %v617
    %1031 = vmatmul.mubr.f32.gmra.mxu0 %v616
    %v1032 = vpop.f32.mrf.mxu0
    %v1033 = vadd.f32 %v888, %v1032
    %v1034 = vpop.f32.mrf.mxu0
    %1035 = vmatprep.mubr.f32.mxu0 %v622
    %1036 = vmatmul.mubr.f32.gmra.mxu0 %v621
    %v1037 = vpop.f32.mrf.mxu0
    %v1038 = vadd.f32 %v893, %v1037
    %v1039 = vpop.f32.mrf.mxu0
    %1040 = vmatprep.mubr.f32.mxu0 %v627
    %1041 = vmatmul.mubr.f32.gmra.mxu0 %v626
    %v1042 = vpop.f32.mrf.mxu0
    %v1043 = vadd.f32 %v898, %v1042
    %v1044 = vpop.f32.mrf.mxu0
    %1045 = vmatprep.mubr.f32.mxu0 %v632
    %1046 = vmatmul.mubr.f32.gmra.mxu0 %v631
    %v1047 = vpop.f32.mrf.mxu0
    %v1048 = vadd.f32 %v903, %v1047
    %v1049 = vpop.f32.mrf.mxu0
    %1050 = vmatprep.mubr.f32.mxu0 %v637
    %1051 = vmatmul.mubr.f32.gmra.mxu0 %v636
    %v1052 = vpop.f32.mrf.mxu0
    %v1053 = vadd.f32 %v908, %v1052
    %v1054 = vpop.f32.mrf.mxu0
    %1055 = vmatprep.mubr.f32.mxu0 %v642
    %1056 = vmatmul.mubr.f32.gmra.mxu0 %v641
    %v1057 = vpop.f32.mrf.mxu0
    %v1058 = vadd.f32 %v913, %v1057
    %v1059 = vpop.f32.mrf.mxu0
    %1060 = vdwg.mxu0
    %1061 = vmatprep.subr.mxu0 0.0
    %1062 = vmatpush1.msra.mxu0 0.0
    %1063 = vmatprep.subr.mxu0 0.0
    %1064 = vmatpush1.msra.mxu0 0.0
    %1065 = vmatprep.subr.mxu0 0.0
    %1066 = vmatpush1.msra.mxu0 0.0
    %1067 = vmatprep.subr.mxu0 0.0
    %1068 = vmatpush1.msra.mxu0 0.0
    %1069 = vmatprep.subr.mxu0 0.0
    %1070 = vmatpush1.msra.mxu0 0.0
    %1071 = vmatprep.subr.mxu0 0.0
    %1072 = vmatpush1.msra.mxu0 0.0
    %1073 = vmatprep.subr.mxu0 0.0
    %1074 = vmatpush1.msra.mxu0 0.0
    %1075 = vmatprep.subr.mxu0 0.0
    %1076 = vmatpush1.msra.mxu0 0.0
    %1077 = vmatprep.subr.mxu0 0.0
    %1078 = vmatpush1.msra.mxu0 %v715
    %1079 = vmatprep.subr.mxu0 0.0
    %1080 = vmatpush1.msra.mxu0 %v714
    %1081 = vmatprep.subr.mxu0 0.0
    %1082 = vmatpush1.msra.mxu0 %v713
    %1083 = vmatprep.subr.mxu0 0.0
    %1084 = vmatpush1.msra.mxu0 %v712
    %1085 = vmatprep.subr.mxu0 0.0
    %1086 = vmatpush1.msra.mxu0 %v711
    %1087 = vmatprep.subr.mxu0 0.0
    %1088 = vmatpush1.msra.mxu0 %v710
    %1089 = vmatprep.subr.mxu0 0.0
    %1090 = vmatpush1.msra.mxu0 %v709
    %1091 = vmatprep.subr.mxu0 0.0
    %1092 = vmatpush1.msra.mxu0 %v708
    %1093 = vmatprep.subr.mxu0 0.0
    %1094 = vmatpush2.msra.mxu0 0.0
    %1095 = vmatprep.subr.mxu0 0.0
    %1096 = vmatpush2.msra.mxu0 0.0
    %1097 = vmatprep.subr.mxu0 0.0
    %1098 = vmatpush2.msra.mxu0 0.0
    %1099 = vmatprep.subr.mxu0 0.0
    %1100 = vmatpush2.msra.mxu0 0.0
    %1101 = vmatprep.subr.mxu0 0.0
    %1102 = vmatpush2.msra.mxu0 0.0
    %1103 = vmatprep.subr.mxu0 0.0
    %1104 = vmatpush2.msra.mxu0 0.0
    %1105 = vmatprep.subr.mxu0 0.0
    %1106 = vmatpush2.msra.mxu0 0.0
    %1107 = vmatprep.subr.mxu0 0.0
    %1108 = vmatpush2.msra.mxu0 0.0
    %1109 = vmatprep.subr.mxu0 0.0
    %1110 = vmatpush2.msra.mxu0 0.0
    %1111 = vmatprep.subr.mxu0 0.0
    %1112 = vmatpush2.msra.mxu0 0.0
    %1113 = vmatprep.subr.mxu0 0.0
    %1114 = vmatpush2.msra.mxu0 0.0
    %1115 = vmatprep.subr.mxu0 0.0
    %1116 = vmatpush2.msra.mxu0 0.0
    %1117 = vmatprep.subr.mxu0 0.0
    %1118 = vmatpush2.msra.mxu0 0.0
    %1119 = vmatprep.subr.mxu0 0.0
    %1120 = vmatpush2.msra.mxu0 0.0
    %1121 = vmatprep.subr.mxu0 0.0
    %1122 = vmatpush2.msra.mxu0 0.0
    %1123 = vmatprep.subr.mxu0 0.0
    %1124 = vmatpush2.msra.mxu0 0.0
    %1125 = vmatprep.mubr.f32.mxu0 0.0
    %1126 = vmatmul.mubr.f32.gmra.mxu0 %v724
    %v1127 = vpop.f32.mrf.mxu0
    %v1128 = vadd.f32 %v983, %v1127
    %v1129 = vpop.f32.mrf.mxu0
    %1130 = vmatprep.mubr.f32.mxu0 0.0
    %1131 = vmatmul.mubr.f32.gmra.mxu0 %v727
    %v1132 = vpop.f32.mrf.mxu0
    %v1133 = vadd.f32 %v988, %v1132
    %v1134 = vpop.f32.mrf.mxu0
    %1135 = vmatprep.mubr.f32.mxu0 0.0
    %1136 = vmatmul.mubr.f32.gmra.mxu0 %v730
    %v1137 = vpop.f32.mrf.mxu0
    %v1138 = vadd.f32 %v993, %v1137
    %v1139 = vpop.f32.mrf.mxu0
    %1140 = vmatprep.mubr.f32.mxu0 0.0
    %1141 = vmatmul.mubr.f32.gmra.mxu0 %v733
    %v1142 = vpop.f32.mrf.mxu0
    %v1143 = vadd.f32 %v998, %v1142
    %v1144 = vpop.f32.mrf.mxu0
    %1145 = vmatprep.mubr.f32.mxu0 0.0
    %1146 = vmatmul.mubr.f32.gmra.mxu0 %v736
    %v1147 = vpop.f32.mrf.mxu0
    %v1148 = vadd.f32 %v1003, %v1147
    %v1149 = vpop.f32.mrf.mxu0
    %1150 = vmatprep.mubr.f32.mxu0 0.0
    %1151 = vmatmul.mubr.f32.gmra.mxu0 %v739
    %v1152 = vpop.f32.mrf.mxu0
    %v1153 = vadd.f32 %v1008, %v1152
    %v1154 = vpop.f32.mrf.mxu0
    %1155 = vmatprep.mubr.f32.mxu0 0.0
    %1156 = vmatmul.mubr.f32.gmra.mxu0 %v742
    %v1157 = vpop.f32.mrf.mxu0
    %v1158 = vadd.f32 %v1013, %v1157
    %v1159 = vpop.f32.mrf.mxu0
    %1160 = vmatprep.mubr.f32.mxu0 0.0
    %1161 = vmatmul.mubr.f32.gmra.mxu0 %v745
    %v1162 = vpop.f32.mrf.mxu0
    %v1163 = vadd.f32 %v1018, %v1162
    %v1164 = vpop.f32.mrf.mxu0
    %1165 = vmatprep.mubr.f32.mxu0 0.0
    %1166 = vmatmul.mubr.f32.gmra.mxu0 %v748
    %v1167 = vpop.f32.mrf.mxu0
    %v1168 = vadd.f32 %v1023, %v1167
    %v1169 = vpop.f32.mrf.mxu0
    %1170 = vmatprep.mubr.f32.mxu0 0.0
    %1171 = vmatmul.mubr.f32.gmra.mxu0 %v751
    %v1172 = vpop.f32.mrf.mxu0
    %v1173 = vadd.f32 %v1028, %v1172
    %v1174 = vpop.f32.mrf.mxu0
    %1175 = vmatprep.mubr.f32.mxu0 0.0
    %1176 = vmatmul.mubr.f32.gmra.mxu0 %v754
    %v1177 = vpop.f32.mrf.mxu0
    %v1178 = vadd.f32 %v1033, %v1177
    %v1179 = vpop.f32.mrf.mxu0
    %1180 = vmatprep.mubr.f32.mxu0 0.0
    %1181 = vmatmul.mubr.f32.gmra.mxu0 %v757
    %v1182 = vpop.f32.mrf.mxu0
    %v1183 = vadd.f32 %v1038, %v1182
    %v1184 = vpop.f32.mrf.mxu0
    %1185 = vmatprep.mubr.f32.mxu0 0.0
    %1186 = vmatmul.mubr.f32.gmra.mxu0 %v760
    %v1187 = vpop.f32.mrf.mxu0
    %v1188 = vadd.f32 %v1043, %v1187
    %v1189 = vpop.f32.mrf.mxu0
    %1190 = vmatprep.mubr.f32.mxu0 0.0
    %1191 = vmatmul.mubr.f32.gmra.mxu0 %v763
    %v1192 = vpop.f32.mrf.mxu0
    %v1193 = vadd.f32 %v1048, %v1192
    %v1194 = vpop.f32.mrf.mxu0
    %1195 = vmatprep.mubr.f32.mxu0 0.0
    %1196 = vmatmul.mubr.f32.gmra.mxu0 %v766
    %v1197 = vpop.f32.mrf.mxu0
    %v1198 = vadd.f32 %v1053, %v1197
    %v1199 = vpop.f32.mrf.mxu0
    %1200 = vmatprep.mubr.f32.mxu0 0.0
    %1201 = vmatmul.mubr.f32.gmra.mxu0 %v769
    %v1202 = vpop.f32.mrf.mxu0
    %v1203 = vadd.f32 %v1058, %v1202
    %v1204 = vpop.f32.mrf.mxu0
    %1205 = vdwg.mxu0
    %v1206 = vmax.f32 %v1128, 0.0
    %v1207 = vmax.f32 %v1133, 0.0
    %v1208 = vmax.f32 %v1138, 0.0
    %v1209 = vmax.f32 %v1143, 0.0
    %v1210 = vmax.f32 %v1148, 0.0
    %v1211 = vmax.f32 %v1153, 0.0
    %v1212 = vmax.f32 %v1158, 0.0
    %v1213 = vmax.f32 %v1163, 0.0
    %v1214 = vmax.f32 %v1168, 0.0
    %v1215 = vmax.f32 %v1173, 0.0
    %v1216 = vmax.f32 %v1178, 0.0
    %v1217 = vmax.f32 %v1183, 0.0
    %v1218 = vmax.f32 %v1188, 0.0
    %v1219 = vmax.f32 %v1193, 0.0
    %v1220 = vmax.f32 %v1198, 0.0
    %v1221 = vmax.f32 %v1203, 0.0
    %1222 = vst.msk [vmem:[#allocation2] sm:$0xff] %vm64, 0.0
    %vm1223 = vcmask 517120
    %1224 = vst.msk [vmem:[#allocation2 + $0x8] sm:$0x3] %vm1223, 0.0
    %1225 = vst.msk [vmem:[#allocation2 + $0x10] sm:$0xff] %vm64, 0.0
    %1226 = vst.msk [vmem:[#allocation2 + $0x18] sm:$0x3] %vm1223, 0.0
    %1227 = vst.msk [vmem:[#allocation2 + $0x20] sm:$0xff] %vm64, 0.0
    %1228 = vst.msk [vmem:[#allocation2 + $0x28] sm:$0x3] %vm1223, 0.0
    %1229 = vst.msk [vmem:[#allocation2 + $0x30] sm:$0xff] %vm64, 0.0
    %1230 = vst.msk [vmem:[#allocation2 + $0x38] sm:$0x3] %vm1223, 0.0
    %1231 = vst.msk [vmem:[#allocation2 + $0x40] sm:$0xff] %vm64, 0.0
    %1232 = vst.msk [vmem:[#allocation2 + $0x48] sm:$0x3] %vm1223, 0.0
    %1233 = vst.msk [vmem:[#allocation2 + $0x50] sm:$0xff] %vm64, 0.0
    %1234 = vst.msk [vmem:[#allocation2 + $0x58] sm:$0x3] %vm1223, 0.0
    %1235 = vst.msk [vmem:[#allocation2 + $0x60] sm:$0xff] %vm64, 0.0
    %1236 = vst.msk [vmem:[#allocation2 + $0x68] sm:$0x3] %vm1223, 0.0
    %1237 = vst.msk [vmem:[#allocation2 + $0x70] sm:$0xff] %vm64, 0.0
    %1238 = vst.msk [vmem:[#allocation2 + $0x78] sm:$0x3] %vm1223, 0.0
    %1239 = vst.msk [vmem:[#allocation2 + $0x80] sm:$0xff] %vm64, 0.0
    %1240 = vst.msk [vmem:[#allocation2 + $0x88] sm:$0x3] %vm1223, 0.0
    %1241 = vst.msk [vmem:[#allocation2 + $0x90] sm:$0xff] %vm64, 0.0
    %1242 = vst.msk [vmem:[#allocation2 + $0x98] sm:$0x3] %vm1223, 0.0
    %1243 = vst.msk [vmem:[#allocation2 + $0xa0] sm:$0xff] %vm64, 0.0
    %1244 = vst.msk [vmem:[#allocation2 + $0xa8] sm:$0x3] %vm1223, 0.0
    %1245 = vst.msk [vmem:[#allocation2 + $0xb0] sm:$0xff] %vm64, 0.0
    %1246 = vst.msk [vmem:[#allocation2 + $0xb8] sm:$0x3] %vm1223, 0.0
    %1247 = vst.msk [vmem:[#allocation2 + $0xc0] sm:$0xff] %vm64, 0.0
    %1248 = vst.msk [vmem:[#allocation2 + $0xc8] sm:$0x3] %vm1223, 0.0
    %1249 = vst.msk [vmem:[#allocation2 + $0xd0] sm:$0xff] %vm64, 0.0
    %1250 = vst.msk [vmem:[#allocation2 + $0xd8] sm:$0x3] %vm1223, 0.0
    %1251 = vst.msk [vmem:[#allocation2 + $0xe0] sm:$0xff] %vm64, 0.0
    %1252 = vst.msk [vmem:[#allocation2 + $0xe8] sm:$0x3] %vm1223, 0.0
    %1253 = vst.msk [vmem:[#allocation2 + $0xf0] sm:$0xff] %vm64, 0.0
    %1254 = vst.msk [vmem:[#allocation2 + $0xf8] sm:$0x3] %vm1223, 0.0
    %1255 = vst.msk [vmem:[#allocation2 + $0x100] sm:$0xff] %vm64, 0.0
    %1256 = vst.msk [vmem:[#allocation2 + $0x108] sm:$0x3] %vm1223, 0.0
    %1257 = vst.msk [vmem:[#allocation2 + $0x110] sm:$0xff] %vm64, 0.0
    %1258 = vst.msk [vmem:[#allocation2 + $0x118] sm:$0x3] %vm1223, 0.0
    %1259 = vst.msk [vmem:[#allocation2 + $0x120] sm:$0xff] %vm64, 0.0
    %1260 = vst.msk [vmem:[#allocation2 + $0x128] sm:$0x3] %vm1223, 0.0
    %1261 = vst.msk [vmem:[#allocation2 + $0x130] sm:$0xff] %vm64, 0.0
    %1262 = vst.msk [vmem:[#allocation2 + $0x138] sm:$0x3] %vm1223, 0.0
    %s1263 = scalar_lea.vmem [#allocation2], 16
    %1264 = vst.msk [vmem:[%s1263 + $0x1] sm:$0xff] %vm64, %v1206
    %1265 = vst.msk [vmem:[%s1263 + $0x11] sm:$0xff] %vm64, %v1207
    %1266 = vst.msk [vmem:[%s1263 + $0x21] sm:$0xff] %vm64, %v1208
    %1267 = vst.msk [vmem:[%s1263 + $0x31] sm:$0xff] %vm64, %v1209
    %1268 = vst.msk [vmem:[%s1263 + $0x41] sm:$0xff] %vm64, %v1210
    %1269 = vst.msk [vmem:[%s1263 + $0x51] sm:$0xff] %vm64, %v1211
    %1270 = vst.msk [vmem:[%s1263 + $0x61] sm:$0xff] %vm64, %v1212
    %1271 = vst.msk [vmem:[%s1263 + $0x71] sm:$0xff] %vm64, %v1213
    %1272 = vst.msk [vmem:[%s1263 + $0xa1] sm:$0xff] %vm64, %v1214
    %1273 = vst.msk [vmem:[%s1263 + $0xb1] sm:$0xff] %vm64, %v1215
    %1274 = vst.msk [vmem:[%s1263 + $0xc1] sm:$0xff] %vm64, %v1216
    %1275 = vst.msk [vmem:[%s1263 + $0xd1] sm:$0xff] %vm64, %v1217
    %1276 = vst.msk [vmem:[%s1263 + $0xe1] sm:$0xff] %vm64, %v1218
    %1277 = vst.msk [vmem:[%s1263 + $0xf1] sm:$0xff] %vm64, %v1219
    %1278 = vst.msk [vmem:[%s1263 + $0x101] sm:$0xff] %vm64, %v1220
    %1279 = vst.msk [vmem:[%s1263 + $0x111] sm:$0xff] %vm64, %v1221
    %v1280 = vld [vmem:[#allocation2] sm:$0xff]
    %v1281 = vld [vmem:[#allocation2 + $0x8] sm:$0x3]
    %v1282 = vld [vmem:[#allocation2 + $0x10] sm:$0xff]
    %v1283 = vld [vmem:[#allocation2 + $0x18] sm:$0x3]
    %v1284 = vld [vmem:[#allocation2 + $0x20] sm:$0xff]
    %v1285 = vld [vmem:[#allocation2 + $0x28] sm:$0x3]
    %v1286 = vld [vmem:[#allocation2 + $0x30] sm:$0xff]
    %v1287 = vld [vmem:[#allocation2 + $0x38] sm:$0x3]
    %v1288 = vld [vmem:[#allocation2 + $0x40] sm:$0xff]
    %v1289 = vld [vmem:[#allocation2 + $0x48] sm:$0x3]
    %v1290 = vld [vmem:[#allocation2 + $0x50] sm:$0xff]
    %v1291 = vld [vmem:[#allocation2 + $0x58] sm:$0x3]
    %v1292 = vld [vmem:[#allocation2 + $0x60] sm:$0xff]
    %v1293 = vld [vmem:[#allocation2 + $0x68] sm:$0x3]
    %v1294 = vld [vmem:[#allocation2 + $0x70] sm:$0xff]
    %v1295 = vld [vmem:[#allocation2 + $0x78] sm:$0x3]
    %v1296 = vld [vmem:[#allocation2 + $0x80] sm:$0xff]
    %v1297 = vld [vmem:[#allocation2 + $0x88] sm:$0x3]
    %v1298 = vld [vmem:[#allocation2 + $0x90] sm:$0xff]
    %v1299 = vld [vmem:[#allocation2 + $0x98] sm:$0x3]
    %v1300 = vld [vmem:[#allocation2 + $0xa0] sm:$0xff]
    %v1301 = vld [vmem:[#allocation2 + $0xa8] sm:$0x3]
    %v1302 = vld [vmem:[#allocation2 + $0xb0] sm:$0xff]
    %v1303 = vld [vmem:[#allocation2 + $0xb8] sm:$0x3]
    %v1304 = vld [vmem:[#allocation2 + $0xc0] sm:$0xff]
    %v1305 = vld [vmem:[#allocation2 + $0xc8] sm:$0x3]
    %v1306 = vld [vmem:[#allocation2 + $0xd0] sm:$0xff]
    %v1307 = vld [vmem:[#allocation2 + $0xd8] sm:$0x3]
    %v1308 = vld [vmem:[#allocation2 + $0xe0] sm:$0xff]
    %v1309 = vld [vmem:[#allocation2 + $0xe8] sm:$0x3]
    %v1310 = vld [vmem:[#allocation2 + $0xf0] sm:$0xff]
    %v1311 = vld [vmem:[#allocation2 + $0xf8] sm:$0x3]
    %v1312 = vld [vmem:[#allocation2 + $0x100] sm:$0xff]
    %v1313 = vld [vmem:[#allocation2 + $0x108] sm:$0x3]
    %v1314 = vld [vmem:[#allocation2 + $0x110] sm:$0xff]
    %v1315 = vld [vmem:[#allocation2 + $0x118] sm:$0x3]
    %v1316 = vld [vmem:[#allocation2 + $0x120] sm:$0xff]
    %v1317 = vld [vmem:[#allocation2 + $0x128] sm:$0x3]
    %v1318 = vld [vmem:[#allocation2 + $0x130] sm:$0xff]
    %v1319 = vld [vmem:[#allocation2 + $0x138] sm:$0x3]
    %1320 = vst.msk [vmem:[#allocation4] sm:$0xff] %vm64, %v1280
    %1321 = vst.msk [vmem:[#allocation4 + $0x28] sm:$0xff] %vm64, %v1282
    %1322 = vst.msk [vmem:[#allocation4 + $0x50] sm:$0xff] %vm64, %v1284
    %1323 = vst.msk [vmem:[#allocation4 + $0x78] sm:$0xff] %vm64, %v1286
    %1324 = vst.msk [vmem:[#allocation4 + $0xa0] sm:$0xff] %vm64, %v1288
    %1325 = vst.msk [vmem:[#allocation4 + $0xc8] sm:$0xff] %vm64, %v1290
    %1326 = vst.msk [vmem:[#allocation4 + $0xf0] sm:$0xff] %vm64, %v1292
    %1327 = vst.msk [vmem:[#allocation4 + $0x118] sm:$0xff] %vm64, %v1294
    %1328 = vst.msk [vmem:[#allocation4 + $0x140] sm:$0xff] %vm64, %v1300
    %1329 = vst.msk [vmem:[#allocation4 + $0x168] sm:$0xff] %vm64, %v1302
    %1330 = vst.msk [vmem:[#allocation4 + $0x190] sm:$0xff] %vm64, %v1304
    %1331 = vst.msk [vmem:[#allocation4 + $0x1b8] sm:$0xff] %vm64, %v1306
    %1332 = vst.msk [vmem:[#allocation4 + $0x1e0] sm:$0xff] %vm64, %v1308
    %1333 = vst.msk [vmem:[#allocation4 + $0x208] sm:$0xff] %vm64, %v1310
    %1334 = vst.msk [vmem:[#allocation4 + $0x230] sm:$0xff] %vm64, %v1312
    %1335 = vst.msk [vmem:[#allocation4 + $0x258] sm:$0xff] %vm64, %v1314
    %v1368 = vrot.slane %v1280, 1
    %v1369 = vrot.slane %v1281, 1
    %v1370 = vsel %vm113, %v1368, %v1369
    %v1371 = vrot.slane %v1282, 1
    %v1372 = vrot.slane %v1283, 1
    %v1373 = vsel %vm113, %v1371, %v1372
    %v1374 = vrot.slane %v1284, 1
    %v1375 = vrot.slane %v1285, 1
    %v1376 = vsel %vm113, %v1374, %v1375
    %v1377 = vrot.slane %v1286, 1
    %v1378 = vrot.slane %v1287, 1
    %v1379 = vsel %vm113, %v1377, %v1378
    %v1380 = vrot.slane %v1288, 1
    %v1381 = vrot.slane %v1289, 1
    %v1382 = vsel %vm113, %v1380, %v1381
    %v1383 = vrot.slane %v1290, 1
    %v1384 = vrot.slane %v1291, 1
    %v1385 = vsel %vm113, %v1383, %v1384
    %v1386 = vrot.slane %v1292, 1
    %v1387 = vrot.slane %v1293, 1
    %v1388 = vsel %vm113, %v1386, %v1387
    %v1389 = vrot.slane %v1294, 1
    %v1390 = vrot.slane %v1295, 1
    %v1391 = vsel %vm113, %v1389, %v1390
    %v1392 = vrot.slane %v1300, 1
    %v1393 = vrot.slane %v1301, 1
    %v1394 = vsel %vm113, %v1392, %v1393
    %v1395 = vrot.slane %v1302, 1
    %v1396 = vrot.slane %v1303, 1
    %v1397 = vsel %vm113, %v1395, %v1396
    %v1398 = vrot.slane %v1304, 1
    %v1399 = vrot.slane %v1305, 1
    %v1400 = vsel %vm113, %v1398, %v1399
    %v1401 = vrot.slane %v1306, 1
    %v1402 = vrot.slane %v1307, 1
    %v1403 = vsel %vm113, %v1401, %v1402
    %v1404 = vrot.slane %v1308, 1
    %v1405 = vrot.slane %v1309, 1
    %v1406 = vsel %vm113, %v1404, %v1405
    %v1407 = vrot.slane %v1310, 1
    %v1408 = vrot.slane %v1311, 1
    %v1409 = vsel %vm113, %v1407, %v1408
    %v1410 = vrot.slane %v1312, 1
    %v1411 = vrot.slane %v1313, 1
    %v1412 = vsel %vm113, %v1410, %v1411
    %v1413 = vrot.slane %v1314, 1
    %v1414 = vrot.slane %v1315, 1
    %v1415 = vsel %vm113, %v1413, %v1414
    %1416 = vrot.lane.b32.xlu0 %v1370, 64
    %v1417 = vpop.permute.xlu0 %1416
    %1418 = vrot.lane.b32.xlu0 %v1373, 64
    %v1419 = vpop.permute.xlu0 %1418
    %1420 = vrot.lane.b32.xlu0 %v1376, 64
    %v1421 = vpop.permute.xlu0 %1420
    %1422 = vrot.lane.b32.xlu0 %v1379, 64
    %v1423 = vpop.permute.xlu0 %1422
    %1424 = vrot.lane.b32.xlu0 %v1382, 64
    %v1425 = vpop.permute.xlu0 %1424
    %1426 = vrot.lane.b32.xlu0 %v1385, 64
    %v1427 = vpop.permute.xlu0 %1426
    %1428 = vrot.lane.b32.xlu0 %v1388, 64
    %v1429 = vpop.permute.xlu0 %1428
    %1430 = vrot.lane.b32.xlu0 %v1391, 64
    %v1431 = vpop.permute.xlu0 %1430
    %1432 = vrot.lane.b32.xlu0 %v1394, 64
    %v1433 = vpop.permute.xlu0 %1432
    %1434 = vrot.lane.b32.xlu0 %v1397, 64
    %v1435 = vpop.permute.xlu0 %1434
    %1436 = vrot.lane.b32.xlu0 %v1400, 64
    %v1437 = vpop.permute.xlu0 %1436
    %1438 = vrot.lane.b32.xlu0 %v1403, 64
    %v1439 = vpop.permute.xlu0 %1438
    %1440 = vrot.lane.b32.xlu0 %v1406, 64
    %v1441 = vpop.permute.xlu0 %1440
    %1442 = vrot.lane.b32.xlu0 %v1409, 64
    %v1443 = vpop.permute.xlu0 %1442
    %1444 = vrot.lane.b32.xlu0 %v1412, 64
    %v1445 = vpop.permute.xlu0 %1444
    %1446 = vrot.lane.b32.xlu0 %v1415, 64
    %v1447 = vpop.permute.xlu0 %1446
    %1464 = vst.msk [vmem:[#allocation4] sm:$0xff] %vm210, %v1417
    %1465 = vst.msk [vmem:[#allocation4 + $0x28] sm:$0xff] %vm210, %v1419
    %1466 = vst.msk [vmem:[#allocation4 + $0x50] sm:$0xff] %vm210, %v1421
    %1467 = vst.msk [vmem:[#allocation4 + $0x78] sm:$0xff] %vm210, %v1423
    %1468 = vst.msk [vmem:[#allocation4 + $0xa0] sm:$0xff] %vm210, %v1425
    %1469 = vst.msk [vmem:[#allocation4 + $0xc8] sm:$0xff] %vm210, %v1427
    %1470 = vst.msk [vmem:[#allocation4 + $0xf0] sm:$0xff] %vm210, %v1429
    %1471 = vst.msk [vmem:[#allocation4 + $0x118] sm:$0xff] %vm210, %v1431
    %1472 = vst.msk [vmem:[#allocation4 + $0x140] sm:$0xff] %vm210, %v1433
    %1473 = vst.msk [vmem:[#allocation4 + $0x168] sm:$0xff] %vm210, %v1435
    %1474 = vst.msk [vmem:[#allocation4 + $0x190] sm:$0xff] %vm210, %v1437
    %1475 = vst.msk [vmem:[#allocation4 + $0x1b8] sm:$0xff] %vm210, %v1439
    %1476 = vst.msk [vmem:[#allocation4 + $0x1e0] sm:$0xff] %vm210, %v1441
    %1477 = vst.msk [vmem:[#allocation4 + $0x208] sm:$0xff] %vm210, %v1443
    %1478 = vst.msk [vmem:[#allocation4 + $0x230] sm:$0xff] %vm210, %v1445
    %1479 = vst.msk [vmem:[#allocation4 + $0x258] sm:$0xff] %vm210, %v1447
    %v1480 = vrot.slane %v1280, 2
    %v1481 = vrot.slane %v1281, 2
    %v1482 = vsel %vm227, %v1480, %v1481
    %v1483 = vrot.slane %v1282, 2
    %v1484 = vrot.slane %v1283, 2
    %v1485 = vsel %vm227, %v1483, %v1484
    %v1486 = vrot.slane %v1284, 2
    %v1487 = vrot.slane %v1285, 2
    %v1488 = vsel %vm227, %v1486, %v1487
    %v1489 = vrot.slane %v1286, 2
    %v1490 = vrot.slane %v1287, 2
    %v1491 = vsel %vm227, %v1489, %v1490
    %v1492 = vrot.slane %v1288, 2
    %v1493 = vrot.slane %v1289, 2
    %v1494 = vsel %vm227, %v1492, %v1493
    %v1495 = vrot.slane %v1290, 2
    %v1496 = vrot.slane %v1291, 2
    %v1497 = vsel %vm227, %v1495, %v1496
    %v1498 = vrot.slane %v1292, 2
    %v1499 = vrot.slane %v1293, 2
    %v1500 = vsel %vm227, %v1498, %v1499
    %v1501 = vrot.slane %v1294, 2
    %v1502 = vrot.slane %v1295, 2
    %v1503 = vsel %vm227, %v1501, %v1502
    %v1504 = vrot.slane %v1300, 2
    %v1505 = vrot.slane %v1301, 2
    %v1506 = vsel %vm227, %v1504, %v1505
    %v1507 = vrot.slane %v1302, 2
    %v1508 = vrot.slane %v1303, 2
    %v1509 = vsel %vm227, %v1507, %v1508
    %v1510 = vrot.slane %v1304, 2
    %v1511 = vrot.slane %v1305, 2
    %v1512 = vsel %vm227, %v1510, %v1511
    %v1513 = vrot.slane %v1306, 2
    %v1514 = vrot.slane %v1307, 2
    %v1515 = vsel %vm227, %v1513, %v1514
    %v1516 = vrot.slane %v1308, 2
    %v1517 = vrot.slane %v1309, 2
    %v1518 = vsel %vm227, %v1516, %v1517
    %v1519 = vrot.slane %v1310, 2
    %v1520 = vrot.slane %v1311, 2
    %v1521 = vsel %vm227, %v1519, %v1520
    %v1522 = vrot.slane %v1312, 2
    %v1523 = vrot.slane %v1313, 2
    %v1524 = vsel %vm227, %v1522, %v1523
    %v1525 = vrot.slane %v1314, 2
    %v1526 = vrot.slane %v1315, 2
    %v1527 = vsel %vm227, %v1525, %v1526
    %1544 = vst.msk [vmem:[#allocation4 + $0x8] sm:$0xff] %vm64, %v1482
    %1545 = vst.msk [vmem:[#allocation4 + $0x30] sm:$0xff] %vm64, %v1485
    %1546 = vst.msk [vmem:[#allocation4 + $0x58] sm:$0xff] %vm64, %v1488
    %1547 = vst.msk [vmem:[#allocation4 + $0x80] sm:$0xff] %vm64, %v1491
    %1548 = vst.msk [vmem:[#allocation4 + $0xa8] sm:$0xff] %vm64, %v1494
    %1549 = vst.msk [vmem:[#allocation4 + $0xd0] sm:$0xff] %vm64, %v1497
    %1550 = vst.msk [vmem:[#allocation4 + $0xf8] sm:$0xff] %vm64, %v1500
    %1551 = vst.msk [vmem:[#allocation4 + $0x120] sm:$0xff] %vm64, %v1503
    %1552 = vst.msk [vmem:[#allocation4 + $0x148] sm:$0xff] %vm64, %v1506
    %1553 = vst.msk [vmem:[#allocation4 + $0x170] sm:$0xff] %vm64, %v1509
    %1554 = vst.msk [vmem:[#allocation4 + $0x198] sm:$0xff] %vm64, %v1512
    %1555 = vst.msk [vmem:[#allocation4 + $0x1c0] sm:$0xff] %vm64, %v1515
    %1556 = vst.msk [vmem:[#allocation4 + $0x1e8] sm:$0xff] %vm64, %v1518
    %1557 = vst.msk [vmem:[#allocation4 + $0x210] sm:$0xff] %vm64, %v1521
    %1558 = vst.msk [vmem:[#allocation4 + $0x238] sm:$0xff] %vm64, %v1524
    %1559 = vst.msk [vmem:[#allocation4 + $0x260] sm:$0xff] %vm64, %v1527
    %1562 = vrot.lane.b32.xlu0 %v1282, 64
    %v1563 = vpop.permute.xlu0 %1562
    %1564 = vrot.lane.b32.xlu0 %v1284, 64
    %v1565 = vpop.permute.xlu0 %1564
    %1566 = vrot.lane.b32.xlu0 %v1286, 64
    %v1567 = vpop.permute.xlu0 %1566
    %1568 = vrot.lane.b32.xlu0 %v1288, 64
    %v1569 = vpop.permute.xlu0 %1568
    %1570 = vrot.lane.b32.xlu0 %v1290, 64
    %v1571 = vpop.permute.xlu0 %1570
    %1572 = vrot.lane.b32.xlu0 %v1292, 64
    %v1573 = vpop.permute.xlu0 %1572
    %1574 = vrot.lane.b32.xlu0 %v1294, 64
    %v1575 = vpop.permute.xlu0 %1574
    %1576 = vrot.lane.b32.xlu0 %v1296, 64
    %v1577 = vpop.permute.xlu0 %1576
    %1578 = vrot.lane.b32.xlu0 %v1302, 64
    %v1579 = vpop.permute.xlu0 %1578
    %1580 = vrot.lane.b32.xlu0 %v1304, 64
    %v1581 = vpop.permute.xlu0 %1580
    %1582 = vrot.lane.b32.xlu0 %v1306, 64
    %v1583 = vpop.permute.xlu0 %1582
    %1584 = vrot.lane.b32.xlu0 %v1308, 64
    %v1585 = vpop.permute.xlu0 %1584
    %1586 = vrot.lane.b32.xlu0 %v1310, 64
    %v1587 = vpop.permute.xlu0 %1586
    %1588 = vrot.lane.b32.xlu0 %v1312, 64
    %v1589 = vpop.permute.xlu0 %1588
    %1590 = vrot.lane.b32.xlu0 %v1314, 64
    %v1591 = vpop.permute.xlu0 %1590
    %1592 = vrot.lane.b32.xlu0 %v1316, 64
    %v1593 = vpop.permute.xlu0 %1592
    %1610 = vst.msk [vmem:[#allocation4 + $0x8] sm:$0xff] %vm210, %v1563
    %1611 = vst.msk [vmem:[#allocation4 + $0x30] sm:$0xff] %vm210, %v1565
    %1612 = vst.msk [vmem:[#allocation4 + $0x58] sm:$0xff] %vm210, %v1567
    %1613 = vst.msk [vmem:[#allocation4 + $0x80] sm:$0xff] %vm210, %v1569
    %1614 = vst.msk [vmem:[#allocation4 + $0xa8] sm:$0xff] %vm210, %v1571
    %1615 = vst.msk [vmem:[#allocation4 + $0xd0] sm:$0xff] %vm210, %v1573
    %1616 = vst.msk [vmem:[#allocation4 + $0xf8] sm:$0xff] %vm210, %v1575
    %1617 = vst.msk [vmem:[#allocation4 + $0x120] sm:$0xff] %vm210, %v1577
    %1618 = vst.msk [vmem:[#allocation4 + $0x148] sm:$0xff] %vm210, %v1579
    %1619 = vst.msk [vmem:[#allocation4 + $0x170] sm:$0xff] %vm210, %v1581
    %1620 = vst.msk [vmem:[#allocation4 + $0x198] sm:$0xff] %vm210, %v1583
    %1621 = vst.msk [vmem:[#allocation4 + $0x1c0] sm:$0xff] %vm210, %v1585
    %1622 = vst.msk [vmem:[#allocation4 + $0x1e8] sm:$0xff] %vm210, %v1587
    %1623 = vst.msk [vmem:[#allocation4 + $0x210] sm:$0xff] %vm210, %v1589
    %1624 = vst.msk [vmem:[#allocation4 + $0x238] sm:$0xff] %vm210, %v1591
    %1625 = vst.msk [vmem:[#allocation4 + $0x260] sm:$0xff] %vm210, %v1593
    %v1628 = vrot.slane %v1296, 1
    %v1629 = vrot.slane %v1297, 1
    %v1630 = vsel %vm113, %v1628, %v1629
    %v1631 = vrot.slane %v1316, 1
    %v1632 = vrot.slane %v1317, 1
    %v1633 = vsel %vm113, %v1631, %v1632
    %1650 = vst.msk [vmem:[#allocation4 + $0x10] sm:$0xff] %vm64, %v1373
    %1651 = vst.msk [vmem:[#allocation4 + $0x38] sm:$0xff] %vm64, %v1376
    %1652 = vst.msk [vmem:[#allocation4 + $0x60] sm:$0xff] %vm64, %v1379
    %1653 = vst.msk [vmem:[#allocation4 + $0x88] sm:$0xff] %vm64, %v1382
    %1654 = vst.msk [vmem:[#allocation4 + $0xb0] sm:$0xff] %vm64, %v1385
    %1655 = vst.msk [vmem:[#allocation4 + $0xd8] sm:$0xff] %vm64, %v1388
    %1656 = vst.msk [vmem:[#allocation4 + $0x100] sm:$0xff] %vm64, %v1391
    %1657 = vst.msk [vmem:[#allocation4 + $0x128] sm:$0xff] %vm64, %v1630
    %1658 = vst.msk [vmem:[#allocation4 + $0x150] sm:$0xff] %vm64, %v1397
    %1659 = vst.msk [vmem:[#allocation4 + $0x178] sm:$0xff] %vm64, %v1400
    %1660 = vst.msk [vmem:[#allocation4 + $0x1a0] sm:$0xff] %vm64, %v1403
    %1661 = vst.msk [vmem:[#allocation4 + $0x1c8] sm:$0xff] %vm64, %v1406
    %1662 = vst.msk [vmem:[#allocation4 + $0x1f0] sm:$0xff] %vm64, %v1409
    %1663 = vst.msk [vmem:[#allocation4 + $0x218] sm:$0xff] %vm64, %v1412
    %1664 = vst.msk [vmem:[#allocation4 + $0x240] sm:$0xff] %vm64, %v1415
    %1665 = vst.msk [vmem:[#allocation4 + $0x268] sm:$0xff] %vm64, %v1633
    %v1666 = vrot.slane %v1296, 2
    %v1667 = vrot.slane %v1297, 2
    %v1668 = vsel %vm227, %v1666, %v1667
    %v1669 = vrot.slane %v1316, 2
    %v1670 = vrot.slane %v1317, 2
    %v1671 = vsel %vm227, %v1669, %v1670
    %1672 = vrot.lane.b32.xlu0 %v1485, 64
    %v1673 = vpop.permute.xlu0 %1672
    %1674 = vrot.lane.b32.xlu0 %v1488, 64
    %v1675 = vpop.permute.xlu0 %1674
    %1676 = vrot.lane.b32.xlu0 %v1491, 64
    %v1677 = vpop.permute.xlu0 %1676
    %1678 = vrot.lane.b32.xlu0 %v1494, 64
    %v1679 = vpop.permute.xlu0 %1678
    %1680 = vrot.lane.b32.xlu0 %v1497, 64
    %v1681 = vpop.permute.xlu0 %1680
    %1682 = vrot.lane.b32.xlu0 %v1500, 64
    %v1683 = vpop.permute.xlu0 %1682
    %1684 = vrot.lane.b32.xlu0 %v1503, 64
    %v1685 = vpop.permute.xlu0 %1684
    %1686 = vrot.lane.b32.xlu0 %v1668, 64
    %v1687 = vpop.permute.xlu0 %1686
    %1688 = vrot.lane.b32.xlu0 %v1509, 64
    %v1689 = vpop.permute.xlu0 %1688
    %1690 = vrot.lane.b32.xlu0 %v1512, 64
    %v1691 = vpop.permute.xlu0 %1690
    %1692 = vrot.lane.b32.xlu0 %v1515, 64
    %v1693 = vpop.permute.xlu0 %1692
    %1694 = vrot.lane.b32.xlu0 %v1518, 64
    %v1695 = vpop.permute.xlu0 %1694
    %1696 = vrot.lane.b32.xlu0 %v1521, 64
    %v1697 = vpop.permute.xlu0 %1696
    %1698 = vrot.lane.b32.xlu0 %v1524, 64
    %v1699 = vpop.permute.xlu0 %1698
    %1700 = vrot.lane.b32.xlu0 %v1527, 64
    %v1701 = vpop.permute.xlu0 %1700
    %1702 = vrot.lane.b32.xlu0 %v1671, 64
    %v1703 = vpop.permute.xlu0 %1702
    %1720 = vst.msk [vmem:[#allocation4 + $0x10] sm:$0xff] %vm210, %v1673
    %1721 = vst.msk [vmem:[#allocation4 + $0x38] sm:$0xff] %vm210, %v1675
    %1722 = vst.msk [vmem:[#allocation4 + $0x60] sm:$0xff] %vm210, %v1677
    %1723 = vst.msk [vmem:[#allocation4 + $0x88] sm:$0xff] %vm210, %v1679
    %1724 = vst.msk [vmem:[#allocation4 + $0xb0] sm:$0xff] %vm210, %v1681
    %1725 = vst.msk [vmem:[#allocation4 + $0xd8] sm:$0xff] %vm210, %v1683
    %1726 = vst.msk [vmem:[#allocation4 + $0x100] sm:$0xff] %vm210, %v1685
    %1727 = vst.msk [vmem:[#allocation4 + $0x128] sm:$0xff] %vm210, %v1687
    %1728 = vst.msk [vmem:[#allocation4 + $0x150] sm:$0xff] %vm210, %v1689
    %1729 = vst.msk [vmem:[#allocation4 + $0x178] sm:$0xff] %vm210, %v1691
    %1730 = vst.msk [vmem:[#allocation4 + $0x1a0] sm:$0xff] %vm210, %v1693
    %1731 = vst.msk [vmem:[#allocation4 + $0x1c8] sm:$0xff] %vm210, %v1695
    %1732 = vst.msk [vmem:[#allocation4 + $0x1f0] sm:$0xff] %vm210, %v1697
    %1733 = vst.msk [vmem:[#allocation4 + $0x218] sm:$0xff] %vm210, %v1699
    %1734 = vst.msk [vmem:[#allocation4 + $0x240] sm:$0xff] %vm210, %v1701
    %1735 = vst.msk [vmem:[#allocation4 + $0x268] sm:$0xff] %vm210, %v1703
    %1736 = vst.msk [vmem:[#allocation4 + $0x18] sm:$0xff] %vm64, %v1284
    %1737 = vst.msk [vmem:[#allocation4 + $0x40] sm:$0xff] %vm64, %v1286
    %1738 = vst.msk [vmem:[#allocation4 + $0x68] sm:$0xff] %vm64, %v1288
    %1739 = vst.msk [vmem:[#allocation4 + $0x90] sm:$0xff] %vm64, %v1290
    %1740 = vst.msk [vmem:[#allocation4 + $0xb8] sm:$0xff] %vm64, %v1292
    %1741 = vst.msk [vmem:[#allocation4 + $0xe0] sm:$0xff] %vm64, %v1294
    %1742 = vst.msk [vmem:[#allocation4 + $0x108] sm:$0xff] %vm64, %v1296
    %1743 = vst.msk [vmem:[#allocation4 + $0x130] sm:$0xff] %vm64, %v1298
    %1744 = vst.msk [vmem:[#allocation4 + $0x158] sm:$0xff] %vm64, %v1304
    %1745 = vst.msk [vmem:[#allocation4 + $0x180] sm:$0xff] %vm64, %v1306
    %1746 = vst.msk [vmem:[#allocation4 + $0x1a8] sm:$0xff] %vm64, %v1308
    %1747 = vst.msk [vmem:[#allocation4 + $0x1d0] sm:$0xff] %vm64, %v1310
    %1748 = vst.msk [vmem:[#allocation4 + $0x1f8] sm:$0xff] %vm64, %v1312
    %1749 = vst.msk [vmem:[#allocation4 + $0x220] sm:$0xff] %vm64, %v1314
    %1750 = vst.msk [vmem:[#allocation4 + $0x248] sm:$0xff] %vm64, %v1316
    %1751 = vst.msk [vmem:[#allocation4 + $0x270] sm:$0xff] %vm64, %v1318
    %v1756 = vrot.slane %v1298, 1
    %v1757 = vrot.slane %v1299, 1
    %v1758 = vsel %vm113, %v1756, %v1757
    %v1759 = vrot.slane %v1318, 1
    %v1760 = vrot.slane %v1319, 1
    %v1761 = vsel %vm113, %v1759, %v1760
    %1762 = vrot.lane.b32.xlu0 %v1630, 64
    %v1763 = vpop.permute.xlu0 %1762
    %1764 = vrot.lane.b32.xlu0 %v1758, 64
    %v1765 = vpop.permute.xlu0 %1764
    %1766 = vrot.lane.b32.xlu0 %v1633, 64
    %v1767 = vpop.permute.xlu0 %1766
    %1768 = vrot.lane.b32.xlu0 %v1761, 64
    %v1769 = vpop.permute.xlu0 %1768
    %1774 = vst.msk [vmem:[#allocation4 + $0x18] sm:$0xff] %vm210, %v1421
    %1775 = vst.msk [vmem:[#allocation4 + $0x40] sm:$0xff] %vm210, %v1423
    %1776 = vst.msk [vmem:[#allocation4 + $0x68] sm:$0xff] %vm210, %v1425
    %1777 = vst.msk [vmem:[#allocation4 + $0x90] sm:$0xff] %vm210, %v1427
    %1778 = vst.msk [vmem:[#allocation4 + $0xb8] sm:$0xff] %vm210, %v1429
    %1779 = vst.msk [vmem:[#allocation4 + $0xe0] sm:$0xff] %vm210, %v1431
    %1780 = vst.msk [vmem:[#allocation4 + $0x108] sm:$0xff] %vm210, %v1763
    %1781 = vst.msk [vmem:[#allocation4 + $0x130] sm:$0xff] %vm210, %v1765
    %1782 = vst.msk [vmem:[#allocation4 + $0x158] sm:$0xff] %vm210, %v1437
    %1783 = vst.msk [vmem:[#allocation4 + $0x180] sm:$0xff] %vm210, %v1439
    %1784 = vst.msk [vmem:[#allocation4 + $0x1a8] sm:$0xff] %vm210, %v1441
    %1785 = vst.msk [vmem:[#allocation4 + $0x1d0] sm:$0xff] %vm210, %v1443
    %1786 = vst.msk [vmem:[#allocation4 + $0x1f8] sm:$0xff] %vm210, %v1445
    %1787 = vst.msk [vmem:[#allocation4 + $0x220] sm:$0xff] %vm210, %v1447
    %1788 = vst.msk [vmem:[#allocation4 + $0x248] sm:$0xff] %vm210, %v1767
    %1789 = vst.msk [vmem:[#allocation4 + $0x270] sm:$0xff] %vm210, %v1769
    %v1790 = vrot.slane %v1298, 2
    %v1791 = vrot.slane %v1299, 2
    %v1792 = vsel %vm227, %v1790, %v1791
    %v1793 = vrot.slane %v1318, 2
    %v1794 = vrot.slane %v1319, 2
    %v1795 = vsel %vm227, %v1793, %v1794
    %1800 = vst.msk [vmem:[#allocation4 + $0x20] sm:$0xff] %vm64, %v1488
    %1801 = vst.msk [vmem:[#allocation4 + $0x48] sm:$0xff] %vm64, %v1491
    %1802 = vst.msk [vmem:[#allocation4 + $0x70] sm:$0xff] %vm64, %v1494
    %1803 = vst.msk [vmem:[#allocation4 + $0x98] sm:$0xff] %vm64, %v1497
    %1804 = vst.msk [vmem:[#allocation4 + $0xc0] sm:$0xff] %vm64, %v1500
    %1805 = vst.msk [vmem:[#allocation4 + $0xe8] sm:$0xff] %vm64, %v1503
    %1806 = vst.msk [vmem:[#allocation4 + $0x110] sm:$0xff] %vm64, %v1668
    %1807 = vst.msk [vmem:[#allocation4 + $0x138] sm:$0xff] %vm64, %v1792
    %1808 = vst.msk [vmem:[#allocation4 + $0x160] sm:$0xff] %vm64, %v1512
    %1809 = vst.msk [vmem:[#allocation4 + $0x188] sm:$0xff] %vm64, %v1515
    %1810 = vst.msk [vmem:[#allocation4 + $0x1b0] sm:$0xff] %vm64, %v1518
    %1811 = vst.msk [vmem:[#allocation4 + $0x1d8] sm:$0xff] %vm64, %v1521
    %1812 = vst.msk [vmem:[#allocation4 + $0x200] sm:$0xff] %vm64, %v1524
    %1813 = vst.msk [vmem:[#allocation4 + $0x228] sm:$0xff] %vm64, %v1527
    %1814 = vst.msk [vmem:[#allocation4 + $0x250] sm:$0xff] %vm64, %v1671
    %1815 = vst.msk [vmem:[#allocation4 + $0x278] sm:$0xff] %vm64, %v1795
    %v1816 = vld [vmem:[#allocation4] sm:$0xff]
    %v1817 = vld [vmem:[#allocation4 + $0x8] sm:$0xff]
    %v1818 = vld [vmem:[#allocation4 + $0x10] sm:$0xff]
    %v1819 = vld [vmem:[#allocation4 + $0x18] sm:$0xff]
    %v1820 = vld [vmem:[#allocation4 + $0x20] sm:$0xff]
    %v1821 = vld [vmem:[#allocation4 + $0x28] sm:$0xff]
    %v1822 = vld [vmem:[#allocation4 + $0x30] sm:$0xff]
    %v1823 = vld [vmem:[#allocation4 + $0x38] sm:$0xff]
    %v1824 = vld [vmem:[#allocation4 + $0x40] sm:$0xff]
    %v1825 = vld [vmem:[#allocation4 + $0x48] sm:$0xff]
    %v1826 = vld [vmem:[#allocation4 + $0x50] sm:$0xff]
    %v1827 = vld [vmem:[#allocation4 + $0x58] sm:$0xff]
    %v1828 = vld [vmem:[#allocation4 + $0x60] sm:$0xff]
    %v1829 = vld [vmem:[#allocation4 + $0x68] sm:$0xff]
    %v1830 = vld [vmem:[#allocation4 + $0x70] sm:$0xff]
    %v1831 = vld [vmem:[#allocation4 + $0x78] sm:$0xff]
    %v1832 = vld [vmem:[#allocation4 + $0x80] sm:$0xff]
    %v1833 = vld [vmem:[#allocation4 + $0x88] sm:$0xff]
    %v1834 = vld [vmem:[#allocation4 + $0x90] sm:$0xff]
    %v1835 = vld [vmem:[#allocation4 + $0x98] sm:$0xff]
    %v1836 = vld [vmem:[#allocation4 + $0xa0] sm:$0xff]
    %v1837 = vld [vmem:[#allocation4 + $0xa8] sm:$0xff]
    %v1838 = vld [vmem:[#allocation4 + $0xb0] sm:$0xff]
    %v1839 = vld [vmem:[#allocation4 + $0xb8] sm:$0xff]
    %v1840 = vld [vmem:[#allocation4 + $0xc0] sm:$0xff]
    %v1841 = vld [vmem:[#allocation4 + $0xc8] sm:$0xff]
    %v1842 = vld [vmem:[#allocation4 + $0xd0] sm:$0xff]
    %v1843 = vld [vmem:[#allocation4 + $0xd8] sm:$0xff]
    %v1844 = vld [vmem:[#allocation4 + $0xe0] sm:$0xff]
    %v1845 = vld [vmem:[#allocation4 + $0xe8] sm:$0xff]
    %v1846 = vld [vmem:[#allocation4 + $0xf0] sm:$0xff]
    %v1847 = vld [vmem:[#allocation4 + $0xf8] sm:$0xff]
    %v1848 = vld [vmem:[#allocation4 + $0x100] sm:$0xff]
    %v1849 = vld [vmem:[#allocation4 + $0x108] sm:$0xff]
    %v1850 = vld [vmem:[#allocation4 + $0x110] sm:$0xff]
    %v1851 = vld [vmem:[#allocation4 + $0x118] sm:$0xff]
    %v1852 = vld [vmem:[#allocation4 + $0x120] sm:$0xff]
    %v1853 = vld [vmem:[#allocation4 + $0x128] sm:$0xff]
    %v1854 = vld [vmem:[#allocation4 + $0x130] sm:$0xff]
    %v1855 = vld [vmem:[#allocation4 + $0x138] sm:$0xff]
    %v1856 = vld [vmem:[#allocation4 + $0x140] sm:$0xff]
    %v1857 = vld [vmem:[#allocation4 + $0x148] sm:$0xff]
    %v1858 = vld [vmem:[#allocation4 + $0x150] sm:$0xff]
    %v1859 = vld [vmem:[#allocation4 + $0x158] sm:$0xff]
    %v1860 = vld [vmem:[#allocation4 + $0x160] sm:$0xff]
    %v1861 = vld [vmem:[#allocation4 + $0x168] sm:$0xff]
    %v1862 = vld [vmem:[#allocation4 + $0x170] sm:$0xff]
    %v1863 = vld [vmem:[#allocation4 + $0x178] sm:$0xff]
    %v1864 = vld [vmem:[#allocation4 + $0x180] sm:$0xff]
    %v1865 = vld [vmem:[#allocation4 + $0x188] sm:$0xff]
    %v1866 = vld [vmem:[#allocation4 + $0x190] sm:$0xff]
    %v1867 = vld [vmem:[#allocation4 + $0x198] sm:$0xff]
    %v1868 = vld [vmem:[#allocation4 + $0x1a0] sm:$0xff]
    %v1869 = vld [vmem:[#allocation4 + $0x1a8] sm:$0xff]
    %v1870 = vld [vmem:[#allocation4 + $0x1b0] sm:$0xff]
    %v1871 = vld [vmem:[#allocation4 + $0x1b8] sm:$0xff]
    %v1872 = vld [vmem:[#allocation4 + $0x1c0] sm:$0xff]
    %v1873 = vld [vmem:[#allocation4 + $0x1c8] sm:$0xff]
    %v1874 = vld [vmem:[#allocation4 + $0x1d0] sm:$0xff]
    %v1875 = vld [vmem:[#allocation4 + $0x1d8] sm:$0xff]
    %v1876 = vld [vmem:[#allocation4 + $0x1e0] sm:$0xff]
    %v1877 = vld [vmem:[#allocation4 + $0x1e8] sm:$0xff]
    %v1878 = vld [vmem:[#allocation4 + $0x1f0] sm:$0xff]
    %v1879 = vld [vmem:[#allocation4 + $0x1f8] sm:$0xff]
    %v1880 = vld [vmem:[#allocation4 + $0x200] sm:$0xff]
    %v1881 = vld [vmem:[#allocation4 + $0x208] sm:$0xff]
    %v1882 = vld [vmem:[#allocation4 + $0x210] sm:$0xff]
    %v1883 = vld [vmem:[#allocation4 + $0x218] sm:$0xff]
    %v1884 = vld [vmem:[#allocation4 + $0x220] sm:$0xff]
    %v1885 = vld [vmem:[#allocation4 + $0x228] sm:$0xff]
    %v1886 = vld [vmem:[#allocation4 + $0x230] sm:$0xff]
    %v1887 = vld [vmem:[#allocation4 + $0x238] sm:$0xff]
    %v1888 = vld [vmem:[#allocation4 + $0x240] sm:$0xff]
    %v1889 = vld [vmem:[#allocation4 + $0x248] sm:$0xff]
    %v1890 = vld [vmem:[#allocation4 + $0x250] sm:$0xff]
    %v1891 = vld [vmem:[#allocation4 + $0x258] sm:$0xff]
    %v1892 = vld [vmem:[#allocation4 + $0x260] sm:$0xff]
    %v1893 = vld [vmem:[#allocation4 + $0x268] sm:$0xff]
    %v1894 = vld [vmem:[#allocation4 + $0x270] sm:$0xff]
    %v1895 = vld [vmem:[#allocation4 + $0x278] sm:$0xff]
    %v1896 = vld [vmem:[%s3] sm:$0xff]
    %v1897 = vld [vmem:[%s3 + $0x8] sm:$0xff]
    %v1898 = vld [vmem:[%s3 + $0x10] sm:$0xff]
    %v1899 = vld [vmem:[%s3 + $0x18] sm:$0xff]
    %v1900 = vld [vmem:[%s3 + $0x20] sm:$0xff]
    %v1901 = vld [vmem:[%s3 + $0x28] sm:$0xff]
    %v1902 = vld [vmem:[%s3 + $0x30] sm:$0xff]
    %v1903 = vld [vmem:[%s3 + $0x38] sm:$0xff]
    %v1904 = vld [vmem:[%s3 + $0x40] sm:$0xff]
    %v1905 = vld [vmem:[%s3 + $0x48] sm:$0xff]
    %v1906 = vld [vmem:[%s3 + $0x50] sm:$0xff]
    %v1907 = vld [vmem:[%s3 + $0x58] sm:$0xff]
    %v1908 = vld [vmem:[%s3 + $0x60] sm:$0xff]
    %v1909 = vld [vmem:[%s3 + $0x68] sm:$0xff]
    %v1910 = vld [vmem:[%s3 + $0x70] sm:$0xff]
    %v1911 = vld [vmem:[%s3 + $0x78] sm:$0xff]
    %v1912 = vld [vmem:[%s3 + $0x80] sm:$0xff]
    %v1913 = vld [vmem:[%s3 + $0x88] sm:$0xff]
    %v1914 = vld [vmem:[%s3 + $0x90] sm:$0xff]
    %v1915 = vld [vmem:[%s3 + $0x98] sm:$0xff]
    %v1916 = vld [vmem:[%s3 + $0xa0] sm:$0xff]
    %v1917 = vld [vmem:[%s3 + $0xa8] sm:$0xff]
    %v1918 = vld [vmem:[%s3 + $0xb0] sm:$0xff]
    %v1919 = vld [vmem:[%s3 + $0xb8] sm:$0xff]
    %v1920 = vld [vmem:[%s3 + $0xc0] sm:$0xff]
    %v1921 = vld [vmem:[%s3 + $0xc8] sm:$0xff]
    %v1922 = vld [vmem:[%s3 + $0xd0] sm:$0xff]
    %v1923 = vld [vmem:[%s3 + $0xd8] sm:$0xff]
    %v1924 = vld [vmem:[%s3 + $0xe0] sm:$0xff]
    %v1925 = vld [vmem:[%s3 + $0xe8] sm:$0xff]
    %v1926 = vld [vmem:[%s3 + $0xf0] sm:$0xff]
    %v1927 = vld [vmem:[%s3 + $0xf8] sm:$0xff]
    %v1928 = vld [vmem:[%s3 + $0x100] sm:$0xff]
    %v1929 = vld [vmem:[%s3 + $0x108] sm:$0xff]
    %v1930 = vld [vmem:[%s3 + $0x110] sm:$0xff]
    %v1931 = vld [vmem:[%s3 + $0x118] sm:$0xff]
    %v1932 = vld [vmem:[%s3 + $0x120] sm:$0xff]
    %v1933 = vld [vmem:[%s3 + $0x128] sm:$0xff]
    %v1934 = vld [vmem:[%s3 + $0x130] sm:$0xff]
    %v1935 = vld [vmem:[%s3 + $0x138] sm:$0xff]
    %v1936 = vld [vmem:[%s3 + $0x140] sm:$0xff]
    %v1937 = vld [vmem:[%s3 + $0x148] sm:$0xff]
    %v1938 = vld [vmem:[%s3 + $0x150] sm:$0xff]
    %v1939 = vld [vmem:[%s3 + $0x158] sm:$0xff]
    %v1940 = vld [vmem:[%s3 + $0x160] sm:$0xff]
    %v1941 = vld [vmem:[%s3 + $0x168] sm:$0xff]
    %v1942 = vld [vmem:[%s3 + $0x170] sm:$0xff]
    %v1943 = vld [vmem:[%s3 + $0x178] sm:$0xff]
    %v1944 = vld [vmem:[%s3 + $0x180] sm:$0xff]
    %v1945 = vld [vmem:[%s3 + $0x188] sm:$0xff]
    %v1946 = vld [vmem:[%s3 + $0x190] sm:$0xff]
    %v1947 = vld [vmem:[%s3 + $0x198] sm:$0xff]
    %v1948 = vld [vmem:[%s3 + $0x1a0] sm:$0xff]
    %v1949 = vld [vmem:[%s3 + $0x1a8] sm:$0xff]
    %v1950 = vld [vmem:[%s3 + $0x1b0] sm:$0xff]
    %v1951 = vld [vmem:[%s3 + $0x1b8] sm:$0xff]
    %v1952 = vld [vmem:[%s3 + $0x1c0] sm:$0xff]
    %v1953 = vld [vmem:[%s3 + $0x1c8] sm:$0xff]
    %v1954 = vld [vmem:[%s3 + $0x1d0] sm:$0xff]
    %v1955 = vld [vmem:[%s3 + $0x1d8] sm:$0xff]
    %v1956 = vld [vmem:[%s3 + $0x1e0] sm:$0xff]
    %v1957 = vld [vmem:[%s3 + $0x1e8] sm:$0xff]
    %v1958 = vld [vmem:[%s3 + $0x1f0] sm:$0xff]
    %v1959 = vld [vmem:[%s3 + $0x1f8] sm:$0xff]
    %v1960 = vld [vmem:[%s3 + $0x200] sm:$0xff]
    %v1961 = vld [vmem:[%s3 + $0x208] sm:$0xff]
    %v1962 = vld [vmem:[%s3 + $0x210] sm:$0xff]
    %v1963 = vld [vmem:[%s3 + $0x218] sm:$0xff]
    %v1964 = vld [vmem:[%s3 + $0x220] sm:$0xff]
    %v1965 = vld [vmem:[%s3 + $0x228] sm:$0xff]
    %v1966 = vld [vmem:[%s3 + $0x230] sm:$0xff]
    %v1967 = vld [vmem:[%s3 + $0x238] sm:$0xff]
    %v1968 = vld [vmem:[%s4] sm:$0x1]
    %v1970 = vlaneseq
    %v1971 = vshrl.u32 %v1970, 7
    %v1972 = vsub.s32 0, %v1971
    %v1973 = vrot.slane %v1968, %v1972
    %v1976 = vsel %vm64, %v1820, 0
    %v1979 = vsel %vm64, %v1825, 0
    %v1982 = vsel %vm64, %v1830, 0
    %v1985 = vsel %vm64, %v1835, 0
    %v1988 = vsel %vm64, %v1840, 0
    %v1991 = vsel %vm64, %v1845, 0
    %v1994 = vsel %vm64, %v1850, 0
    %v1997 = vsel %vm64, %v1855, 0
    %v2000 = vsel %vm64, %v1860, 0
    %v2003 = vsel %vm64, %v1865, 0
    %v2006 = vsel %vm64, %v1870, 0
    %v2009 = vsel %vm64, %v1875, 0
    %v2012 = vsel %vm64, %v1880, 0
    %v2015 = vsel %vm64, %v1885, 0
    %v2018 = vsel %vm64, %v1890, 0
    %v2021 = vsel %vm64, %v1895, 0
    %2023 = vmatprep.subr.mxu0 0.0
    %2024 = vmatpush1.msra.mxu0 %v1911
    %2025 = vmatprep.subr.mxu0 0.0
    %2026 = vmatpush1.msra.mxu0 %v1910
    %2027 = vmatprep.subr.mxu0 0.0
    %2028 = vmatpush1.msra.mxu0 %v1909
    %2029 = vmatprep.subr.mxu0 0.0
    %2030 = vmatpush1.msra.mxu0 %v1908
    %2031 = vmatprep.subr.mxu0 0.0
    %2032 = vmatpush1.msra.mxu0 %v1907
    %2033 = vmatprep.subr.mxu0 0.0
    %2034 = vmatpush1.msra.mxu0 %v1906
    %2035 = vmatprep.subr.mxu0 0.0
    %2036 = vmatpush1.msra.mxu0 %v1905
    %2037 = vmatprep.subr.mxu0 0.0
    %2038 = vmatpush1.msra.mxu0 %v1904
    %2039 = vmatprep.subr.mxu0 0.0
    %2040 = vmatpush1.msra.mxu0 %v1903
    %2041 = vmatprep.subr.mxu0 0.0
    %2042 = vmatpush1.msra.mxu0 %v1902
    %2043 = vmatprep.subr.mxu0 0.0
    %2044 = vmatpush1.msra.mxu0 %v1901
    %2045 = vmatprep.subr.mxu0 0.0
    %2046 = vmatpush1.msra.mxu0 %v1900
    %2047 = vmatprep.subr.mxu0 0.0
    %2048 = vmatpush1.msra.mxu0 %v1899
    %2049 = vmatprep.subr.mxu0 0.0
    %2050 = vmatpush1.msra.mxu0 %v1898
    %2051 = vmatprep.subr.mxu0 0.0
    %2052 = vmatpush1.msra.mxu0 %v1897
    %2053 = vmatprep.subr.mxu0 0.0
    %2054 = vmatpush1.msra.mxu0 %v1896
    %2055 = vmatprep.subr.mxu0 0.0
    %2056 = vmatpush2.msra.mxu0 %v1927
    %2057 = vmatprep.subr.mxu0 0.0
    %2058 = vmatpush2.msra.mxu0 %v1926
    %2059 = vmatprep.subr.mxu0 0.0
    %2060 = vmatpush2.msra.mxu0 %v1925
    %2061 = vmatprep.subr.mxu0 0.0
    %2062 = vmatpush2.msra.mxu0 %v1924
    %2063 = vmatprep.subr.mxu0 0.0
    %2064 = vmatpush2.msra.mxu0 %v1923
    %2065 = vmatprep.subr.mxu0 0.0
    %2066 = vmatpush2.msra.mxu0 %v1922
    %2067 = vmatprep.subr.mxu0 0.0
    %2068 = vmatpush2.msra.mxu0 %v1921
    %2069 = vmatprep.subr.mxu0 0.0
    %2070 = vmatpush2.msra.mxu0 %v1920
    %2071 = vmatprep.subr.mxu0 0.0
    %2072 = vmatpush2.msra.mxu0 %v1919
    %2073 = vmatprep.subr.mxu0 0.0
    %2074 = vmatpush2.msra.mxu0 %v1918
    %2075 = vmatprep.subr.mxu0 0.0
    %2076 = vmatpush2.msra.mxu0 %v1917
    %2077 = vmatprep.subr.mxu0 0.0
    %2078 = vmatpush2.msra.mxu0 %v1916
    %2079 = vmatprep.subr.mxu0 0.0
    %2080 = vmatpush2.msra.mxu0 %v1915
    %2081 = vmatprep.subr.mxu0 0.0
    %2082 = vmatpush2.msra.mxu0 %v1914
    %2083 = vmatprep.subr.mxu0 0.0
    %2084 = vmatpush2.msra.mxu0 %v1913
    %2085 = vmatprep.subr.mxu0 0.0
    %2086 = vmatpush2.msra.mxu0 %v1912
    %2087 = vmatprep.mubr.f32.mxu0 %v1817
    %2088 = vmatmul.mubr.f32.gmra.mxu0 %v1816
    %v2089 = vpop.f32.mrf.mxu0
    %v2090 = vadd.f32 %v1973, %v2089
    %v2091 = vpop.f32.mrf.mxu0
    %2092 = vmatprep.mubr.f32.mxu0 %v1822
    %2093 = vmatmul.mubr.f32.gmra.mxu0 %v1821
    %v2094 = vpop.f32.mrf.mxu0
    %v2095 = vadd.f32 %v1973, %v2094
    %v2096 = vpop.f32.mrf.mxu0
    %2097 = vmatprep.mubr.f32.mxu0 %v1827
    %2098 = vmatmul.mubr.f32.gmra.mxu0 %v1826
    %v2099 = vpop.f32.mrf.mxu0
    %v2100 = vadd.f32 %v1973, %v2099
    %v2101 = vpop.f32.mrf.mxu0
    %2102 = vmatprep.mubr.f32.mxu0 %v1832
    %2103 = vmatmul.mubr.f32.gmra.mxu0 %v1831
    %v2104 = vpop.f32.mrf.mxu0
    %v2105 = vadd.f32 %v1973, %v2104
    %v2106 = vpop.f32.mrf.mxu0
    %2107 = vmatprep.mubr.f32.mxu0 %v1837
    %2108 = vmatmul.mubr.f32.gmra.mxu0 %v1836
    %v2109 = vpop.f32.mrf.mxu0
    %v2110 = vadd.f32 %v1973, %v2109
    %v2111 = vpop.f32.mrf.mxu0
    %2112 = vmatprep.mubr.f32.mxu0 %v1842
    %2113 = vmatmul.mubr.f32.gmra.mxu0 %v1841
    %v2114 = vpop.f32.mrf.mxu0
    %v2115 = vadd.f32 %v1973, %v2114
    %v2116 = vpop.f32.mrf.mxu0
    %2117 = vmatprep.mubr.f32.mxu0 %v1847
    %2118 = vmatmul.mubr.f32.gmra.mxu0 %v1846
    %v2119 = vpop.f32.mrf.mxu0
    %v2120 = vadd.f32 %v1973, %v2119
    %v2121 = vpop.f32.mrf.mxu0
    %2122 = vmatprep.mubr.f32.mxu0 %v1852
    %2123 = vmatmul.mubr.f32.gmra.mxu0 %v1851
    %v2124 = vpop.f32.mrf.mxu0
    %v2125 = vadd.f32 %v1973, %v2124
    %v2126 = vpop.f32.mrf.mxu0
    %2127 = vmatprep.mubr.f32.mxu0 %v1857
    %2128 = vmatmul.mubr.f32.gmra.mxu0 %v1856
    %v2129 = vpop.f32.mrf.mxu0
    %v2130 = vadd.f32 %v1973, %v2129
    %v2131 = vpop.f32.mrf.mxu0
    %2132 = vmatprep.mubr.f32.mxu0 %v1862
    %2133 = vmatmul.mubr.f32.gmra.mxu0 %v1861
    %v2134 = vpop.f32.mrf.mxu0
    %v2135 = vadd.f32 %v1973, %v2134
    %v2136 = vpop.f32.mrf.mxu0
    %2137 = vmatprep.mubr.f32.mxu0 %v1867
    %2138 = vmatmul.mubr.f32.gmra.mxu0 %v1866
    %v2139 = vpop.f32.mrf.mxu0
    %v2140 = vadd.f32 %v1973, %v2139
    %v2141 = vpop.f32.mrf.mxu0
    %2142 = vmatprep.mubr.f32.mxu0 %v1872
    %2143 = vmatmul.mubr.f32.gmra.mxu0 %v1871
    %v2144 = vpop.f32.mrf.mxu0
    %v2145 = vadd.f32 %v1973, %v2144
    %v2146 = vpop.f32.mrf.mxu0
    %2147 = vmatprep.mubr.f32.mxu0 %v1877
    %2148 = vmatmul.mubr.f32.gmra.mxu0 %v1876
    %v2149 = vpop.f32.mrf.mxu0
    %v2150 = vadd.f32 %v1973, %v2149
    %v2151 = vpop.f32.mrf.mxu0
    %2152 = vmatprep.mubr.f32.mxu0 %v1882
    %2153 = vmatmul.mubr.f32.gmra.mxu0 %v1881
    %v2154 = vpop.f32.mrf.mxu0
    %v2155 = vadd.f32 %v1973, %v2154
    %v2156 = vpop.f32.mrf.mxu0
    %2157 = vmatprep.mubr.f32.mxu0 %v1887
    %2158 = vmatmul.mubr.f32.gmra.mxu0 %v1886
    %v2159 = vpop.f32.mrf.mxu0
    %v2160 = vadd.f32 %v1973, %v2159
    %v2161 = vpop.f32.mrf.mxu0
    %2162 = vmatprep.mubr.f32.mxu0 %v1892
    %2163 = vmatmul.mubr.f32.gmra.mxu0 %v1891
    %v2164 = vpop.f32.mrf.mxu0
    %v2165 = vadd.f32 %v1973, %v2164
    %v2166 = vpop.f32.mrf.mxu0
    %2167 = vdwg.mxu0
    %2168 = vmatprep.subr.mxu0 0.0
    %2169 = vmatpush1.msra.mxu0 %v1943
    %2170 = vmatprep.subr.mxu0 0.0
    %2171 = vmatpush1.msra.mxu0 %v1942
    %2172 = vmatprep.subr.mxu0 0.0
    %2173 = vmatpush1.msra.mxu0 %v1941
    %2174 = vmatprep.subr.mxu0 0.0
    %2175 = vmatpush1.msra.mxu0 %v1940
    %2176 = vmatprep.subr.mxu0 0.0
    %2177 = vmatpush1.msra.mxu0 %v1939
    %2178 = vmatprep.subr.mxu0 0.0
    %2179 = vmatpush1.msra.mxu0 %v1938
    %2180 = vmatprep.subr.mxu0 0.0
    %2181 = vmatpush1.msra.mxu0 %v1937
    %2182 = vmatprep.subr.mxu0 0.0
    %2183 = vmatpush1.msra.mxu0 %v1936
    %2184 = vmatprep.subr.mxu0 0.0
    %2185 = vmatpush1.msra.mxu0 %v1935
    %2186 = vmatprep.subr.mxu0 0.0
    %2187 = vmatpush1.msra.mxu0 %v1934
    %2188 = vmatprep.subr.mxu0 0.0
    %2189 = vmatpush1.msra.mxu0 %v1933
    %2190 = vmatprep.subr.mxu0 0.0
    %2191 = vmatpush1.msra.mxu0 %v1932
    %2192 = vmatprep.subr.mxu0 0.0
    %2193 = vmatpush1.msra.mxu0 %v1931
    %2194 = vmatprep.subr.mxu0 0.0
    %2195 = vmatpush1.msra.mxu0 %v1930
    %2196 = vmatprep.subr.mxu0 0.0
    %2197 = vmatpush1.msra.mxu0 %v1929
    %2198 = vmatprep.subr.mxu0 0.0
    %2199 = vmatpush1.msra.mxu0 %v1928
    %2200 = vmatprep.subr.mxu0 0.0
    %2201 = vmatpush2.msra.mxu0 %v1959
    %2202 = vmatprep.subr.mxu0 0.0
    %2203 = vmatpush2.msra.mxu0 %v1958
    %2204 = vmatprep.subr.mxu0 0.0
    %2205 = vmatpush2.msra.mxu0 %v1957
    %2206 = vmatprep.subr.mxu0 0.0
    %2207 = vmatpush2.msra.mxu0 %v1956
    %2208 = vmatprep.subr.mxu0 0.0
    %2209 = vmatpush2.msra.mxu0 %v1955
    %2210 = vmatprep.subr.mxu0 0.0
    %2211 = vmatpush2.msra.mxu0 %v1954
    %2212 = vmatprep.subr.mxu0 0.0
    %2213 = vmatpush2.msra.mxu0 %v1953
    %2214 = vmatprep.subr.mxu0 0.0
    %2215 = vmatpush2.msra.mxu0 %v1952
    %2216 = vmatprep.subr.mxu0 0.0
    %2217 = vmatpush2.msra.mxu0 %v1951
    %2218 = vmatprep.subr.mxu0 0.0
    %2219 = vmatpush2.msra.mxu0 %v1950
    %2220 = vmatprep.subr.mxu0 0.0
    %2221 = vmatpush2.msra.mxu0 %v1949
    %2222 = vmatprep.subr.mxu0 0.0
    %2223 = vmatpush2.msra.mxu0 %v1948
    %2224 = vmatprep.subr.mxu0 0.0
    %2225 = vmatpush2.msra.mxu0 %v1947
    %2226 = vmatprep.subr.mxu0 0.0
    %2227 = vmatpush2.msra.mxu0 %v1946
    %2228 = vmatprep.subr.mxu0 0.0
    %2229 = vmatpush2.msra.mxu0 %v1945
    %2230 = vmatprep.subr.mxu0 0.0
    %2231 = vmatpush2.msra.mxu0 %v1944
    %2232 = vmatprep.mubr.f32.mxu0 %v1819
    %2233 = vmatmul.mubr.f32.gmra.mxu0 %v1818
    %v2234 = vpop.f32.mrf.mxu0
    %v2235 = vadd.f32 %v2090, %v2234
    %v2236 = vpop.f32.mrf.mxu0
    %2237 = vmatprep.mubr.f32.mxu0 %v1824
    %2238 = vmatmul.mubr.f32.gmra.mxu0 %v1823
    %v2239 = vpop.f32.mrf.mxu0
    %v2240 = vadd.f32 %v2095, %v2239
    %v2241 = vpop.f32.mrf.mxu0
    %2242 = vmatprep.mubr.f32.mxu0 %v1829
    %2243 = vmatmul.mubr.f32.gmra.mxu0 %v1828
    %v2244 = vpop.f32.mrf.mxu0
    %v2245 = vadd.f32 %v2100, %v2244
    %v2246 = vpop.f32.mrf.mxu0
    %2247 = vmatprep.mubr.f32.mxu0 %v1834
    %2248 = vmatmul.mubr.f32.gmra.mxu0 %v1833
    %v2249 = vpop.f32.mrf.mxu0
    %v2250 = vadd.f32 %v2105, %v2249
    %v2251 = vpop.f32.mrf.mxu0
    %2252 = vmatprep.mubr.f32.mxu0 %v1839
    %2253 = vmatmul.mubr.f32.gmra.mxu0 %v1838
    %v2254 = vpop.f32.mrf.mxu0
    %v2255 = vadd.f32 %v2110, %v2254
    %v2256 = vpop.f32.mrf.mxu0
    %2257 = vmatprep.mubr.f32.mxu0 %v1844
    %2258 = vmatmul.mubr.f32.gmra.mxu0 %v1843
    %v2259 = vpop.f32.mrf.mxu0
    %v2260 = vadd.f32 %v2115, %v2259
    %v2261 = vpop.f32.mrf.mxu0
    %2262 = vmatprep.mubr.f32.mxu0 %v1849
    %2263 = vmatmul.mubr.f32.gmra.mxu0 %v1848
    %v2264 = vpop.f32.mrf.mxu0
    %v2265 = vadd.f32 %v2120, %v2264
    %v2266 = vpop.f32.mrf.mxu0
    %2267 = vmatprep.mubr.f32.mxu0 %v1854
    %2268 = vmatmul.mubr.f32.gmra.mxu0 %v1853
    %v2269 = vpop.f32.mrf.mxu0
    %v2270 = vadd.f32 %v2125, %v2269
    %v2271 = vpop.f32.mrf.mxu0
    %2272 = vmatprep.mubr.f32.mxu0 %v1859
    %2273 = vmatmul.mubr.f32.gmra.mxu0 %v1858
    %v2274 = vpop.f32.mrf.mxu0
    %v2275 = vadd.f32 %v2130, %v2274
    %v2276 = vpop.f32.mrf.mxu0
    %2277 = vmatprep.mubr.f32.mxu0 %v1864
    %2278 = vmatmul.mubr.f32.gmra.mxu0 %v1863
    %v2279 = vpop.f32.mrf.mxu0
    %v2280 = vadd.f32 %v2135, %v2279
    %v2281 = vpop.f32.mrf.mxu0
    %2282 = vmatprep.mubr.f32.mxu0 %v1869
    %2283 = vmatmul.mubr.f32.gmra.mxu0 %v1868
    %v2284 = vpop.f32.mrf.mxu0
    %v2285 = vadd.f32 %v2140, %v2284
    %v2286 = vpop.f32.mrf.mxu0
    %2287 = vmatprep.mubr.f32.mxu0 %v1874
    %2288 = vmatmul.mubr.f32.gmra.mxu0 %v1873
    %v2289 = vpop.f32.mrf.mxu0
    %v2290 = vadd.f32 %v2145, %v2289
    %v2291 = vpop.f32.mrf.mxu0
    %2292 = vmatprep.mubr.f32.mxu0 %v1879
    %2293 = vmatmul.mubr.f32.gmra.mxu0 %v1878
    %v2294 = vpop.f32.mrf.mxu0
    %v2295 = vadd.f32 %v2150, %v2294
    %v2296 = vpop.f32.mrf.mxu0
    %2297 = vmatprep.mubr.f32.mxu0 %v1884
    %2298 = vmatmul.mubr.f32.gmra.mxu0 %v1883
    %v2299 = vpop.f32.mrf.mxu0
    %v2300 = vadd.f32 %v2155, %v2299
    %v2301 = vpop.f32.mrf.mxu0
    %2302 = vmatprep.mubr.f32.mxu0 %v1889
    %2303 = vmatmul.mubr.f32.gmra.mxu0 %v1888
    %v2304 = vpop.f32.mrf.mxu0
    %v2305 = vadd.f32 %v2160, %v2304
    %v2306 = vpop.f32.mrf.mxu0
    %2307 = vmatprep.mubr.f32.mxu0 %v1894
    %2308 = vmatmul.mubr.f32.gmra.mxu0 %v1893
    %v2309 = vpop.f32.mrf.mxu0
    %v2310 = vadd.f32 %v2165, %v2309
    %v2311 = vpop.f32.mrf.mxu0
    %2312 = vdwg.mxu0
    %2313 = vmatprep.subr.mxu0 0.0
    %2314 = vmatpush1.msra.mxu0 0.0
    %2315 = vmatprep.subr.mxu0 0.0
    %2316 = vmatpush1.msra.mxu0 0.0
    %2317 = vmatprep.subr.mxu0 0.0
    %2318 = vmatpush1.msra.mxu0 0.0
    %2319 = vmatprep.subr.mxu0 0.0
    %2320 = vmatpush1.msra.mxu0 0.0
    %2321 = vmatprep.subr.mxu0 0.0
    %2322 = vmatpush1.msra.mxu0 0.0
    %2323 = vmatprep.subr.mxu0 0.0
    %2324 = vmatpush1.msra.mxu0 0.0
    %2325 = vmatprep.subr.mxu0 0.0
    %2326 = vmatpush1.msra.mxu0 0.0
    %2327 = vmatprep.subr.mxu0 0.0
    %2328 = vmatpush1.msra.mxu0 0.0
    %2329 = vmatprep.subr.mxu0 0.0
    %2330 = vmatpush1.msra.mxu0 %v1967
    %2331 = vmatprep.subr.mxu0 0.0
    %2332 = vmatpush1.msra.mxu0 %v1966
    %2333 = vmatprep.subr.mxu0 0.0
    %2334 = vmatpush1.msra.mxu0 %v1965
    %2335 = vmatprep.subr.mxu0 0.0
    %2336 = vmatpush1.msra.mxu0 %v1964
    %2337 = vmatprep.subr.mxu0 0.0
    %2338 = vmatpush1.msra.mxu0 %v1963
    %2339 = vmatprep.subr.mxu0 0.0
    %2340 = vmatpush1.msra.mxu0 %v1962
    %2341 = vmatprep.subr.mxu0 0.0
    %2342 = vmatpush1.msra.mxu0 %v1961
    %2343 = vmatprep.subr.mxu0 0.0
    %2344 = vmatpush1.msra.mxu0 %v1960
    %2345 = vmatprep.subr.mxu0 0.0
    %2346 = vmatpush2.msra.mxu0 0.0
    %2347 = vmatprep.subr.mxu0 0.0
    %2348 = vmatpush2.msra.mxu0 0.0
    %2349 = vmatprep.subr.mxu0 0.0
    %2350 = vmatpush2.msra.mxu0 0.0
    %2351 = vmatprep.subr.mxu0 0.0
    %2352 = vmatpush2.msra.mxu0 0.0
    %2353 = vmatprep.subr.mxu0 0.0
    %2354 = vmatpush2.msra.mxu0 0.0
    %2355 = vmatprep.subr.mxu0 0.0
    %2356 = vmatpush2.msra.mxu0 0.0
    %2357 = vmatprep.subr.mxu0 0.0
    %2358 = vmatpush2.msra.mxu0 0.0
    %2359 = vmatprep.subr.mxu0 0.0
    %2360 = vmatpush2.msra.mxu0 0.0
    %2361 = vmatprep.subr.mxu0 0.0
    %2362 = vmatpush2.msra.mxu0 0.0
    %2363 = vmatprep.subr.mxu0 0.0
    %2364 = vmatpush2.msra.mxu0 0.0
    %2365 = vmatprep.subr.mxu0 0.0
    %2366 = vmatpush2.msra.mxu0 0.0
    %2367 = vmatprep.subr.mxu0 0.0
    %2368 = vmatpush2.msra.mxu0 0.0
    %2369 = vmatprep.subr.mxu0 0.0
    %2370 = vmatpush2.msra.mxu0 0.0
    %2371 = vmatprep.subr.mxu0 0.0
    %2372 = vmatpush2.msra.mxu0 0.0
    %2373 = vmatprep.subr.mxu0 0.0
    %2374 = vmatpush2.msra.mxu0 0.0
    %2375 = vmatprep.subr.mxu0 0.0
    %2376 = vmatpush2.msra.mxu0 0.0
    %2377 = vmatprep.mubr.f32.mxu0 0.0
    %2378 = vmatmul.mubr.f32.gmra.mxu0 %v1976
    %v2379 = vpop.f32.mrf.mxu0
    %v2380 = vadd.f32 %v2235, %v2379
    %v2381 = vpop.f32.mrf.mxu0
    %2382 = vmatprep.mubr.f32.mxu0 0.0
    %2383 = vmatmul.mubr.f32.gmra.mxu0 %v1979
    %v2384 = vpop.f32.mrf.mxu0
    %v2385 = vadd.f32 %v2240, %v2384
    %v2386 = vpop.f32.mrf.mxu0
    %2387 = vmatprep.mubr.f32.mxu0 0.0
    %2388 = vmatmul.mubr.f32.gmra.mxu0 %v1982
    %v2389 = vpop.f32.mrf.mxu0
    %v2390 = vadd.f32 %v2245, %v2389
    %v2391 = vpop.f32.mrf.mxu0
    %2392 = vmatprep.mubr.f32.mxu0 0.0
    %2393 = vmatmul.mubr.f32.gmra.mxu0 %v1985
    %v2394 = vpop.f32.mrf.mxu0
    %v2395 = vadd.f32 %v2250, %v2394
    %v2396 = vpop.f32.mrf.mxu0
    %2397 = vmatprep.mubr.f32.mxu0 0.0
    %2398 = vmatmul.mubr.f32.gmra.mxu0 %v1988
    %v2399 = vpop.f32.mrf.mxu0
    %v2400 = vadd.f32 %v2255, %v2399
    %v2401 = vpop.f32.mrf.mxu0
    %2402 = vmatprep.mubr.f32.mxu0 0.0
    %2403 = vmatmul.mubr.f32.gmra.mxu0 %v1991
    %v2404 = vpop.f32.mrf.mxu0
    %v2405 = vadd.f32 %v2260, %v2404
    %v2406 = vpop.f32.mrf.mxu0
    %2407 = vmatprep.mubr.f32.mxu0 0.0
    %2408 = vmatmul.mubr.f32.gmra.mxu0 %v1994
    %v2409 = vpop.f32.mrf.mxu0
    %v2410 = vadd.f32 %v2265, %v2409
    %v2411 = vpop.f32.mrf.mxu0
    %2412 = vmatprep.mubr.f32.mxu0 0.0
    %2413 = vmatmul.mubr.f32.gmra.mxu0 %v1997
    %v2414 = vpop.f32.mrf.mxu0
    %v2415 = vadd.f32 %v2270, %v2414
    %v2416 = vpop.f32.mrf.mxu0
    %2417 = vmatprep.mubr.f32.mxu0 0.0
    %2418 = vmatmul.mubr.f32.gmra.mxu0 %v2000
    %v2419 = vpop.f32.mrf.mxu0
    %v2420 = vadd.f32 %v2275, %v2419
    %v2421 = vpop.f32.mrf.mxu0
    %2422 = vmatprep.mubr.f32.mxu0 0.0
    %2423 = vmatmul.mubr.f32.gmra.mxu0 %v2003
    %v2424 = vpop.f32.mrf.mxu0
    %v2425 = vadd.f32 %v2280, %v2424
    %v2426 = vpop.f32.mrf.mxu0
    %2427 = vmatprep.mubr.f32.mxu0 0.0
    %2428 = vmatmul.mubr.f32.gmra.mxu0 %v2006
    %v2429 = vpop.f32.mrf.mxu0
    %v2430 = vadd.f32 %v2285, %v2429
    %v2431 = vpop.f32.mrf.mxu0
    %2432 = vmatprep.mubr.f32.mxu0 0.0
    %2433 = vmatmul.mubr.f32.gmra.mxu0 %v2009
    %v2434 = vpop.f32.mrf.mxu0
    %v2435 = vadd.f32 %v2290, %v2434
    %v2436 = vpop.f32.mrf.mxu0
    %2437 = vmatprep.mubr.f32.mxu0 0.0
    %2438 = vmatmul.mubr.f32.gmra.mxu0 %v2012
    %v2439 = vpop.f32.mrf.mxu0
    %v2440 = vadd.f32 %v2295, %v2439
    %v2441 = vpop.f32.mrf.mxu0
    %2442 = vmatprep.mubr.f32.mxu0 0.0
    %2443 = vmatmul.mubr.f32.gmra.mxu0 %v2015
    %v2444 = vpop.f32.mrf.mxu0
    %v2445 = vadd.f32 %v2300, %v2444
    %v2446 = vpop.f32.mrf.mxu0
    %2447 = vmatprep.mubr.f32.mxu0 0.0
    %2448 = vmatmul.mubr.f32.gmra.mxu0 %v2018
    %v2449 = vpop.f32.mrf.mxu0
    %v2450 = vadd.f32 %v2305, %v2449
    %v2451 = vpop.f32.mrf.mxu0
    %2452 = vmatprep.mubr.f32.mxu0 0.0
    %2453 = vmatmul.mubr.f32.gmra.mxu0 %v2021
    %v2454 = vpop.f32.mrf.mxu0
    %v2455 = vadd.f32 %v2310, %v2454
    %v2456 = vpop.f32.mrf.mxu0
    %2457 = vdwg.mxu0
    %v2458 = vmax.f32 %v2380, 0.0
    %v2459 = vmax.f32 %v2385, 0.0
    %v2460 = vmax.f32 %v2390, 0.0
    %v2461 = vmax.f32 %v2395, 0.0
    %v2462 = vmax.f32 %v2400, 0.0
    %v2463 = vmax.f32 %v2405, 0.0
    %v2464 = vmax.f32 %v2410, 0.0
    %v2465 = vmax.f32 %v2415, 0.0
    %v2466 = vmax.f32 %v2420, 0.0
    %v2467 = vmax.f32 %v2425, 0.0
    %v2468 = vmax.f32 %v2430, 0.0
    %v2469 = vmax.f32 %v2435, 0.0
    %v2470 = vmax.f32 %v2440, 0.0
    %v2471 = vmax.f32 %v2445, 0.0
    %v2472 = vmax.f32 %v2450, 0.0
    %v2473 = vmax.f32 %v2455, 0.0
    %v2474 = vld [vmem:[%s5] sm:$0xff]
    %v2475 = vld [vmem:[%s5 + $0x8] sm:$0xff]
    %v2476 = vld [vmem:[%s5 + $0x10] sm:$0xff]
    %v2477 = vld [vmem:[%s5 + $0x18] sm:$0xff]
    %v2478 = vld [vmem:[%s5 + $0x20] sm:$0xff]
    %v2479 = vld [vmem:[%s5 + $0x28] sm:$0xff]
    %v2480 = vld [vmem:[%s5 + $0x30] sm:$0xff]
    %v2481 = vld [vmem:[%s5 + $0x38] sm:$0xff]
    %v2482 = vld [vmem:[%s5 + $0x40] sm:$0xff]
    %v2483 = vld [vmem:[%s5 + $0x48] sm:$0xff]
    %v2484 = vld [vmem:[%s5 + $0x50] sm:$0xff]
    %v2485 = vld [vmem:[%s5 + $0x58] sm:$0xff]
    %v2486 = vld [vmem:[%s5 + $0x60] sm:$0xff]
    %v2487 = vld [vmem:[%s5 + $0x68] sm:$0xff]
    %v2488 = vld [vmem:[%s5 + $0x70] sm:$0xff]
    %v2489 = vld [vmem:[%s5 + $0x78] sm:$0xff]
    %v2490 = vlaneseq
    %v2491 = vshrl.u32 %v2490, 7
    %v2492 = vmul.u32 %v2491, 2
    %v2493 = vadd.s32 %v2492, 32
    %v2494 = vadd.s32 %v2492, 64
    %v2495 = vadd.s32 %v2492, 96
    %v2496 = vadd.s32 %v2492, 128
    %v2497 = vadd.s32 %v2492, 160
    %v2498 = vadd.s32 %v2492, 192
    %v2499 = vadd.s32 %v2492, 224
    %vm2500 = vcmp.eq.s32.totalorder %v2474, %v2492
    %vm2501 = vcmp.eq.s32.totalorder %v2475, %v2493
    %vm2502 = vcmp.eq.s32.totalorder %v2476, %v2494
    %vm2503 = vcmp.eq.s32.totalorder %v2477, %v2495
    %vm2504 = vcmp.eq.s32.totalorder %v2478, %v2496
    %vm2505 = vcmp.eq.s32.totalorder %v2479, %v2497
    %vm2506 = vcmp.eq.s32.totalorder %v2480, %v2498
    %vm2507 = vcmp.eq.s32.totalorder %v2481, %v2499
    %vm2508 = vcmp.eq.s32.totalorder %v2482, %v2492
    %vm2509 = vcmp.eq.s32.totalorder %v2483, %v2493
    %vm2510 = vcmp.eq.s32.totalorder %v2484, %v2494
    %vm2511 = vcmp.eq.s32.totalorder %v2485, %v2495
    %vm2512 = vcmp.eq.s32.totalorder %v2486, %v2496
    %vm2513 = vcmp.eq.s32.totalorder %v2487, %v2497
    %vm2514 = vcmp.eq.s32.totalorder %v2488, %v2498
    %vm2515 = vcmp.eq.s32.totalorder %v2489, %v2499
    %v2516 = vsel %vm2500, %v2458, 0.0
    %v2517 = vsel %vm2501, %v2459, 0.0
    %v2518 = vsel %vm2502, %v2460, 0.0
    %v2519 = vsel %vm2503, %v2461, 0.0
    %v2520 = vsel %vm2504, %v2462, 0.0
    %v2521 = vsel %vm2505, %v2463, 0.0
    %v2522 = vsel %vm2506, %v2464, 0.0
    %v2523 = vsel %vm2507, %v2465, 0.0
    %v2524 = vsel %vm2508, %v2466, 0.0
    %v2525 = vsel %vm2509, %v2467, 0.0
    %v2526 = vsel %vm2510, %v2468, 0.0
    %v2527 = vsel %vm2511, %v2469, 0.0
    %v2528 = vsel %vm2512, %v2470, 0.0
    %v2529 = vsel %vm2513, %v2471, 0.0
    %v2530 = vsel %vm2514, %v2472, 0.0
    %v2531 = vsel %vm2515, %v2473, 0.0
    %2532 = vst.msk [vmem:[#allocation5] sm:$0xff] %vm64, %v2516
    %2533 = vst.msk [vmem:[#allocation5 + $0x10] sm:$0xff] %vm64, %v2517
    %2534 = vst.msk [vmem:[#allocation5 + $0x20] sm:$0xff] %vm64, %v2518
    %2535 = vst.msk [vmem:[#allocation5 + $0x30] sm:$0xff] %vm64, %v2519
    %2536 = vst.msk [vmem:[#allocation5 + $0x40] sm:$0xff] %vm64, %v2520
    %2537 = vst.msk [vmem:[#allocation5 + $0x50] sm:$0xff] %vm64, %v2521
    %2538 = vst.msk [vmem:[#allocation5 + $0x60] sm:$0xff] %vm64, %v2522
    %2539 = vst.msk [vmem:[#allocation5 + $0x70] sm:$0xff] %vm64, %v2523
    %2540 = vst.msk [vmem:[#allocation5 + $0x80] sm:$0xff] %vm64, %v2524
    %2541 = vst.msk [vmem:[#allocation5 + $0x90] sm:$0xff] %vm64, %v2525
    %2542 = vst.msk [vmem:[#allocation5 + $0xa0] sm:$0xff] %vm64, %v2526
    %2543 = vst.msk [vmem:[#allocation5 + $0xb0] sm:$0xff] %vm64, %v2527
    %2544 = vst.msk [vmem:[#allocation5 + $0xc0] sm:$0xff] %vm64, %v2528
    %2545 = vst.msk [vmem:[#allocation5 + $0xd0] sm:$0xff] %vm64, %v2529
    %2546 = vst.msk [vmem:[#allocation5 + $0xe0] sm:$0xff] %vm64, %v2530
    %2547 = vst.msk [vmem:[#allocation5 + $0xf0] sm:$0xff] %vm64, %v2531
    %v2548 = vadd.s32 %v2492, 1
    %v2549 = vadd.s32 %v2493, 1
    %v2550 = vadd.s32 %v2494, 1
    %v2551 = vadd.s32 %v2495, 1
    %v2552 = vadd.s32 %v2496, 1
    %v2553 = vadd.s32 %v2497, 1
    %v2554 = vadd.s32 %v2498, 1
    %v2555 = vadd.s32 %v2499, 1
    %vm2556 = vcmp.eq.s32.totalorder %v2474, %v2548
    %vm2557 = vcmp.eq.s32.totalorder %v2475, %v2549
    %vm2558 = vcmp.eq.s32.totalorder %v2476, %v2550
    %vm2559 = vcmp.eq.s32.totalorder %v2477, %v2551
    %vm2560 = vcmp.eq.s32.totalorder %v2478, %v2552
    %vm2561 = vcmp.eq.s32.totalorder %v2479, %v2553
    %vm2562 = vcmp.eq.s32.totalorder %v2480, %v2554
    %vm2563 = vcmp.eq.s32.totalorder %v2481, %v2555
    %vm2564 = vcmp.eq.s32.totalorder %v2482, %v2548
    %vm2565 = vcmp.eq.s32.totalorder %v2483, %v2549
    %vm2566 = vcmp.eq.s32.totalorder %v2484, %v2550
    %vm2567 = vcmp.eq.s32.totalorder %v2485, %v2551
    %vm2568 = vcmp.eq.s32.totalorder %v2486, %v2552
    %vm2569 = vcmp.eq.s32.totalorder %v2487, %v2553
    %vm2570 = vcmp.eq.s32.totalorder %v2488, %v2554
    %vm2571 = vcmp.eq.s32.totalorder %v2489, %v2555
    %v2572 = vsel %vm2556, %v2458, 0.0
    %v2573 = vsel %vm2557, %v2459, 0.0
    %v2574 = vsel %vm2558, %v2460, 0.0
    %v2575 = vsel %vm2559, %v2461, 0.0
    %v2576 = vsel %vm2560, %v2462, 0.0
    %v2577 = vsel %vm2561, %v2463, 0.0
    %v2578 = vsel %vm2562, %v2464, 0.0
    %v2579 = vsel %vm2563, %v2465, 0.0
    %v2580 = vsel %vm2564, %v2466, 0.0
    %v2581 = vsel %vm2565, %v2467, 0.0
    %v2582 = vsel %vm2566, %v2468, 0.0
    %v2583 = vsel %vm2567, %v2469, 0.0
    %v2584 = vsel %vm2568, %v2470, 0.0
    %v2585 = vsel %vm2569, %v2471, 0.0
    %v2586 = vsel %vm2570, %v2472, 0.0
    %v2587 = vsel %vm2571, %v2473, 0.0
    %2604 = vrot.lane.b32.xlu0 %v2572, 64
    %v2605 = vpop.permute.xlu0 %2604
    %2606 = vrot.lane.b32.xlu0 %v2573, 64
    %v2607 = vpop.permute.xlu0 %2606
    %2608 = vrot.lane.b32.xlu0 %v2574, 64
    %v2609 = vpop.permute.xlu0 %2608
    %2610 = vrot.lane.b32.xlu0 %v2575, 64
    %v2611 = vpop.permute.xlu0 %2610
    %2612 = vrot.lane.b32.xlu0 %v2576, 64
    %v2613 = vpop.permute.xlu0 %2612
    %2614 = vrot.lane.b32.xlu0 %v2577, 64
    %v2615 = vpop.permute.xlu0 %2614
    %2616 = vrot.lane.b32.xlu0 %v2578, 64
    %v2617 = vpop.permute.xlu0 %2616
    %2618 = vrot.lane.b32.xlu0 %v2579, 64
    %v2619 = vpop.permute.xlu0 %2618
    %2620 = vrot.lane.b32.xlu0 %v2580, 64
    %v2621 = vpop.permute.xlu0 %2620
    %2622 = vrot.lane.b32.xlu0 %v2581, 64
    %v2623 = vpop.permute.xlu0 %2622
    %2624 = vrot.lane.b32.xlu0 %v2582, 64
    %v2625 = vpop.permute.xlu0 %2624
    %2626 = vrot.lane.b32.xlu0 %v2583, 64
    %v2627 = vpop.permute.xlu0 %2626
    %2628 = vrot.lane.b32.xlu0 %v2584, 64
    %v2629 = vpop.permute.xlu0 %2628
    %2630 = vrot.lane.b32.xlu0 %v2585, 64
    %v2631 = vpop.permute.xlu0 %2630
    %2632 = vrot.lane.b32.xlu0 %v2586, 64
    %v2633 = vpop.permute.xlu0 %2632
    %2634 = vrot.lane.b32.xlu0 %v2587, 64
    %v2635 = vpop.permute.xlu0 %2634
    %2652 = vst.msk [vmem:[#allocation5] sm:$0xff] %vm210, %v2605
    %2653 = vst.msk [vmem:[#allocation5 + $0x10] sm:$0xff] %vm210, %v2607
    %2654 = vst.msk [vmem:[#allocation5 + $0x20] sm:$0xff] %vm210, %v2609
    %2655 = vst.msk [vmem:[#allocation5 + $0x30] sm:$0xff] %vm210, %v2611
    %2656 = vst.msk [vmem:[#allocation5 + $0x40] sm:$0xff] %vm210, %v2613
    %2657 = vst.msk [vmem:[#allocation5 + $0x50] sm:$0xff] %vm210, %v2615
    %2658 = vst.msk [vmem:[#allocation5 + $0x60] sm:$0xff] %vm210, %v2617
    %2659 = vst.msk [vmem:[#allocation5 + $0x70] sm:$0xff] %vm210, %v2619
    %2660 = vst.msk [vmem:[#allocation5 + $0x80] sm:$0xff] %vm210, %v2621
    %2661 = vst.msk [vmem:[#allocation5 + $0x90] sm:$0xff] %vm210, %v2623
    %2662 = vst.msk [vmem:[#allocation5 + $0xa0] sm:$0xff] %vm210, %v2625
    %2663 = vst.msk [vmem:[#allocation5 + $0xb0] sm:$0xff] %vm210, %v2627
    %2664 = vst.msk [vmem:[#allocation5 + $0xc0] sm:$0xff] %vm210, %v2629
    %2665 = vst.msk [vmem:[#allocation5 + $0xd0] sm:$0xff] %vm210, %v2631
    %2666 = vst.msk [vmem:[#allocation5 + $0xe0] sm:$0xff] %vm210, %v2633
    %2667 = vst.msk [vmem:[#allocation5 + $0xf0] sm:$0xff] %vm210, %v2635
    %v2668 = vadd.s32 %v2492, 16
    %v2669 = vadd.s32 %v2493, 16
    %v2670 = vadd.s32 %v2494, 16
    %v2671 = vadd.s32 %v2495, 16
    %v2672 = vadd.s32 %v2496, 16
    %v2673 = vadd.s32 %v2497, 16
    %v2674 = vadd.s32 %v2498, 16
    %v2675 = vadd.s32 %v2499, 16
    %vm2676 = vcmp.eq.s32.totalorder %v2474, %v2668
    %vm2677 = vcmp.eq.s32.totalorder %v2475, %v2669
    %vm2678 = vcmp.eq.s32.totalorder %v2476, %v2670
    %vm2679 = vcmp.eq.s32.totalorder %v2477, %v2671
    %vm2680 = vcmp.eq.s32.totalorder %v2478, %v2672
    %vm2681 = vcmp.eq.s32.totalorder %v2479, %v2673
    %vm2682 = vcmp.eq.s32.totalorder %v2480, %v2674
    %vm2683 = vcmp.eq.s32.totalorder %v2481, %v2675
    %vm2684 = vcmp.eq.s32.totalorder %v2482, %v2668
    %vm2685 = vcmp.eq.s32.totalorder %v2483, %v2669
    %vm2686 = vcmp.eq.s32.totalorder %v2484, %v2670
    %vm2687 = vcmp.eq.s32.totalorder %v2485, %v2671
    %vm2688 = vcmp.eq.s32.totalorder %v2486, %v2672
    %vm2689 = vcmp.eq.s32.totalorder %v2487, %v2673
    %vm2690 = vcmp.eq.s32.totalorder %v2488, %v2674
    %vm2691 = vcmp.eq.s32.totalorder %v2489, %v2675
    %v2692 = vsel %vm2676, %v2458, 0.0
    %v2693 = vsel %vm2677, %v2459, 0.0
    %v2694 = vsel %vm2678, %v2460, 0.0
    %v2695 = vsel %vm2679, %v2461, 0.0
    %v2696 = vsel %vm2680, %v2462, 0.0
    %v2697 = vsel %vm2681, %v2463, 0.0
    %v2698 = vsel %vm2682, %v2464, 0.0
    %v2699 = vsel %vm2683, %v2465, 0.0
    %v2700 = vsel %vm2684, %v2466, 0.0
    %v2701 = vsel %vm2685, %v2467, 0.0
    %v2702 = vsel %vm2686, %v2468, 0.0
    %v2703 = vsel %vm2687, %v2469, 0.0
    %v2704 = vsel %vm2688, %v2470, 0.0
    %v2705 = vsel %vm2689, %v2471, 0.0
    %v2706 = vsel %vm2690, %v2472, 0.0
    %v2707 = vsel %vm2691, %v2473, 0.0
    %2708 = vst.msk [vmem:[#allocation5 + $0x8] sm:$0xff] %vm64, %v2692
    %2709 = vst.msk [vmem:[#allocation5 + $0x18] sm:$0xff] %vm64, %v2693
    %2710 = vst.msk [vmem:[#allocation5 + $0x28] sm:$0xff] %vm64, %v2694
    %2711 = vst.msk [vmem:[#allocation5 + $0x38] sm:$0xff] %vm64, %v2695
    %2712 = vst.msk [vmem:[#allocation5 + $0x48] sm:$0xff] %vm64, %v2696
    %2713 = vst.msk [vmem:[#allocation5 + $0x58] sm:$0xff] %vm64, %v2697
    %2714 = vst.msk [vmem:[#allocation5 + $0x68] sm:$0xff] %vm64, %v2698
    %2715 = vst.msk [vmem:[#allocation5 + $0x78] sm:$0xff] %vm64, %v2699
    %2716 = vst.msk [vmem:[#allocation5 + $0x88] sm:$0xff] %vm64, %v2700
    %2717 = vst.msk [vmem:[#allocation5 + $0x98] sm:$0xff] %vm64, %v2701
    %2718 = vst.msk [vmem:[#allocation5 + $0xa8] sm:$0xff] %vm64, %v2702
    %2719 = vst.msk [vmem:[#allocation5 + $0xb8] sm:$0xff] %vm64, %v2703
    %2720 = vst.msk [vmem:[#allocation5 + $0xc8] sm:$0xff] %vm64, %v2704
    %2721 = vst.msk [vmem:[#allocation5 + $0xd8] sm:$0xff] %vm64, %v2705
    %2722 = vst.msk [vmem:[#allocation5 + $0xe8] sm:$0xff] %vm64, %v2706
    %2723 = vst.msk [vmem:[#allocation5 + $0xf8] sm:$0xff] %vm64, %v2707
    %v2724 = vadd.s32 %v2668, 1
    %v2725 = vadd.s32 %v2669, 1
    %v2726 = vadd.s32 %v2670, 1
    %v2727 = vadd.s32 %v2671, 1
    %v2728 = vadd.s32 %v2672, 1
    %v2729 = vadd.s32 %v2673, 1
    %v2730 = vadd.s32 %v2674, 1
    %v2731 = vadd.s32 %v2675, 1
    %vm2732 = vcmp.eq.s32.totalorder %v2474, %v2724
    %vm2733 = vcmp.eq.s32.totalorder %v2475, %v2725
    %vm2734 = vcmp.eq.s32.totalorder %v2476, %v2726
    %vm2735 = vcmp.eq.s32.totalorder %v2477, %v2727
    %vm2736 = vcmp.eq.s32.totalorder %v2478, %v2728
    %vm2737 = vcmp.eq.s32.totalorder %v2479, %v2729
    %vm2738 = vcmp.eq.s32.totalorder %v2480, %v2730
    %vm2739 = vcmp.eq.s32.totalorder %v2481, %v2731
    %vm2740 = vcmp.eq.s32.totalorder %v2482, %v2724
    %vm2741 = vcmp.eq.s32.totalorder %v2483, %v2725
    %vm2742 = vcmp.eq.s32.totalorder %v2484, %v2726
    %vm2743 = vcmp.eq.s32.totalorder %v2485, %v2727
    %vm2744 = vcmp.eq.s32.totalorder %v2486, %v2728
    %vm2745 = vcmp.eq.s32.totalorder %v2487, %v2729
    %vm2746 = vcmp.eq.s32.totalorder %v2488, %v2730
    %vm2747 = vcmp.eq.s32.totalorder %v2489, %v2731
    %v2748 = vsel %vm2732, %v2458, 0.0
    %v2749 = vsel %vm2733, %v2459, 0.0
    %v2750 = vsel %vm2734, %v2460, 0.0
    %v2751 = vsel %vm2735, %v2461, 0.0
    %v2752 = vsel %vm2736, %v2462, 0.0
    %v2753 = vsel %vm2737, %v2463, 0.0
    %v2754 = vsel %vm2738, %v2464, 0.0
    %v2755 = vsel %vm2739, %v2465, 0.0
    %v2756 = vsel %vm2740, %v2466, 0.0
    %v2757 = vsel %vm2741, %v2467, 0.0
    %v2758 = vsel %vm2742, %v2468, 0.0
    %v2759 = vsel %vm2743, %v2469, 0.0
    %v2760 = vsel %vm2744, %v2470, 0.0
    %v2761 = vsel %vm2745, %v2471, 0.0
    %v2762 = vsel %vm2746, %v2472, 0.0
    %v2763 = vsel %vm2747, %v2473, 0.0
    %2780 = vrot.lane.b32.xlu0 %v2748, 64
    %v2781 = vpop.permute.xlu0 %2780
    %2782 = vrot.lane.b32.xlu0 %v2749, 64
    %v2783 = vpop.permute.xlu0 %2782
    %2784 = vrot.lane.b32.xlu0 %v2750, 64
    %v2785 = vpop.permute.xlu0 %2784
    %2786 = vrot.lane.b32.xlu0 %v2751, 64
    %v2787 = vpop.permute.xlu0 %2786
    %2788 = vrot.lane.b32.xlu0 %v2752, 64
    %v2789 = vpop.permute.xlu0 %2788
    %2790 = vrot.lane.b32.xlu0 %v2753, 64
    %v2791 = vpop.permute.xlu0 %2790
    %2792 = vrot.lane.b32.xlu0 %v2754, 64
    %v2793 = vpop.permute.xlu0 %2792
    %2794 = vrot.lane.b32.xlu0 %v2755, 64
    %v2795 = vpop.permute.xlu0 %2794
    %2796 = vrot.lane.b32.xlu0 %v2756, 64
    %v2797 = vpop.permute.xlu0 %2796
    %2798 = vrot.lane.b32.xlu0 %v2757, 64
    %v2799 = vpop.permute.xlu0 %2798
    %2800 = vrot.lane.b32.xlu0 %v2758, 64
    %v2801 = vpop.permute.xlu0 %2800
    %2802 = vrot.lane.b32.xlu0 %v2759, 64
    %v2803 = vpop.permute.xlu0 %2802
    %2804 = vrot.lane.b32.xlu0 %v2760, 64
    %v2805 = vpop.permute.xlu0 %2804
    %2806 = vrot.lane.b32.xlu0 %v2761, 64
    %v2807 = vpop.permute.xlu0 %2806
    %2808 = vrot.lane.b32.xlu0 %v2762, 64
    %v2809 = vpop.permute.xlu0 %2808
    %2810 = vrot.lane.b32.xlu0 %v2763, 64
    %v2811 = vpop.permute.xlu0 %2810
    %2828 = vst.msk [vmem:[#allocation5 + $0x8] sm:$0xff] %vm210, %v2781
    %2829 = vst.msk [vmem:[#allocation5 + $0x18] sm:$0xff] %vm210, %v2783
    %2830 = vst.msk [vmem:[#allocation5 + $0x28] sm:$0xff] %vm210, %v2785
    %2831 = vst.msk [vmem:[#allocation5 + $0x38] sm:$0xff] %vm210, %v2787
    %2832 = vst.msk [vmem:[#allocation5 + $0x48] sm:$0xff] %vm210, %v2789
    %2833 = vst.msk [vmem:[#allocation5 + $0x58] sm:$0xff] %vm210, %v2791
    %2834 = vst.msk [vmem:[#allocation5 + $0x68] sm:$0xff] %vm210, %v2793
    %2835 = vst.msk [vmem:[#allocation5 + $0x78] sm:$0xff] %vm210, %v2795
    %2836 = vst.msk [vmem:[#allocation5 + $0x88] sm:$0xff] %vm210, %v2797
    %2837 = vst.msk [vmem:[#allocation5 + $0x98] sm:$0xff] %vm210, %v2799
    %2838 = vst.msk [vmem:[#allocation5 + $0xa8] sm:$0xff] %vm210, %v2801
    %2839 = vst.msk [vmem:[#allocation5 + $0xb8] sm:$0xff] %vm210, %v2803
    %2840 = vst.msk [vmem:[#allocation5 + $0xc8] sm:$0xff] %vm210, %v2805
    %2841 = vst.msk [vmem:[#allocation5 + $0xd8] sm:$0xff] %vm210, %v2807
    %2842 = vst.msk [vmem:[#allocation5 + $0xe8] sm:$0xff] %vm210, %v2809
    %2843 = vst.msk [vmem:[#allocation5 + $0xf8] sm:$0xff] %vm210, %v2811
    // Predicated region
    $region26: #{tpu_custom_call.1} parent=1 // pred_check
      _
    $region27: #{tpu_custom_call.1} parent=1 // pred_check_branch
      %2845 = sbr.rel (0) target = $region29
    $region28: #{tpu_custom_call.1} parent=1 // pred_region
      %s2847 = ssub.s32 4096, 4096
      %2848 = vsyncadd [#allocation6], %s2847
      %s2849 = sshll.u32 [#allocation5], 4
      %s2850 = int_to_ptr.vmem [resolvable:$true] %s2849
      %2855 = dma.vmem_to_hbm [thread:$0]  %s2850, 4096, %s6, [#allocation6], 256, 256, 16
    $region29: #{tpu_custom_call.1} parent=1 // pred_fallthru
      _
    // Predicated region
    $region30: #{tpu_custom_call.1} parent=1 // pred_check
      _
    $region31: #{tpu_custom_call.1} parent=1 // pred_check_branch
      %2857 = sbr.rel (0) target = $region33
    $region32: #{tpu_custom_call.1} parent=1 // pred_region
      %2858 = dma.done [#allocation6], 4096
    $region33: #{tpu_custom_call.1} parent=1 // pred_fallthru
      _
    %2859 = vsyncpa [#allocation6], 1

</llo_original>
